<compile_context>
chip_gen: v7x
topology: tpu7x:2x2x1
jax: 0.10.0
libtpu: 0.0.40
codegen_flags: <defaults>
</compile_context>

<pallas_src>
import functools

import jax
import jax.numpy as jnp
from jax.experimental import pallas as pl
from jax.experimental.pallas import tpu as pltpu


def _layer_norm(y, gamma, beta):
    mu = jnp.mean(y, axis=-1, keepdims=True)
    var = jnp.mean((y - mu) ** 2, axis=-1, keepdims=True)
    return (y - mu) * jax.lax.rsqrt(var + jnp.float32(1e-5)) * gamma + beta


def encoder_block_kernel(mask_ref, x_ref,
                         wq_ref, wk_ref, wv_ref, wo_ref,
                         w1_ref, b1_ref, w2_ref, b2_ref,
                         g1_ref, bln1_ref, g2_ref, bln2_ref,
                         out_ref, *, num_head: int, ffn_chunk: int):
    """One grid step = one batch tile (TB batch elements). Projections / Wo / FFN run on
    the flattened (TB*L, D) slab; attention runs as head-batched einsums."""
    TB, L, D = x_ref.shape
    dh = D // num_head
    scale = 1.0 / float(dh) ** 0.5      # == 1/sqrt(d_model/num_head), as in torch

    x2d = x_ref[...].astype(jnp.float32).reshape(TB * L, D)   # residual path in f32
    xb = x2d.astype(jnp.bfloat16)                              # bf16 MXU feed

    # QKV projections (Linear, bias=False). Weights are pre-transposed (in, out) bf16,
    # so this is a plain x @ W with f32 accumulation.
    q = jnp.dot(xb, wq_ref[...], preferred_element_type=jnp.float32)   # (TB*L, D) f32
    k = jnp.dot(xb, wk_ref[...], preferred_element_type=jnp.float32)
    v = jnp.dot(xb, wv_ref[...], preferred_element_type=jnp.float32)

    # Head split: one bf16 cast per slab, lane slice per head, stack along a new major
    # axis (no 4-D transpose), then fold (H, TB) into a single batch dim.
    def split_heads(m):                              # (TB*L, D) f32 -> (H*TB, L, dh) bf16
        mb = m.astype(jnp.bfloat16)
        parts = [mb[:, h * dh:(h + 1) * dh] for h in range(num_head)]
        return jnp.stack(parts, axis=0).reshape(num_head * TB, L, dh)

    qh, kh, vh = split_heads(q), split_heads(k), split_heads(v)

    # Additive padding-mask bias computed once per step: 0 for valid keys, -1e9 for
    # padded keys (numerically equivalent to masked_fill(-1e9) after softmax).
    bias = (mask_ref[...].astype(jnp.float32) - 1.0) * jnp.float32(1e9)   # (TB, 1, L)
    bias = jnp.broadcast_to(bias[None], (num_head, TB, 1, L)).reshape(
        num_head * TB, 1, L)

    # Batched attention over all (head, batch) pairs at once.
    scores = jnp.einsum('bqd,bkd->bqk', qh, kh,
                        preferred_element_type=jnp.float32) * scale + bias  # (H*TB,L,L)
    scores = scores - jnp.max(scores, axis=-1, keepdims=True)
    p = jnp.exp(scores)
    denom = jnp.sum(p, axis=-1, keepdims=True)
    p = p * pl.reciprocal(denom, approx=True)                  # softmax (EUP reciprocal)
    pv = jnp.einsum('bqk,bkd->bqd', p.astype(jnp.bfloat16), vh,
                    preferred_element_type=jnp.float32)        # (H*TB, L, dh) f32

    # Output projection folded over heads: concat_h(pv_h) @ Wo == sum_h pv_h @ Wo_rows_h.
    # Avoids both a lane-dim concatenate and masked partial stores into a scratch.
    pvb = pv.astype(jnp.bfloat16).reshape(num_head, TB * L, dh)
    attn = jnp.dot(pvb[0], wo_ref[0:dh, :], preferred_element_type=jnp.float32)
    for h in range(1, num_head):
        attn = attn + jnp.dot(pvb[h], wo_ref[h * dh:(h + 1) * dh, :],
                              preferred_element_type=jnp.float32)          # (TB*L, D)

    # TODO(synk): F.dropout is identity here (inference, p_drop=0); stochastic dropout
    # is not emulated.

    # Residual + LayerNorm 1 (f32).
    temp = _layer_norm(x2d + attn, g1_ref[...], bln1_ref[...])
    tempb = temp.astype(jnp.bfloat16)

    # Position-wise FFN: Linear(d_model->d_ff) -> ReLU -> Linear(d_ff->d_model), tiled
    # over d_ff chunks so the (TB*L, d_ff) intermediate never has to be fully resident.
    d_ff = w1_ref.shape[1]
    ffn = jnp.zeros((TB * L, D), jnp.float32)
    for c0 in range(0, d_ff, ffn_chunk):
        c1 = min(c0 + ffn_chunk, d_ff)
        h1 = jnp.maximum(
            jnp.dot(tempb, w1_ref[:, c0:c1], preferred_element_type=jnp.float32)
            + b1_ref[:, c0:c1], 0.0)                                   # (TB*L, chunk)
        ffn = ffn + jnp.dot(h1.astype(jnp.bfloat16), w2_ref[c0:c1, :],
                            preferred_element_type=jnp.float32)
    ffn = ffn + b2_ref[...]

    # Residual + LayerNorm 2 (f32).
    out = _layer_norm(temp + ffn, g2_ref[...], bln2_ref[...])
    out_ref[...] = out.reshape(TB, L, D).astype(out_ref.dtype)


def _vmem_budget_bytes():
    """~75% of per-TensorCore VMEM (generation aware); conservative 48 MiB fallback."""
    cap = None
    try:
        cap = pltpu.get_tpu_info().vmem_capacity_bytes
    except Exception:
        cap = None
    if not cap:
        cap = 64 * 1024 * 1024           # v7x per-TC VMEM (smallest of v5e/v6e/v7x)
    return int(cap) * 3 // 4


def _pick_batch_tile(B, L, D, d_ff, num_head, ffn_chunk, act_budget, max_tb):
    """Largest divisor of B (<= max_tb) whose per-step working set fits act_budget."""
    best = 1
    for tb in range(1, max(1, min(B, max_tb)) + 1):
        if B % tb:
            continue
        rows = tb * L
        est = (
            2 * rows * D * 2                     # streamed x block (bf16), double-buffered
            + 2 * rows * D * 4                   # streamed out block (f32), double-buffered
            + rows * D * 44                      # resident f32/bf16 activation copies
            + tb * num_head * L * L * 10         # score / prob tiles (f32 + bf16)
            + rows * min(d_ff, ffn_chunk) * 6    # live FFN chunk (f32 + bf16)
        )
        if est <= act_budget:
            best = tb
    return best


def encoder_block(x, padding_mask, params, num_head, *, batch_tile=None):
    """x: (B, L, D); padding_mask: (B, L) with 1=valid, 0=pad. Returns (B, L, D) f32."""
    B, L, D = x.shape
    d_ff = params["w1"].shape[0]
    assert D % num_head == 0
    ffn_chunk = min(d_ff, 2048)

    vmem_budget = _vmem_budget_bytes()
    # Weights / biases / LN params held in VMEM (counted double-buffered to stay safe if
    # the single-buffer request below is unavailable in this JAX version).
    w_bytes = (4 * D * D + 2 * D * d_ff) * 2 + (d_ff + 5 * D) * 4
    act_budget = max(vmem_budget - 2 * w_bytes, 2 * 1024 * 1024)

    # Keep >= 2 grid steps so both TensorCores stay busy on v7x (harmless on v5e/v6e).
    max_tb = max(1, B // 2)
    TB = batch_tile if batch_tile is not None else _pick_batch_tile(
        B, L, D, d_ff, num_head, ffn_chunk, act_budget, max_tb)
    assert B % TB == 0, "batch tile must divide batch"

    # Pre-transpose weights once (PyTorch stores (out, in); kernel wants (in, out)) and
    # cast to bf16 for MXU feeds. Biases / LN params stay f32.
    wdt = jnp.bfloat16
    wq_t = params["wq"].T.astype(wdt)
    wk_t = params["wk"].T.astype(wdt)
    wv_t = params["wv"].T.astype(wdt)
    wo_t = params["wo"].T.astype(wdt)
    w1_t = params["w1"].T.astype(wdt)    # (D, d_ff)
    w2_t = params["w2"].T.astype(wdt)    # (d_ff, D)

    kernel = functools.partial(encoder_block_kernel, num_head=num_head,
                               ffn_chunk=ffn_chunk)

    def make_call(use_buffered):
        def const_spec(shape):
            zeros = (0,) * len(shape)
            idx = lambda b, _z=zeros: _z
            if use_buffered and hasattr(pl, "Buffered"):
                try:
                    # Grid-constant blocks: single-buffer to halve their VMEM footprint.
                    return pl.BlockSpec(shape, idx, pipeline_mode=pl.Buffered(1))
                except TypeError:
                    pass
            return pl.BlockSpec(shape, idx)

        in_specs = [
            pl.BlockSpec((TB, 1, L), lambda b: (b, 0, 0)),   # padding mask
            pl.BlockSpec((TB, L, D), lambda b: (b, 0, 0)),   # activations (bf16 stream)
            const_spec((D, D)), const_spec((D, D)),          # Wq^T, Wk^T
            const_spec((D, D)), const_spec((D, D)),          # Wv^T, Wo^T
            const_spec((D, d_ff)), const_spec((1, d_ff)),    # W1^T, b1
            const_spec((d_ff, D)), const_spec((1, D)),       # W2^T, b2
            const_spec((1, D)), const_spec((1, D)),          # LN1 gamma, beta
            const_spec((1, D)), const_spec((1, D)),          # LN2 gamma, beta
        ]
        return pl.pallas_call(
            kernel,
            out_shape=jax.ShapeDtypeStruct((B, L, D), jnp.float32),
            grid=(B // TB,),
            in_specs=in_specs,
            out_specs=pl.BlockSpec((TB, L, D), lambda b: (b, 0, 0)),
            compiler_params=pltpu.CompilerParams(
                dimension_semantics=("parallel",),
                vmem_limit_bytes=vmem_budget),
        )

    args = (
        padding_mask.reshape(B, 1, L).astype(jnp.float32),
        x.astype(jnp.bfloat16),                      # stream activations through HBM in bf16
        wq_t, wk_t, wv_t, wo_t,
        w1_t, params["b1"].reshape(1, d_ff).astype(jnp.float32),
        w2_t, params["b2"].reshape(1, D).astype(jnp.float32),
        params["ln1_g"].reshape(1, D).astype(jnp.float32),
        params["ln1_b"].reshape(1, D).astype(jnp.float32),
        params["ln2_g"].reshape(1, D).astype(jnp.float32),
        params["ln2_b"].reshape(1, D).astype(jnp.float32),
    )

    try:
        return make_call(True)(*args)
    except Exception:
        # Fall back to default (double-buffered) weight blocks if single-buffering is
        # not supported by this JAX/Mosaic version.
        return make_call(False)(*args)


def encoder_block_reference(x, padding_mask, params, num_head):
    """Pure-JAX f32 reference mirroring the PyTorch forward."""
    B, L, D = x.shape
    dh = D // num_head
    scale = 1.0 / jnp.sqrt(jnp.float32(dh))

    def ln(y, g, b):
        mu = jnp.mean(y, -1, keepdims=True)
        var = jnp.mean((y - mu) ** 2, -1, keepdims=True)
        return (y - mu) * jax.lax.rsqrt(var + 1e-5) * g + b

    q = x @ params["wq"].T
    k = x @ params["wk"].T
    v = x @ params["wv"].T
    qh = q.reshape(B, L, num_head, dh).transpose(0, 2, 1, 3)
    kh = k.reshape(B, L, num_head, dh).transpose(0, 2, 1, 3)
    vh = v.reshape(B, L, num_head, dh).transpose(0, 2, 1, 3)
    scores = jnp.einsum("bhqd,bhkd->bhqk", qh, kh) * scale
    key_invalid = (padding_mask == 0)[:, None, None, :]
    scores = jnp.where(key_invalid, -1e9, scores)
    w = jax.nn.softmax(scores, axis=-1)
    attn = jnp.einsum("bhqk,bhkd->bhqd", w, vh).transpose(0, 2, 1, 3).reshape(B, L, D)
    attn = attn @ params["wo"].T
    temp = ln(x + attn, params["ln1_g"], params["ln1_b"])
    ffn = jnp.maximum(temp @ params["w1"].T + params["b1"], 0.0) @ params["w2"].T + params["b2"]
    return ln(temp + ffn, params["ln2_g"], params["ln2_b"])


if __name__ == "__main__":
    B, L, D, H, d_ff = 2, 8, 32, 4, 64   # batch, max_len, d_model, num_head, d_ff

    key = jax.random.PRNGKey(0)
    ks = jax.random.split(key, 9)
    params = {
        "wq": 0.05 * jax.random.normal(ks[0], (D, D), jnp.float32),
        "wk": 0.05 * jax.random.normal(ks[1], (D, D), jnp.float32),
        "wv": 0.05 * jax.random.normal(ks[2], (D, D), jnp.float32),
        "wo": 0.05 * jax.random.normal(ks[3], (D, D), jnp.float32),
        "w1": 0.05 * jax.random.normal(ks[4], (d_ff, D), jnp.float32),
        "b1": 0.01 * jax.random.normal(ks[5], (d_ff,), jnp.float32),
        "w2": 0.05 * jax.random.normal(ks[6], (D, d_ff), jnp.float32),
        "b2": 0.01 * jax.random.normal(ks[7], (D,), jnp.float32),
        "ln1_g": jnp.ones((D,), jnp.float32),
        "ln1_b": jnp.zeros((D,), jnp.float32),
        "ln2_g": jnp.ones((D,), jnp.float32),
        "ln2_b": jnp.zeros((D,), jnp.float32),
    }

    x = jax.random.normal(ks[8], (B, L, D), jnp.float32)
    # padding mask: 1 = valid, 0 = padded (second sequence has 2 padded positions)
    padding_mask = jnp.array(
        [[1, 1, 1, 1, 1, 1, 1, 1],
         [1, 1, 1, 1, 1, 1, 0, 0]], dtype=jnp.float32)

    out = encoder_block(x, padding_mask, params, num_head=H)
    out = jax.block_until_ready(out)

    ref = encoder_block_reference(x, padding_mask, params, num_head=H)
    assert out.shape == (B, L, D)
    # bf16 activation stream + bf16 MXU feeds + approx reciprocal -> compare against
    # the pure-f32 reference with a correspondingly loose tolerance.
    assert jnp.allclose(out, ref, atol=3e-2, rtol=3e-2), "mismatch vs pure-JAX reference"

    print("KERNEL_OK")
</pallas_src>

<mosaic_0001>
module attributes {stable_mosaic.version = 11 : i64} {
  func.func @encoder_block_kernel(%arg0: i32, %arg1: memref<1x1x8xf32, #tpu.memory_space<vmem>>, %arg2: memref<1x8x32xbf16, #tpu.memory_space<vmem>>, %arg3: memref<32x32xbf16, #tpu.memory_space<vmem>>, %arg4: memref<32x32xbf16, #tpu.memory_space<vmem>>, %arg5: memref<32x32xbf16, #tpu.memory_space<vmem>>, %arg6: memref<32x32xbf16, #tpu.memory_space<vmem>>, %arg7: memref<32x64xbf16, #tpu.memory_space<vmem>>, %arg8: memref<1x64xf32, #tpu.memory_space<vmem>>, %arg9: memref<64x32xbf16, #tpu.memory_space<vmem>>, %arg10: memref<1x32xf32, #tpu.memory_space<vmem>>, %arg11: memref<1x32xf32, #tpu.memory_space<vmem>>, %arg12: memref<1x32xf32, #tpu.memory_space<vmem>>, %arg13: memref<1x32xf32, #tpu.memory_space<vmem>>, %arg14: memref<1x32xf32, #tpu.memory_space<vmem>>, %arg15: memref<1x8x32xf32, #tpu.memory_space<vmem>>) attributes {dimension_semantics = [#tpu.dimension_semantics<parallel>], iteration_bounds = array<i64: 2>, scalar_prefetch = 0 : i64, scratch_operands = 0 : i64, tpu.core_type = #tpu.core_type<tc>, window_params = [{transform_indices = @transform_0, window_bounds = array<i64: 1, 1, 8>}, {transform_indices = @transform_1, window_bounds = array<i64: 1, 8, 32>}, {pipeline_mode = #tpu.pipeline_mode<synchronous>, transform_indices = @transform_2, window_bounds = array<i64: 32, 32>}, {pipeline_mode = #tpu.pipeline_mode<synchronous>, transform_indices = @transform_3, window_bounds = array<i64: 32, 32>}, {pipeline_mode = #tpu.pipeline_mode<synchronous>, transform_indices = @transform_4, window_bounds = array<i64: 32, 32>}, {pipeline_mode = #tpu.pipeline_mode<synchronous>, transform_indices = @transform_5, window_bounds = array<i64: 32, 32>}, {pipeline_mode = #tpu.pipeline_mode<synchronous>, transform_indices = @transform_6, window_bounds = array<i64: 32, 64>}, {pipeline_mode = #tpu.pipeline_mode<synchronous>, transform_indices = @transform_7, window_bounds = array<i64: 1, 64>}, {pipeline_mode = #tpu.pipeline_mode<synchronous>, transform_indices = @transform_8, window_bounds = array<i64: 64, 32>}, {pipeline_mode = #tpu.pipeline_mode<synchronous>, transform_indices = @transform_9, window_bounds = array<i64: 1, 32>}, {pipeline_mode = #tpu.pipeline_mode<synchronous>, transform_indices = @transform_10, window_bounds = array<i64: 1, 32>}, {pipeline_mode = #tpu.pipeline_mode<synchronous>, transform_indices = @transform_11, window_bounds = array<i64: 1, 32>}, {pipeline_mode = #tpu.pipeline_mode<synchronous>, transform_indices = @transform_12, window_bounds = array<i64: 1, 32>}, {pipeline_mode = #tpu.pipeline_mode<synchronous>, transform_indices = @transform_13, window_bounds = array<i64: 1, 32>}, {transform_indices = @transform_14, window_bounds = array<i64: 1, 8, 32>}]} {
    %c0 = arith.constant 0 : index
    %c0_0 = arith.constant 0 : index
    %c0_1 = arith.constant 0 : index
    %0 = vector.load %arg2[%c0, %c0_0, %c0_1] : memref<1x8x32xbf16, #tpu.memory_space<vmem>>, vector<1x8x32xbf16>
    %1 = arith.extf %0 : vector<1x8x32xbf16> to vector<1x8x32xf32>
    %2 = vector.shape_cast %1 : vector<1x8x32xf32> to vector<8x32xf32>
    %3 = arith.truncf %2 : vector<8x32xf32> to vector<8x32xbf16>
    %c0_2 = arith.constant 0 : index
    %c0_3 = arith.constant 0 : index
    %4 = vector.load %arg3[%c0_2, %c0_3] : memref<32x32xbf16, #tpu.memory_space<vmem>>, vector<32x32xbf16>
    %cst = arith.constant dense<0.000000e+00> : vector<8x32xf32>
    %5 = tpu.matmul %3, %4, %cst {dimension_numbers = #tpu.dot_dimension_numbers<[1], [0], [0], [1], [0, 0, 1, 1], [], []>} : vector<8x32xbf16>, vector<32x32xbf16>, vector<8x32xf32> -> vector<8x32xf32>
    %c0_4 = arith.constant 0 : index
    %c0_5 = arith.constant 0 : index
    %6 = vector.load %arg4[%c0_4, %c0_5] : memref<32x32xbf16, #tpu.memory_space<vmem>>, vector<32x32xbf16>
    %cst_6 = arith.constant dense<0.000000e+00> : vector<8x32xf32>
    %7 = tpu.matmul %3, %6, %cst_6 {dimension_numbers = #tpu.dot_dimension_numbers<[1], [0], [0], [1], [0, 0, 1, 1], [], []>} : vector<8x32xbf16>, vector<32x32xbf16>, vector<8x32xf32> -> vector<8x32xf32>
    %c0_7 = arith.constant 0 : index
    %c0_8 = arith.constant 0 : index
    %8 = vector.load %arg5[%c0_7, %c0_8] : memref<32x32xbf16, #tpu.memory_space<vmem>>, vector<32x32xbf16>
    %cst_9 = arith.constant dense<0.000000e+00> : vector<8x32xf32>
    %9 = tpu.matmul %3, %8, %cst_9 {dimension_numbers = #tpu.dot_dimension_numbers<[1], [0], [0], [1], [0, 0, 1, 1], [], []>} : vector<8x32xbf16>, vector<32x32xbf16>, vector<8x32xf32> -> vector<8x32xf32>
    %10 = arith.truncf %5 : vector<8x32xf32> to vector<8x32xbf16>
    %11 = vector.extract_strided_slice %10 {offsets = [0, 0], sizes = [8, 8], strides = [1, 1]} : vector<8x32xbf16> to vector<8x8xbf16>
    %12 = vector.extract_strided_slice %10 {offsets = [0, 8], sizes = [8, 8], strides = [1, 1]} : vector<8x32xbf16> to vector<8x8xbf16>
    %13 = vector.extract_strided_slice %10 {offsets = [0, 16], sizes = [8, 8], strides = [1, 1]} : vector<8x32xbf16> to vector<8x8xbf16>
    %14 = vector.extract_strided_slice %10 {offsets = [0, 24], sizes = [8, 8], strides = [1, 1]} : vector<8x32xbf16> to vector<8x8xbf16>
    %15 = vector.shape_cast %11 : vector<8x8xbf16> to vector<1x8x8xbf16>
    %16 = vector.shape_cast %12 : vector<8x8xbf16> to vector<1x8x8xbf16>
    %17 = vector.shape_cast %13 : vector<8x8xbf16> to vector<1x8x8xbf16>
    %18 = vector.shape_cast %14 : vector<8x8xbf16> to vector<1x8x8xbf16>
    %19 = tpu.concatenate %15, %16, %17, %18 in 0 : vector<1x8x8xbf16>, vector<1x8x8xbf16>, vector<1x8x8xbf16>, vector<1x8x8xbf16> -> vector<4x8x8xbf16>
    %20 = arith.truncf %7 : vector<8x32xf32> to vector<8x32xbf16>
    %21 = vector.extract_strided_slice %20 {offsets = [0, 0], sizes = [8, 8], strides = [1, 1]} : vector<8x32xbf16> to vector<8x8xbf16>
    %22 = vector.extract_strided_slice %20 {offsets = [0, 8], sizes = [8, 8], strides = [1, 1]} : vector<8x32xbf16> to vector<8x8xbf16>
    %23 = vector.extract_strided_slice %20 {offsets = [0, 16], sizes = [8, 8], strides = [1, 1]} : vector<8x32xbf16> to vector<8x8xbf16>
    %24 = vector.extract_strided_slice %20 {offsets = [0, 24], sizes = [8, 8], strides = [1, 1]} : vector<8x32xbf16> to vector<8x8xbf16>
    %25 = vector.shape_cast %21 : vector<8x8xbf16> to vector<1x8x8xbf16>
    %26 = vector.shape_cast %22 : vector<8x8xbf16> to vector<1x8x8xbf16>
    %27 = vector.shape_cast %23 : vector<8x8xbf16> to vector<1x8x8xbf16>
    %28 = vector.shape_cast %24 : vector<8x8xbf16> to vector<1x8x8xbf16>
    %29 = tpu.concatenate %25, %26, %27, %28 in 0 : vector<1x8x8xbf16>, vector<1x8x8xbf16>, vector<1x8x8xbf16>, vector<1x8x8xbf16> -> vector<4x8x8xbf16>
    %30 = arith.truncf %9 : vector<8x32xf32> to vector<8x32xbf16>
    %31 = vector.extract_strided_slice %30 {offsets = [0, 0], sizes = [8, 8], strides = [1, 1]} : vector<8x32xbf16> to vector<8x8xbf16>
    %32 = vector.extract_strided_slice %30 {offsets = [0, 8], sizes = [8, 8], strides = [1, 1]} : vector<8x32xbf16> to vector<8x8xbf16>
    %33 = vector.extract_strided_slice %30 {offsets = [0, 16], sizes = [8, 8], strides = [1, 1]} : vector<8x32xbf16> to vector<8x8xbf16>
    %34 = vector.extract_strided_slice %30 {offsets = [0, 24], sizes = [8, 8], strides = [1, 1]} : vector<8x32xbf16> to vector<8x8xbf16>
    %35 = vector.shape_cast %31 : vector<8x8xbf16> to vector<1x8x8xbf16>
    %36 = vector.shape_cast %32 : vector<8x8xbf16> to vector<1x8x8xbf16>
    %37 = vector.shape_cast %33 : vector<8x8xbf16> to vector<1x8x8xbf16>
    %38 = vector.shape_cast %34 : vector<8x8xbf16> to vector<1x8x8xbf16>
    %39 = tpu.concatenate %35, %36, %37, %38 in 0 : vector<1x8x8xbf16>, vector<1x8x8xbf16>, vector<1x8x8xbf16>, vector<1x8x8xbf16> -> vector<4x8x8xbf16>
    %c0_10 = arith.constant 0 : index
    %c0_11 = arith.constant 0 : index
    %c0_12 = arith.constant 0 : index
    %40 = vector.load %arg1[%c0_10, %c0_11, %c0_12] : memref<1x1x8xf32, #tpu.memory_space<vmem>>, vector<1x1x8xf32>
    %cst_13 = arith.constant 1.000000e+00 : f32
    %41 = vector.broadcast %cst_13 : f32 to vector<1x1x8xf32>
    %42 = arith.subf %40, %41 : vector<1x1x8xf32>
    %cst_14 = arith.constant 1.000000e+09 : f32
    %43 = vector.broadcast %cst_14 : f32 to vector<1x1x8xf32>
    %44 = arith.mulf %42, %43 : vector<1x1x8xf32>
    %45 = vector.shape_cast %44 : vector<1x1x8xf32> to vector<1x1x1x8xf32>
    %46 = vector.shape_cast %45 : vector<1x1x1x8xf32> to vector<1x1x1x8xf32>
    %47 = vector.broadcast %46 : vector<1x1x1x8xf32> to vector<4x1x1x8xf32>
    %48 = vector.shape_cast %47 : vector<4x1x1x8xf32> to vector<4x1x8xf32>
    "tpu.trace_start"() <{level = 10 : i32, message = "bqd,bkd->bqk"}> : () -> ()
    %cst_15 = arith.constant dense<0.000000e+00> : vector<4x8x8xf32>
    %49 = tpu.matmul %19, %29, %cst_15 {dimension_numbers = #tpu.dot_dimension_numbers<[2], [2], [1], [1], [0, 0, 0, 1, 1, 1], [0], [0]>} : vector<4x8x8xbf16>, vector<4x8x8xbf16>, vector<4x8x8xf32> -> vector<4x8x8xf32>
    "tpu.trace_stop"() : () -> ()
    %cst_16 = arith.constant 0.353553385 : f32
    %50 = vector.broadcast %cst_16 : f32 to vector<4x8x8xf32>
    %51 = arith.mulf %49, %50 : vector<4x8x8xf32>
    %52 = vector.broadcast %48 : vector<4x1x8xf32> to vector<4x8x8xf32>
    %53 = arith.addf %51, %52 : vector<4x8x8xf32>
    %cst_17 = arith.constant dense<0xFF800000> : vector<4x8xf32>
    %54 = vector.multi_reduction <maximumf>, %53, %cst_17 [2] : vector<4x8x8xf32> to vector<4x8xf32>
    %55 = vector.shape_cast %54 : vector<4x8xf32> to vector<4x8x1xf32>
    %56 = vector.broadcast %55 : vector<4x8x1xf32> to vector<4x8x8xf32>
    %57 = arith.subf %53, %56 : vector<4x8x8xf32>
    %58 = math.exp %57 : vector<4x8x8xf32>
    %cst_18 = arith.constant dense<0.000000e+00> : vector<4x8xf32>
    %59 = vector.multi_reduction <add>, %58, %cst_18 [2] : vector<4x8x8xf32> to vector<4x8xf32>
    %60 = vector.shape_cast %59 : vector<4x8xf32> to vector<4x8x1xf32>
    %61 = tpu.reciprocal %60 {approx = true} : vector<4x8x1xf32> -> vector<4x8x1xf32>
    %62 = vector.broadcast %61 : vector<4x8x1xf32> to vector<4x8x8xf32>
    %63 = arith.mulf %58, %62 : vector<4x8x8xf32>
    %64 = arith.truncf %63 : vector<4x8x8xf32> to vector<4x8x8xbf16>
    "tpu.trace_start"() <{level = 10 : i32, message = "bqk,bkd->bqd"}> : () -> ()
    %cst_19 = arith.constant dense<0.000000e+00> : vector<4x8x8xf32>
    %65 = tpu.matmul %64, %39, %cst_19 {dimension_numbers = #tpu.dot_dimension_numbers<[2], [1], [1], [2], [0, 0, 0, 1, 1, 2], [0], [0]>} : vector<4x8x8xbf16>, vector<4x8x8xbf16>, vector<4x8x8xf32> -> vector<4x8x8xf32>
    "tpu.trace_stop"() : () -> ()
    %66 = arith.truncf %65 : vector<4x8x8xf32> to vector<4x8x8xbf16>
    %67 = vector.extract_strided_slice %66 {offsets = [0, 0, 0], sizes = [1, 8, 8], strides = [1, 1, 1]} : vector<4x8x8xbf16> to vector<1x8x8xbf16>
    %68 = vector.shape_cast %67 : vector<1x8x8xbf16> to vector<8x8xbf16>
    %c0_20 = arith.constant 0 : index
    %c0_21 = arith.constant 0 : index
    %69 = vector.load %arg6[%c0_20, %c0_21] : memref<32x32xbf16, #tpu.memory_space<vmem>>, vector<8x32xbf16>
    %cst_22 = arith.constant dense<0.000000e+00> : vector<8x32xf32>
    %70 = tpu.matmul %68, %69, %cst_22 {dimension_numbers = #tpu.dot_dimension_numbers<[1], [0], [0], [1], [0, 0, 1, 1], [], []>} : vector<8x8xbf16>, vector<8x32xbf16>, vector<8x32xf32> -> vector<8x32xf32>
    %71 = vector.extract_strided_slice %66 {offsets = [1, 0, 0], sizes = [1, 8, 8], strides = [1, 1, 1]} : vector<4x8x8xbf16> to vector<1x8x8xbf16>
    %72 = vector.shape_cast %71 : vector<1x8x8xbf16> to vector<8x8xbf16>
    %c8 = arith.constant 8 : index
    %c0_23 = arith.constant 0 : index
    %73 = vector.load %arg6[%c8, %c0_23] : memref<32x32xbf16, #tpu.memory_space<vmem>>, vector<8x32xbf16>
    %cst_24 = arith.constant dense<0.000000e+00> : vector<8x32xf32>
    %74 = tpu.matmul %72, %73, %cst_24 {dimension_numbers = #tpu.dot_dimension_numbers<[1], [0], [0], [1], [0, 0, 1, 1], [], []>} : vector<8x8xbf16>, vector<8x32xbf16>, vector<8x32xf32> -> vector<8x32xf32>
    %75 = arith.addf %70, %74 : vector<8x32xf32>
    %76 = vector.extract_strided_slice %66 {offsets = [2, 0, 0], sizes = [1, 8, 8], strides = [1, 1, 1]} : vector<4x8x8xbf16> to vector<1x8x8xbf16>
    %77 = vector.shape_cast %76 : vector<1x8x8xbf16> to vector<8x8xbf16>
    %c16 = arith.constant 16 : index
    %c0_25 = arith.constant 0 : index
    %78 = vector.load %arg6[%c16, %c0_25] : memref<32x32xbf16, #tpu.memory_space<vmem>>, vector<8x32xbf16>
    %cst_26 = arith.constant dense<0.000000e+00> : vector<8x32xf32>
    %79 = tpu.matmul %77, %78, %cst_26 {dimension_numbers = #tpu.dot_dimension_numbers<[1], [0], [0], [1], [0, 0, 1, 1], [], []>} : vector<8x8xbf16>, vector<8x32xbf16>, vector<8x32xf32> -> vector<8x32xf32>
    %80 = arith.addf %75, %79 : vector<8x32xf32>
    %81 = vector.extract_strided_slice %66 {offsets = [3, 0, 0], sizes = [1, 8, 8], strides = [1, 1, 1]} : vector<4x8x8xbf16> to vector<1x8x8xbf16>
    %82 = vector.shape_cast %81 : vector<1x8x8xbf16> to vector<8x8xbf16>
    %c24 = arith.constant 24 : index
    %c0_27 = arith.constant 0 : index
    %83 = vector.load %arg6[%c24, %c0_27] : memref<32x32xbf16, #tpu.memory_space<vmem>>, vector<8x32xbf16>
    %cst_28 = arith.constant dense<0.000000e+00> : vector<8x32xf32>
    %84 = tpu.matmul %82, %83, %cst_28 {dimension_numbers = #tpu.dot_dimension_numbers<[1], [0], [0], [1], [0, 0, 1, 1], [], []>} : vector<8x8xbf16>, vector<8x32xbf16>, vector<8x32xf32> -> vector<8x32xf32>
    %85 = arith.addf %80, %84 : vector<8x32xf32>
    %86 = arith.addf %2, %85 : vector<8x32xf32>
    %c0_29 = arith.constant 0 : index
    %c0_30 = arith.constant 0 : index
    %87 = vector.load %arg11[%c0_29, %c0_30] : memref<1x32xf32, #tpu.memory_space<vmem>>, vector<1x32xf32>
    %c0_31 = arith.constant 0 : index
    %c0_32 = arith.constant 0 : index
    %88 = vector.load %arg12[%c0_31, %c0_32] : memref<1x32xf32, #tpu.memory_space<vmem>>, vector<1x32xf32>
    %cst_33 = arith.constant dense<0.000000e+00> : vector<8xf32>
    %89 = vector.multi_reduction <add>, %86, %cst_33 [1] : vector<8x32xf32> to vector<8xf32>
    %90 = vector.shape_cast %89 : vector<8xf32> to vector<8x1xf32>
    %cst_34 = arith.constant 3.200000e+01 : f32
    %91 = vector.broadcast %cst_34 : f32 to vector<8x1xf32>
    %92 = arith.divf %90, %91 : vector<8x1xf32>
    %93 = vector.broadcast %92 : vector<8x1xf32> to vector<8x32xf32>
    %94 = arith.subf %86, %93 : vector<8x32xf32>
    %95 = arith.mulf %94, %94 : vector<8x32xf32>
    %cst_35 = arith.constant dense<0.000000e+00> : vector<8xf32>
    %96 = vector.multi_reduction <add>, %95, %cst_35 [1] : vector<8x32xf32> to vector<8xf32>
    %97 = vector.shape_cast %96 : vector<8xf32> to vector<8x1xf32>
    %cst_36 = arith.constant 3.200000e+01 : f32
    %98 = vector.broadcast %cst_36 : f32 to vector<8x1xf32>
    %99 = arith.divf %97, %98 : vector<8x1xf32>
    %100 = vector.broadcast %92 : vector<8x1xf32> to vector<8x32xf32>
    %101 = arith.subf %86, %100 : vector<8x32xf32>
    %cst_37 = arith.constant 9.99999974E-6 : f32
    %102 = vector.broadcast %cst_37 : f32 to vector<8x1xf32>
    %103 = arith.addf %99, %102 : vector<8x1xf32>
    %104 = math.rsqrt %103 : vector<8x1xf32>
    %105 = vector.broadcast %104 : vector<8x1xf32> to vector<8x32xf32>
    %106 = arith.mulf %101, %105 : vector<8x32xf32>
    %107 = vector.broadcast %87 : vector<1x32xf32> to vector<8x32xf32>
    %108 = arith.mulf %106, %107 : vector<8x32xf32>
    %109 = vector.broadcast %88 : vector<1x32xf32> to vector<8x32xf32>
    %110 = arith.addf %108, %109 : vector<8x32xf32>
    %111 = arith.truncf %110 : vector<8x32xf32> to vector<8x32xbf16>
    %cst_38 = arith.constant 0.000000e+00 : f32
    %112 = vector.broadcast %cst_38 : f32 to vector<8x32xf32>
    %c0_39 = arith.constant 0 : index
    %c0_40 = arith.constant 0 : index
    %113 = vector.load %arg7[%c0_39, %c0_40] : memref<32x64xbf16, #tpu.memory_space<vmem>>, vector<32x64xbf16>
    %cst_41 = arith.constant dense<0.000000e+00> : vector<8x64xf32>
    %114 = tpu.matmul %111, %113, %cst_41 {dimension_numbers = #tpu.dot_dimension_numbers<[1], [0], [0], [1], [0, 0, 1, 1], [], []>} : vector<8x32xbf16>, vector<32x64xbf16>, vector<8x64xf32> -> vector<8x64xf32>
    %c0_42 = arith.constant 0 : index
    %c0_43 = arith.constant 0 : index
    %115 = vector.load %arg8[%c0_42, %c0_43] : memref<1x64xf32, #tpu.memory_space<vmem>>, vector<1x64xf32>
    %116 = vector.broadcast %115 : vector<1x64xf32> to vector<8x64xf32>
    %117 = arith.addf %114, %116 : vector<8x64xf32>
    %cst_44 = arith.constant 0.000000e+00 : f32
    %118 = vector.broadcast %cst_44 : f32 to vector<8x64xf32>
    %119 = arith.maximumf %117, %118 : vector<8x64xf32>
    %120 = arith.truncf %119 : vector<8x64xf32> to vector<8x64xbf16>
    %c0_45 = arith.constant 0 : index
    %c0_46 = arith.constant 0 : index
    %121 = vector.load %arg9[%c0_45, %c0_46] : memref<64x32xbf16, #tpu.memory_space<vmem>>, vector<64x32xbf16>
    %cst_47 = arith.constant dense<0.000000e+00> : vector<8x32xf32>
    %122 = tpu.matmul %120, %121, %cst_47 {dimension_numbers = #tpu.dot_dimension_numbers<[1], [0], [0], [1], [0, 0, 1, 1], [], []>} : vector<8x64xbf16>, vector<64x32xbf16>, vector<8x32xf32> -> vector<8x32xf32>
    %123 = arith.addf %112, %122 : vector<8x32xf32>
    %c0_48 = arith.constant 0 : index
    %c0_49 = arith.constant 0 : index
    %124 = vector.load %arg10[%c0_48, %c0_49] : memref<1x32xf32, #tpu.memory_space<vmem>>, vector<1x32xf32>
    %125 = vector.broadcast %124 : vector<1x32xf32> to vector<8x32xf32>
    %126 = arith.addf %123, %125 : vector<8x32xf32>
    %127 = arith.addf %110, %126 : vector<8x32xf32>
    %c0_50 = arith.constant 0 : index
    %c0_51 = arith.constant 0 : index
    %128 = vector.load %arg13[%c0_50, %c0_51] : memref<1x32xf32, #tpu.memory_space<vmem>>, vector<1x32xf32>
    %c0_52 = arith.constant 0 : index
    %c0_53 = arith.constant 0 : index
    %129 = vector.load %arg14[%c0_52, %c0_53] : memref<1x32xf32, #tpu.memory_space<vmem>>, vector<1x32xf32>
    %cst_54 = arith.constant dense<0.000000e+00> : vector<8xf32>
    %130 = vector.multi_reduction <add>, %127, %cst_54 [1] : vector<8x32xf32> to vector<8xf32>
    %131 = vector.shape_cast %130 : vector<8xf32> to vector<8x1xf32>
    %cst_55 = arith.constant 3.200000e+01 : f32
    %132 = vector.broadcast %cst_55 : f32 to vector<8x1xf32>
    %133 = arith.divf %131, %132 : vector<8x1xf32>
    %134 = vector.broadcast %133 : vector<8x1xf32> to vector<8x32xf32>
    %135 = arith.subf %127, %134 : vector<8x32xf32>
    %136 = arith.mulf %135, %135 : vector<8x32xf32>
    %cst_56 = arith.constant dense<0.000000e+00> : vector<8xf32>
    %137 = vector.multi_reduction <add>, %136, %cst_56 [1] : vector<8x32xf32> to vector<8xf32>
    %138 = vector.shape_cast %137 : vector<8xf32> to vector<8x1xf32>
    %cst_57 = arith.constant 3.200000e+01 : f32
    %139 = vector.broadcast %cst_57 : f32 to vector<8x1xf32>
    %140 = arith.divf %138, %139 : vector<8x1xf32>
    %141 = vector.broadcast %133 : vector<8x1xf32> to vector<8x32xf32>
    %142 = arith.subf %127, %141 : vector<8x32xf32>
    %cst_58 = arith.constant 9.99999974E-6 : f32
    %143 = vector.broadcast %cst_58 : f32 to vector<8x1xf32>
    %144 = arith.addf %140, %143 : vector<8x1xf32>
    %145 = math.rsqrt %144 : vector<8x1xf32>
    %146 = vector.broadcast %145 : vector<8x1xf32> to vector<8x32xf32>
    %147 = arith.mulf %142, %146 : vector<8x32xf32>
    %148 = vector.broadcast %128 : vector<1x32xf32> to vector<8x32xf32>
    %149 = arith.mulf %147, %148 : vector<8x32xf32>
    %150 = vector.broadcast %129 : vector<1x32xf32> to vector<8x32xf32>
    %151 = arith.addf %149, %150 : vector<8x32xf32>
    %152 = vector.shape_cast %151 : vector<8x32xf32> to vector<1x8x32xf32>
    %c0_59 = arith.constant 0 : index
    %c0_60 = arith.constant 0 : index
    %c0_61 = arith.constant 0 : index
    %153 = vector.load %arg15[%c0_59, %c0_60, %c0_61] : memref<1x8x32xf32, #tpu.memory_space<vmem>>, vector<1x8x32xf32>
    tpu.vector_store %arg15[%c0_59, %c0_60, %c0_61], %152 {strides = array<i32>} : memref<1x8x32xf32, #tpu.memory_space<vmem>>, vector<1x8x32xf32>,
    return
  }
  func.func @transform_0(%arg0: i32) -> (i32, i32, i32) {
    %c0_i32 = arith.constant 0 : i32
    %c0_i32_0 = arith.constant 0 : i32
    %c0_i32_1 = arith.constant 0 : i32
    return %arg0, %c0_i32, %c0_i32_0 : i32, i32, i32
  }
  func.func @transform_1(%arg0: i32) -> (i32, i32, i32) {
    %c0_i32 = arith.constant 0 : i32
    %c0_i32_0 = arith.constant 0 : i32
    %c0_i32_1 = arith.constant 0 : i32
    return %arg0, %c0_i32, %c0_i32_0 : i32, i32, i32
  }
  func.func @transform_2(%arg0: i32) -> (i32, i32) {
    %c0_i32 = arith.constant 0 : i32
    %c0_i32_0 = arith.constant 0 : i32
    %c0_i32_1 = arith.constant 0 : i32
    return %c0_i32, %c0_i32_0 : i32, i32
  }
  func.func @transform_3(%arg0: i32) -> (i32, i32) {
    %c0_i32 = arith.constant 0 : i32
    %c0_i32_0 = arith.constant 0 : i32
    %c0_i32_1 = arith.constant 0 : i32
    return %c0_i32, %c0_i32_0 : i32, i32
  }
  func.func @transform_4(%arg0: i32) -> (i32, i32) {
    %c0_i32 = arith.constant 0 : i32
    %c0_i32_0 = arith.constant 0 : i32
    %c0_i32_1 = arith.constant 0 : i32
    return %c0_i32, %c0_i32_0 : i32, i32
  }
  func.func @transform_5(%arg0: i32) -> (i32, i32) {
    %c0_i32 = arith.constant 0 : i32
    %c0_i32_0 = arith.constant 0 : i32
    %c0_i32_1 = arith.constant 0 : i32
    return %c0_i32, %c0_i32_0 : i32, i32
  }
  func.func @transform_6(%arg0: i32) -> (i32, i32) {
    %c0_i32 = arith.constant 0 : i32
    %c0_i32_0 = arith.constant 0 : i32
    %c0_i32_1 = arith.constant 0 : i32
    return %c0_i32, %c0_i32_0 : i32, i32
  }
  func.func @transform_7(%arg0: i32) -> (i32, i32) {
    %c0_i32 = arith.constant 0 : i32
    %c0_i32_0 = arith.constant 0 : i32
    %c0_i32_1 = arith.constant 0 : i32
    return %c0_i32, %c0_i32_0 : i32, i32
  }
  func.func @transform_8(%arg0: i32) -> (i32, i32) {
    %c0_i32 = arith.constant 0 : i32
    %c0_i32_0 = arith.constant 0 : i32
    %c0_i32_1 = arith.constant 0 : i32
    return %c0_i32, %c0_i32_0 : i32, i32
  }
  func.func @transform_9(%arg0: i32) -> (i32, i32) {
    %c0_i32 = arith.constant 0 : i32
    %c0_i32_0 = arith.constant 0 : i32
    %c0_i32_1 = arith.constant 0 : i32
    return %c0_i32, %c0_i32_0 : i32, i32
  }
  func.func @transform_10(%arg0: i32) -> (i32, i32) {
    %c0_i32 = arith.constant 0 : i32
    %c0_i32_0 = arith.constant 0 : i32
    %c0_i32_1 = arith.constant 0 : i32
    return %c0_i32, %c0_i32_0 : i32, i32
  }
  func.func @transform_11(%arg0: i32) -> (i32, i32) {
    %c0_i32 = arith.constant 0 : i32
    %c0_i32_0 = arith.constant 0 : i32
    %c0_i32_1 = arith.constant 0 : i32
    return %c0_i32, %c0_i32_0 : i32, i32
  }
  func.func @transform_12(%arg0: i32) -> (i32, i32) {
    %c0_i32 = arith.constant 0 : i32
    %c0_i32_0 = arith.constant 0 : i32
    %c0_i32_1 = arith.constant 0 : i32
    return %c0_i32, %c0_i32_0 : i32, i32
  }
  func.func @transform_13(%arg0: i32) -> (i32, i32) {
    %c0_i32 = arith.constant 0 : i32
    %c0_i32_0 = arith.constant 0 : i32
    %c0_i32_1 = arith.constant 0 : i32
    return %c0_i32, %c0_i32_0 : i32, i32
  }
  func.func @transform_14(%arg0: i32) -> (i32, i32, i32) {
    %c0_i32 = arith.constant 0 : i32
    %c0_i32_0 = arith.constant 0 : i32
    %c0_i32_1 = arith.constant 0 : i32
    return %arg0, %c0_i32, %c0_i32_0 : i32, i32, i32
  }
}

module attributes {stable_mosaic.version = 11 : i64} {
  func.func @encoder_block_kernel(%arg0: i32, %arg1: memref<1x1x8xf32, #tpu.memory_space<vmem>>, %arg2: memref<1x8x32xbf16, #tpu.memory_space<vmem>>, %arg3: memref<32x32xbf16, #tpu.memory_space<vmem>>, %arg4: memref<32x32xbf16, #tpu.memory_space<vmem>>, %arg5: memref<32x32xbf16, #tpu.memory_space<vmem>>, %arg6: memref<32x32xbf16, #tpu.memory_space<vmem>>, %arg7: memref<32x64xbf16, #tpu.memory_space<vmem>>, %arg8: memref<1x64xf32, #tpu.memory_space<vmem>>, %arg9: memref<64x32xbf16, #tpu.memory_space<vmem>>, %arg10: memref<1x32xf32, #tpu.memory_space<vmem>>, %arg11: memref<1x32xf32, #tpu.memory_space<vmem>>, %arg12: memref<1x32xf32, #tpu.memory_space<vmem>>, %arg13: memref<1x32xf32, #tpu.memory_space<vmem>>, %arg14: memref<1x32xf32, #tpu.memory_space<vmem>>, %arg15: memref<1x8x32xf32, #tpu.memory_space<vmem>>) attributes {dimension_semantics = [#tpu.dimension_semantics<parallel>], iteration_bounds = array<i64: 2>, scalar_prefetch = 0 : i64, scratch_operands = 0 : i64, tpu.core_type = #tpu.core_type<tc>, window_params = [{transform_indices = @transform_0, window_bounds = array<i64: 1, 1, 8>}, {transform_indices = @transform_1, window_bounds = array<i64: 1, 8, 32>}, {pipeline_mode = #tpu.pipeline_mode<synchronous>, transform_indices = @transform_2, window_bounds = array<i64: 32, 32>}, {pipeline_mode = #tpu.pipeline_mode<synchronous>, transform_indices = @transform_3, window_bounds = array<i64: 32, 32>}, {pipeline_mode = #tpu.pipeline_mode<synchronous>, transform_indices = @transform_4, window_bounds = array<i64: 32, 32>}, {pipeline_mode = #tpu.pipeline_mode<synchronous>, transform_indices = @transform_5, window_bounds = array<i64: 32, 32>}, {pipeline_mode = #tpu.pipeline_mode<synchronous>, transform_indices = @transform_6, window_bounds = array<i64: 32, 64>}, {pipeline_mode = #tpu.pipeline_mode<synchronous>, transform_indices = @transform_7, window_bounds = array<i64: 1, 64>}, {pipeline_mode = #tpu.pipeline_mode<synchronous>, transform_indices = @transform_8, window_bounds = array<i64: 64, 32>}, {pipeline_mode = #tpu.pipeline_mode<synchronous>, transform_indices = @transform_9, window_bounds = array<i64: 1, 32>}, {pipeline_mode = #tpu.pipeline_mode<synchronous>, transform_indices = @transform_10, window_bounds = array<i64: 1, 32>}, {pipeline_mode = #tpu.pipeline_mode<synchronous>, transform_indices = @transform_11, window_bounds = array<i64: 1, 32>}, {pipeline_mode = #tpu.pipeline_mode<synchronous>, transform_indices = @transform_12, window_bounds = array<i64: 1, 32>}, {pipeline_mode = #tpu.pipeline_mode<synchronous>, transform_indices = @transform_13, window_bounds = array<i64: 1, 32>}, {transform_indices = @transform_14, window_bounds = array<i64: 1, 8, 32>}]} {
    %c0 = arith.constant 0 : index
    %c0_0 = arith.constant 0 : index
    %c0_1 = arith.constant 0 : index
    %0 = vector.load %arg2[%c0, %c0_0, %c0_1] : memref<1x8x32xbf16, #tpu.memory_space<vmem>>, vector<1x8x32xbf16>
    %1 = arith.extf %0 : vector<1x8x32xbf16> to vector<1x8x32xf32>
    %2 = vector.shape_cast %1 : vector<1x8x32xf32> to vector<8x32xf32>
    %3 = arith.truncf %2 : vector<8x32xf32> to vector<8x32xbf16>
    %c0_2 = arith.constant 0 : index
    %c0_3 = arith.constant 0 : index
    %4 = vector.load %arg3[%c0_2, %c0_3] : memref<32x32xbf16, #tpu.memory_space<vmem>>, vector<32x32xbf16>
    %cst = arith.constant dense<0.000000e+00> : vector<8x32xf32>
    %5 = tpu.matmul %3, %4, %cst {dimension_numbers = #tpu.dot_dimension_numbers<[1], [0], [0], [1], [0, 0, 1, 1], [], []>} : vector<8x32xbf16>, vector<32x32xbf16>, vector<8x32xf32> -> vector<8x32xf32>
    %c0_4 = arith.constant 0 : index
    %c0_5 = arith.constant 0 : index
    %6 = vector.load %arg4[%c0_4, %c0_5] : memref<32x32xbf16, #tpu.memory_space<vmem>>, vector<32x32xbf16>
    %cst_6 = arith.constant dense<0.000000e+00> : vector<8x32xf32>
    %7 = tpu.matmul %3, %6, %cst_6 {dimension_numbers = #tpu.dot_dimension_numbers<[1], [0], [0], [1], [0, 0, 1, 1], [], []>} : vector<8x32xbf16>, vector<32x32xbf16>, vector<8x32xf32> -> vector<8x32xf32>
    %c0_7 = arith.constant 0 : index
    %c0_8 = arith.constant 0 : index
    %8 = vector.load %arg5[%c0_7, %c0_8] : memref<32x32xbf16, #tpu.memory_space<vmem>>, vector<32x32xbf16>
    %cst_9 = arith.constant dense<0.000000e+00> : vector<8x32xf32>
    %9 = tpu.matmul %3, %8, %cst_9 {dimension_numbers = #tpu.dot_dimension_numbers<[1], [0], [0], [1], [0, 0, 1, 1], [], []>} : vector<8x32xbf16>, vector<32x32xbf16>, vector<8x32xf32> -> vector<8x32xf32>
    %10 = arith.truncf %5 : vector<8x32xf32> to vector<8x32xbf16>
    %11 = vector.extract_strided_slice %10 {offsets = [0, 0], sizes = [8, 8], strides = [1, 1]} : vector<8x32xbf16> to vector<8x8xbf16>
    %12 = vector.extract_strided_slice %10 {offsets = [0, 8], sizes = [8, 8], strides = [1, 1]} : vector<8x32xbf16> to vector<8x8xbf16>
    %13 = vector.extract_strided_slice %10 {offsets = [0, 16], sizes = [8, 8], strides = [1, 1]} : vector<8x32xbf16> to vector<8x8xbf16>
    %14 = vector.extract_strided_slice %10 {offsets = [0, 24], sizes = [8, 8], strides = [1, 1]} : vector<8x32xbf16> to vector<8x8xbf16>
    %15 = vector.shape_cast %11 : vector<8x8xbf16> to vector<1x8x8xbf16>
    %16 = vector.shape_cast %12 : vector<8x8xbf16> to vector<1x8x8xbf16>
    %17 = vector.shape_cast %13 : vector<8x8xbf16> to vector<1x8x8xbf16>
    %18 = vector.shape_cast %14 : vector<8x8xbf16> to vector<1x8x8xbf16>
    %19 = tpu.concatenate %15, %16, %17, %18 in 0 : vector<1x8x8xbf16>, vector<1x8x8xbf16>, vector<1x8x8xbf16>, vector<1x8x8xbf16> -> vector<4x8x8xbf16>
    %20 = arith.truncf %7 : vector<8x32xf32> to vector<8x32xbf16>
    %21 = vector.extract_strided_slice %20 {offsets = [0, 0], sizes = [8, 8], strides = [1, 1]} : vector<8x32xbf16> to vector<8x8xbf16>
    %22 = vector.extract_strided_slice %20 {offsets = [0, 8], sizes = [8, 8], strides = [1, 1]} : vector<8x32xbf16> to vector<8x8xbf16>
    %23 = vector.extract_strided_slice %20 {offsets = [0, 16], sizes = [8, 8], strides = [1, 1]} : vector<8x32xbf16> to vector<8x8xbf16>
    %24 = vector.extract_strided_slice %20 {offsets = [0, 24], sizes = [8, 8], strides = [1, 1]} : vector<8x32xbf16> to vector<8x8xbf16>
    %25 = vector.shape_cast %21 : vector<8x8xbf16> to vector<1x8x8xbf16>
    %26 = vector.shape_cast %22 : vector<8x8xbf16> to vector<1x8x8xbf16>
    %27 = vector.shape_cast %23 : vector<8x8xbf16> to vector<1x8x8xbf16>
    %28 = vector.shape_cast %24 : vector<8x8xbf16> to vector<1x8x8xbf16>
    %29 = tpu.concatenate %25, %26, %27, %28 in 0 : vector<1x8x8xbf16>, vector<1x8x8xbf16>, vector<1x8x8xbf16>, vector<1x8x8xbf16> -> vector<4x8x8xbf16>
    %30 = arith.truncf %9 : vector<8x32xf32> to vector<8x32xbf16>
    %31 = vector.extract_strided_slice %30 {offsets = [0, 0], sizes = [8, 8], strides = [1, 1]} : vector<8x32xbf16> to vector<8x8xbf16>
    %32 = vector.extract_strided_slice %30 {offsets = [0, 8], sizes = [8, 8], strides = [1, 1]} : vector<8x32xbf16> to vector<8x8xbf16>
    %33 = vector.extract_strided_slice %30 {offsets = [0, 16], sizes = [8, 8], strides = [1, 1]} : vector<8x32xbf16> to vector<8x8xbf16>
    %34 = vector.extract_strided_slice %30 {offsets = [0, 24], sizes = [8, 8], strides = [1, 1]} : vector<8x32xbf16> to vector<8x8xbf16>
    %35 = vector.shape_cast %31 : vector<8x8xbf16> to vector<1x8x8xbf16>
    %36 = vector.shape_cast %32 : vector<8x8xbf16> to vector<1x8x8xbf16>
    %37 = vector.shape_cast %33 : vector<8x8xbf16> to vector<1x8x8xbf16>
    %38 = vector.shape_cast %34 : vector<8x8xbf16> to vector<1x8x8xbf16>
    %39 = tpu.concatenate %35, %36, %37, %38 in 0 : vector<1x8x8xbf16>, vector<1x8x8xbf16>, vector<1x8x8xbf16>, vector<1x8x8xbf16> -> vector<4x8x8xbf16>
    %c0_10 = arith.constant 0 : index
    %c0_11 = arith.constant 0 : index
    %c0_12 = arith.constant 0 : index
    %40 = vector.load %arg1[%c0_10, %c0_11, %c0_12] : memref<1x1x8xf32, #tpu.memory_space<vmem>>, vector<1x1x8xf32>
    %cst_13 = arith.constant 1.000000e+00 : f32
    %41 = vector.broadcast %cst_13 : f32 to vector<1x1x8xf32>
    %42 = arith.subf %40, %41 : vector<1x1x8xf32>
    %cst_14 = arith.constant 1.000000e+09 : f32
    %43 = vector.broadcast %cst_14 : f32 to vector<1x1x8xf32>
    %44 = arith.mulf %42, %43 : vector<1x1x8xf32>
    %45 = vector.shape_cast %44 : vector<1x1x8xf32> to vector<1x1x1x8xf32>
    %46 = vector.shape_cast %45 : vector<1x1x1x8xf32> to vector<1x1x1x8xf32>
    %47 = vector.broadcast %46 : vector<1x1x1x8xf32> to vector<4x1x1x8xf32>
    %48 = vector.shape_cast %47 : vector<4x1x1x8xf32> to vector<4x1x8xf32>
    "tpu.trace_start"() <{level = 10 : i32, message = "bqd,bkd->bqk"}> : () -> ()
    %cst_15 = arith.constant dense<0.000000e+00> : vector<4x8x8xf32>
    %49 = tpu.matmul %19, %29, %cst_15 {dimension_numbers = #tpu.dot_dimension_numbers<[2], [2], [1], [1], [0, 0, 0, 1, 1, 1], [0], [0]>} : vector<4x8x8xbf16>, vector<4x8x8xbf16>, vector<4x8x8xf32> -> vector<4x8x8xf32>
    "tpu.trace_stop"() : () -> ()
    %cst_16 = arith.constant 0.353553385 : f32
    %50 = vector.broadcast %cst_16 : f32 to vector<4x8x8xf32>
    %51 = arith.mulf %49, %50 : vector<4x8x8xf32>
    %52 = vector.broadcast %48 : vector<4x1x8xf32> to vector<4x8x8xf32>
    %53 = arith.addf %51, %52 : vector<4x8x8xf32>
    %cst_17 = arith.constant dense<0xFF800000> : vector<4x8xf32>
    %54 = vector.multi_reduction <maximumf>, %53, %cst_17 [2] : vector<4x8x8xf32> to vector<4x8xf32>
    %55 = vector.shape_cast %54 : vector<4x8xf32> to vector<4x8x1xf32>
    %56 = vector.broadcast %55 : vector<4x8x1xf32> to vector<4x8x8xf32>
    %57 = arith.subf %53, %56 : vector<4x8x8xf32>
    %58 = math.exp %57 : vector<4x8x8xf32>
    %cst_18 = arith.constant dense<0.000000e+00> : vector<4x8xf32>
    %59 = vector.multi_reduction <add>, %58, %cst_18 [2] : vector<4x8x8xf32> to vector<4x8xf32>
    %60 = vector.shape_cast %59 : vector<4x8xf32> to vector<4x8x1xf32>
    %61 = tpu.reciprocal %60 {approx = true} : vector<4x8x1xf32> -> vector<4x8x1xf32>
    %62 = vector.broadcast %61 : vector<4x8x1xf32> to vector<4x8x8xf32>
    %63 = arith.mulf %58, %62 : vector<4x8x8xf32>
    %64 = arith.truncf %63 : vector<4x8x8xf32> to vector<4x8x8xbf16>
    "tpu.trace_start"() <{level = 10 : i32, message = "bqk,bkd->bqd"}> : () -> ()
    %cst_19 = arith.constant dense<0.000000e+00> : vector<4x8x8xf32>
    %65 = tpu.matmul %64, %39, %cst_19 {dimension_numbers = #tpu.dot_dimension_numbers<[2], [1], [1], [2], [0, 0, 0, 1, 1, 2], [0], [0]>} : vector<4x8x8xbf16>, vector<4x8x8xbf16>, vector<4x8x8xf32> -> vector<4x8x8xf32>
    "tpu.trace_stop"() : () -> ()
    %66 = arith.truncf %65 : vector<4x8x8xf32> to vector<4x8x8xbf16>
    %67 = vector.extract_strided_slice %66 {offsets = [0, 0, 0], sizes = [1, 8, 8], strides = [1, 1, 1]} : vector<4x8x8xbf16> to vector<1x8x8xbf16>
    %68 = vector.shape_cast %67 : vector<1x8x8xbf16> to vector<8x8xbf16>
    %c0_20 = arith.constant 0 : index
    %c0_21 = arith.constant 0 : index
    %69 = vector.load %arg6[%c0_20, %c0_21] : memref<32x32xbf16, #tpu.memory_space<vmem>>, vector<8x32xbf16>
    %cst_22 = arith.constant dense<0.000000e+00> : vector<8x32xf32>
    %70 = tpu.matmul %68, %69, %cst_22 {dimension_numbers = #tpu.dot_dimension_numbers<[1], [0], [0], [1], [0, 0, 1, 1], [], []>} : vector<8x8xbf16>, vector<8x32xbf16>, vector<8x32xf32> -> vector<8x32xf32>
    %71 = vector.extract_strided_slice %66 {offsets = [1, 0, 0], sizes = [1, 8, 8], strides = [1, 1, 1]} : vector<4x8x8xbf16> to vector<1x8x8xbf16>
    %72 = vector.shape_cast %71 : vector<1x8x8xbf16> to vector<8x8xbf16>
    %c8 = arith.constant 8 : index
    %c0_23 = arith.constant 0 : index
    %73 = vector.load %arg6[%c8, %c0_23] : memref<32x32xbf16, #tpu.memory_space<vmem>>, vector<8x32xbf16>
    %cst_24 = arith.constant dense<0.000000e+00> : vector<8x32xf32>
    %74 = tpu.matmul %72, %73, %cst_24 {dimension_numbers = #tpu.dot_dimension_numbers<[1], [0], [0], [1], [0, 0, 1, 1], [], []>} : vector<8x8xbf16>, vector<8x32xbf16>, vector<8x32xf32> -> vector<8x32xf32>
    %75 = arith.addf %70, %74 : vector<8x32xf32>
    %76 = vector.extract_strided_slice %66 {offsets = [2, 0, 0], sizes = [1, 8, 8], strides = [1, 1, 1]} : vector<4x8x8xbf16> to vector<1x8x8xbf16>
    %77 = vector.shape_cast %76 : vector<1x8x8xbf16> to vector<8x8xbf16>
    %c16 = arith.constant 16 : index
    %c0_25 = arith.constant 0 : index
    %78 = vector.load %arg6[%c16, %c0_25] : memref<32x32xbf16, #tpu.memory_space<vmem>>, vector<8x32xbf16>
    %cst_26 = arith.constant dense<0.000000e+00> : vector<8x32xf32>
    %79 = tpu.matmul %77, %78, %cst_26 {dimension_numbers = #tpu.dot_dimension_numbers<[1], [0], [0], [1], [0, 0, 1, 1], [], []>} : vector<8x8xbf16>, vector<8x32xbf16>, vector<8x32xf32> -> vector<8x32xf32>
    %80 = arith.addf %75, %79 : vector<8x32xf32>
    %81 = vector.extract_strided_slice %66 {offsets = [3, 0, 0], sizes = [1, 8, 8], strides = [1, 1, 1]} : vector<4x8x8xbf16> to vector<1x8x8xbf16>
    %82 = vector.shape_cast %81 : vector<1x8x8xbf16> to vector<8x8xbf16>
    %c24 = arith.constant 24 : index
    %c0_27 = arith.constant 0 : index
    %83 = vector.load %arg6[%c24, %c0_27] : memref<32x32xbf16, #tpu.memory_space<vmem>>, vector<8x32xbf16>
    %cst_28 = arith.constant dense<0.000000e+00> : vector<8x32xf32>
    %84 = tpu.matmul %82, %83, %cst_28 {dimension_numbers = #tpu.dot_dimension_numbers<[1], [0], [0], [1], [0, 0, 1, 1], [], []>} : vector<8x8xbf16>, vector<8x32xbf16>, vector<8x32xf32> -> vector<8x32xf32>
    %85 = arith.addf %80, %84 : vector<8x32xf32>
    %86 = arith.addf %2, %85 : vector<8x32xf32>
    %c0_29 = arith.constant 0 : index
    %c0_30 = arith.constant 0 : index
    %87 = vector.load %arg11[%c0_29, %c0_30] : memref<1x32xf32, #tpu.memory_space<vmem>>, vector<1x32xf32>
    %c0_31 = arith.constant 0 : index
    %c0_32 = arith.constant 0 : index
    %88 = vector.load %arg12[%c0_31, %c0_32] : memref<1x32xf32, #tpu.memory_space<vmem>>, vector<1x32xf32>
    %cst_33 = arith.constant dense<0.000000e+00> : vector<8xf32>
    %89 = vector.multi_reduction <add>, %86, %cst_33 [1] : vector<8x32xf32> to vector<8xf32>
    %90 = vector.shape_cast %89 : vector<8xf32> to vector<8x1xf32>
    %cst_34 = arith.constant 3.200000e+01 : f32
    %91 = vector.broadcast %cst_34 : f32 to vector<8x1xf32>
    %92 = arith.divf %90, %91 : vector<8x1xf32>
    %93 = vector.broadcast %92 : vector<8x1xf32> to vector<8x32xf32>
    %94 = arith.subf %86, %93 : vector<8x32xf32>
    %95 = arith.mulf %94, %94 : vector<8x32xf32>
    %cst_35 = arith.constant dense<0.000000e+00> : vector<8xf32>
    %96 = vector.multi_reduction <add>, %95, %cst_35 [1] : vector<8x32xf32> to vector<8xf32>
    %97 = vector.shape_cast %96 : vector<8xf32> to vector<8x1xf32>
    %cst_36 = arith.constant 3.200000e+01 : f32
    %98 = vector.broadcast %cst_36 : f32 to vector<8x1xf32>
    %99 = arith.divf %97, %98 : vector<8x1xf32>
    %100 = vector.broadcast %92 : vector<8x1xf32> to vector<8x32xf32>
    %101 = arith.subf %86, %100 : vector<8x32xf32>
    %cst_37 = arith.constant 9.99999974E-6 : f32
    %102 = vector.broadcast %cst_37 : f32 to vector<8x1xf32>
    %103 = arith.addf %99, %102 : vector<8x1xf32>
    %104 = math.rsqrt %103 : vector<8x1xf32>
    %105 = vector.broadcast %104 : vector<8x1xf32> to vector<8x32xf32>
    %106 = arith.mulf %101, %105 : vector<8x32xf32>
    %107 = vector.broadcast %87 : vector<1x32xf32> to vector<8x32xf32>
    %108 = arith.mulf %106, %107 : vector<8x32xf32>
    %109 = vector.broadcast %88 : vector<1x32xf32> to vector<8x32xf32>
    %110 = arith.addf %108, %109 : vector<8x32xf32>
    %111 = arith.truncf %110 : vector<8x32xf32> to vector<8x32xbf16>
    %cst_38 = arith.constant 0.000000e+00 : f32
    %112 = vector.broadcast %cst_38 : f32 to vector<8x32xf32>
    %c0_39 = arith.constant 0 : index
    %c0_40 = arith.constant 0 : index
    %113 = vector.load %arg7[%c0_39, %c0_40] : memref<32x64xbf16, #tpu.memory_space<vmem>>, vector<32x64xbf16>
    %cst_41 = arith.constant dense<0.000000e+00> : vector<8x64xf32>
    %114 = tpu.matmul %111, %113, %cst_41 {dimension_numbers = #tpu.dot_dimension_numbers<[1], [0], [0], [1], [0, 0, 1, 1], [], []>} : vector<8x32xbf16>, vector<32x64xbf16>, vector<8x64xf32> -> vector<8x64xf32>
    %c0_42 = arith.constant 0 : index
    %c0_43 = arith.constant 0 : index
    %115 = vector.load %arg8[%c0_42, %c0_43] : memref<1x64xf32, #tpu.memory_space<vmem>>, vector<1x64xf32>
    %116 = vector.broadcast %115 : vector<1x64xf32> to vector<8x64xf32>
    %117 = arith.addf %114, %116 : vector<8x64xf32>
    %cst_44 = arith.constant 0.000000e+00 : f32
    %118 = vector.broadcast %cst_44 : f32 to vector<8x64xf32>
    %119 = arith.maximumf %117, %118 : vector<8x64xf32>
    %120 = arith.truncf %119 : vector<8x64xf32> to vector<8x64xbf16>
    %c0_45 = arith.constant 0 : index
    %c0_46 = arith.constant 0 : index
    %121 = vector.load %arg9[%c0_45, %c0_46] : memref<64x32xbf16, #tpu.memory_space<vmem>>, vector<64x32xbf16>
    %cst_47 = arith.constant dense<0.000000e+00> : vector<8x32xf32>
    %122 = tpu.matmul %120, %121, %cst_47 {dimension_numbers = #tpu.dot_dimension_numbers<[1], [0], [0], [1], [0, 0, 1, 1], [], []>} : vector<8x64xbf16>, vector<64x32xbf16>, vector<8x32xf32> -> vector<8x32xf32>
    %123 = arith.addf %112, %122 : vector<8x32xf32>
    %c0_48 = arith.constant 0 : index
    %c0_49 = arith.constant 0 : index
    %124 = vector.load %arg10[%c0_48, %c0_49] : memref<1x32xf32, #tpu.memory_space<vmem>>, vector<1x32xf32>
    %125 = vector.broadcast %124 : vector<1x32xf32> to vector<8x32xf32>
    %126 = arith.addf %123, %125 : vector<8x32xf32>
    %127 = arith.addf %110, %126 : vector<8x32xf32>
    %c0_50 = arith.constant 0 : index
    %c0_51 = arith.constant 0 : index
    %128 = vector.load %arg13[%c0_50, %c0_51] : memref<1x32xf32, #tpu.memory_space<vmem>>, vector<1x32xf32>
    %c0_52 = arith.constant 0 : index
    %c0_53 = arith.constant 0 : index
    %129 = vector.load %arg14[%c0_52, %c0_53] : memref<1x32xf32, #tpu.memory_space<vmem>>, vector<1x32xf32>
    %cst_54 = arith.constant dense<0.000000e+00> : vector<8xf32>
    %130 = vector.multi_reduction <add>, %127, %cst_54 [1] : vector<8x32xf32> to vector<8xf32>
    %131 = vector.shape_cast %130 : vector<8xf32> to vector<8x1xf32>
    %cst_55 = arith.constant 3.200000e+01 : f32
    %132 = vector.broadcast %cst_55 : f32 to vector<8x1xf32>
    %133 = arith.divf %131, %132 : vector<8x1xf32>
    %134 = vector.broadcast %133 : vector<8x1xf32> to vector<8x32xf32>
    %135 = arith.subf %127, %134 : vector<8x32xf32>
    %136 = arith.mulf %135, %135 : vector<8x32xf32>
    %cst_56 = arith.constant dense<0.000000e+00> : vector<8xf32>
    %137 = vector.multi_reduction <add>, %136, %cst_56 [1] : vector<8x32xf32> to vector<8xf32>
    %138 = vector.shape_cast %137 : vector<8xf32> to vector<8x1xf32>
    %cst_57 = arith.constant 3.200000e+01 : f32
    %139 = vector.broadcast %cst_57 : f32 to vector<8x1xf32>
    %140 = arith.divf %138, %139 : vector<8x1xf32>
    %141 = vector.broadcast %133 : vector<8x1xf32> to vector<8x32xf32>
    %142 = arith.subf %127, %141 : vector<8x32xf32>
    %cst_58 = arith.constant 9.99999974E-6 : f32
    %143 = vector.broadcast %cst_58 : f32 to vector<8x1xf32>
    %144 = arith.addf %140, %143 : vector<8x1xf32>
    %145 = math.rsqrt %144 : vector<8x1xf32>
    %146 = vector.broadcast %145 : vector<8x1xf32> to vector<8x32xf32>
    %147 = arith.mulf %142, %146 : vector<8x32xf32>
    %148 = vector.broadcast %128 : vector<1x32xf32> to vector<8x32xf32>
    %149 = arith.mulf %147, %148 : vector<8x32xf32>
    %150 = vector.broadcast %129 : vector<1x32xf32> to vector<8x32xf32>
    %151 = arith.addf %149, %150 : vector<8x32xf32>
    %152 = vector.shape_cast %151 : vector<8x32xf32> to vector<1x8x32xf32>
    %c0_59 = arith.constant 0 : index
    %c0_60 = arith.constant 0 : index
    %c0_61 = arith.constant 0 : index
    %153 = vector.load %arg15[%c0_59, %c0_60, %c0_61] : memref<1x8x32xf32, #tpu.memory_space<vmem>>, vector<1x8x32xf32>
    tpu.vector_store %arg15[%c0_59, %c0_60, %c0_61], %152 {strides = array<i32>} : memref<1x8x32xf32, #tpu.memory_space<vmem>>, vector<1x8x32xf32>,
    return
  }
  func.func @transform_0(%arg0: i32) -> (i32, i32, i32) {
    %c0_i32 = arith.constant 0 : i32
    %c0_i32_0 = arith.constant 0 : i32
    %c0_i32_1 = arith.constant 0 : i32
    return %arg0, %c0_i32, %c0_i32_0 : i32, i32, i32
  }
  func.func @transform_1(%arg0: i32) -> (i32, i32, i32) {
    %c0_i32 = arith.constant 0 : i32
    %c0_i32_0 = arith.constant 0 : i32
    %c0_i32_1 = arith.constant 0 : i32
    return %arg0, %c0_i32, %c0_i32_0 : i32, i32, i32
  }
  func.func @transform_2(%arg0: i32) -> (i32, i32) {
    %c0_i32 = arith.constant 0 : i32
    %c0_i32_0 = arith.constant 0 : i32
    %c0_i32_1 = arith.constant 0 : i32
    return %c0_i32, %c0_i32_0 : i32, i32
  }
  func.func @transform_3(%arg0: i32) -> (i32, i32) {
    %c0_i32 = arith.constant 0 : i32
    %c0_i32_0 = arith.constant 0 : i32
    %c0_i32_1 = arith.constant 0 : i32
    return %c0_i32, %c0_i32_0 : i32, i32
  }
  func.func @transform_4(%arg0: i32) -> (i32, i32) {
    %c0_i32 = arith.constant 0 : i32
    %c0_i32_0 = arith.constant 0 : i32
    %c0_i32_1 = arith.constant 0 : i32
    return %c0_i32, %c0_i32_0 : i32, i32
  }
  func.func @transform_5(%arg0: i32) -> (i32, i32) {
    %c0_i32 = arith.constant 0 : i32
    %c0_i32_0 = arith.constant 0 : i32
    %c0_i32_1 = arith.constant 0 : i32
    return %c0_i32, %c0_i32_0 : i32, i32
  }
  func.func @transform_6(%arg0: i32) -> (i32, i32) {
    %c0_i32 = arith.constant 0 : i32
    %c0_i32_0 = arith.constant 0 : i32
    %c0_i32_1 = arith.constant 0 : i32
    return %c0_i32, %c0_i32_0 : i32, i32
  }
  func.func @transform_7(%arg0: i32) -> (i32, i32) {
    %c0_i32 = arith.constant 0 : i32
    %c0_i32_0 = arith.constant 0 : i32
    %c0_i32_1 = arith.constant 0 : i32
    return %c0_i32, %c0_i32_0 : i32, i32
  }
  func.func @transform_8(%arg0: i32) -> (i32, i32) {
    %c0_i32 = arith.constant 0 : i32
    %c0_i32_0 = arith.constant 0 : i32
    %c0_i32_1 = arith.constant 0 : i32
    return %c0_i32, %c0_i32_0 : i32, i32
  }
  func.func @transform_9(%arg0: i32) -> (i32, i32) {
    %c0_i32 = arith.constant 0 : i32
    %c0_i32_0 = arith.constant 0 : i32
    %c0_i32_1 = arith.constant 0 : i32
    return %c0_i32, %c0_i32_0 : i32, i32
  }
  func.func @transform_10(%arg0: i32) -> (i32, i32) {
    %c0_i32 = arith.constant 0 : i32
    %c0_i32_0 = arith.constant 0 : i32
    %c0_i32_1 = arith.constant 0 : i32
    return %c0_i32, %c0_i32_0 : i32, i32
  }
  func.func @transform_11(%arg0: i32) -> (i32, i32) {
    %c0_i32 = arith.constant 0 : i32
    %c0_i32_0 = arith.constant 0 : i32
    %c0_i32_1 = arith.constant 0 : i32
    return %c0_i32, %c0_i32_0 : i32, i32
  }
  func.func @transform_12(%arg0: i32) -> (i32, i32) {
    %c0_i32 = arith.constant 0 : i32
    %c0_i32_0 = arith.constant 0 : i32
    %c0_i32_1 = arith.constant 0 : i32
    return %c0_i32, %c0_i32_0 : i32, i32
  }
  func.func @transform_13(%arg0: i32) -> (i32, i32) {
    %c0_i32 = arith.constant 0 : i32
    %c0_i32_0 = arith.constant 0 : i32
    %c0_i32_1 = arith.constant 0 : i32
    return %c0_i32, %c0_i32_0 : i32, i32
  }
  func.func @transform_14(%arg0: i32) -> (i32, i32, i32) {
    %c0_i32 = arith.constant 0 : i32
    %c0_i32_0 = arith.constant 0 : i32
    %c0_i32_1 = arith.constant 0 : i32
    return %arg0, %c0_i32, %c0_i32_0 : i32, i32, i32
  }
}

</mosaic_0001>

<llo_original>
// kernel: tpu_custom_call.1
$region0: #{tpu_custom_call.1}
  #allocation0 [shape = 'u32[]', space=smem, size = 0x4, offset = 0x4, fixed_abs, tag = 'smem constant byte address 0x4 - core index']
  #allocation1 [shape = 'u32[144,128]{1,0:T(1,128)}', space=vmem, size = 0x12000, scoped, tag = 'internal scratch']
  %s0 = inlined_call_operand.hbm [shape: f32[2,1,8], index: 0, kind: input, shape index: {}]
  %s1 = inlined_call_operand.hbm [shape: bf16[2,8,32], index: 1, kind: input, shape index: {}]
  %s2 = inlined_call_operand.vmem [shape: bf16[32,32], index: 2, kind: input, shape index: {}]
  %s3 = inlined_call_operand.vmem [shape: bf16[32,32], index: 3, kind: input, shape index: {}]
  %s4 = inlined_call_operand.vmem [shape: bf16[32,32], index: 4, kind: input, shape index: {}]
  %s5 = inlined_call_operand.hbm [shape: bf16[32,32], index: 5, kind: input, shape index: {}]
  %s6 = inlined_call_operand.hbm [shape: bf16[32,64], index: 6, kind: input, shape index: {}]
  %s7 = inlined_call_operand.vmem [shape: f32[1,64], index: 7, kind: input, shape index: {}]
  %s8 = inlined_call_operand.vmem [shape: bf16[64,32], index: 8, kind: input, shape index: {}]
  %s9 = inlined_call_operand.vmem [shape: f32[1,32], index: 9, kind: input, shape index: {}]
  %s10 = inlined_call_operand.vmem [shape: f32[1,32], index: 10, kind: input, shape index: {}]
  %s11 = inlined_call_operand.vmem [shape: f32[1,32], index: 11, kind: input, shape index: {}]
  %s12 = inlined_call_operand.vmem [shape: f32[1,32], index: 12, kind: input, shape index: {}]
  %s13 = inlined_call_operand.vmem [shape: f32[1,32], index: 13, kind: input, shape index: {}]
  %s14 = inlined_call_operand.hbm [shape: f32[2,8,32], index: 14, kind: output, shape index: {}]
  %s15 = sld [smem:[#allocation0]]
  $region105: #{tpu_custom_call.1} parent=0
    _
  %s17 = ssub.s32 1, %s15
  %s18 = scalar_select 0, %s17, %s15
  $region1: #{tpu_custom_call.1} parent=0
    #allocation2 [shape = 'u8[1024]{0}', space=vmem, size = 0x400, scoped, tag = 'input window, operand 0']
    #allocation3 [shape = 's32[2]{0}', space=sflag, size = 0x8, scoped, tag = 'scoped memory for tpu_custom_call.1']
    #allocation4 [shape = 's32[2]{0}', space=sflag, size = 0x8, scoped, tag = 'scoped memory for tpu_custom_call.1']
    #allocation5 [shape = 'u8[4096]{0}', space=vmem, size = 0x1000, scoped, tag = 'input window, operand 1']
    #allocation6 [shape = 's32[2]{0}', space=sflag, size = 0x8, scoped, tag = 'scoped memory for tpu_custom_call.1']
    #allocation7 [shape = 'u8[8192]{0}', space=vmem, size = 0x2000, scoped, tag = 'input window, operand 5, single buffered']
    #allocation8 [shape = 'u8[8192]{0}', space=vmem, size = 0x2000, scoped, tag = 'input window, operand 6, single buffered']
    #allocation9 [shape = 's32[1]{0}', space=sflag, size = 0x4, scoped, tag = 'scoped memory for tpu_custom_call.1']
    #allocation10 [shape = 'u8[8192]{0}', space=vmem, size = 0x2000, scoped, tag = 'output window, operand 0']
    %19 = vsyncpa [#allocation3], 0
    %s20 = scalar_lea.sflag [#allocation3], 1
    %21 = vsyncpa %s20, 0
    %22 = vsyncpa [#allocation6], 0
    %s23 = scalar_lea.sflag [#allocation6], 1
    %24 = vsyncpa %s23, 0
    %25 = vsyncpa [#allocation9], 0
    %26 = vsyncpa [#allocation4], 0
    %s27 = scalar_lea.sflag [#allocation4], 1
    %28 = vsyncpa %s27, 0
    loop: start=0, step=1, limit=4
    $region2: #{tpu_custom_call.1} parent=1 // loop_pre_header
      _
    $region3: #{tpu_custom_call.1} parent=1 // loop_header
      %s30 = sphi 0, %s34
      %p31 = scmp.ge.s32.totalorder %s30, 4
      %s40 = sphi 0, %s42
      %s43 = sphi 0, %s40
      %s44 = sphi 0, %s43
      %s60 = sphi 0, %s44
      %s66 = sphi 0, %s68
      %s69 = sphi 0, %s66
      %s70 = sphi 0, %s69
      %s86 = sphi 0, %s70
      %s90 = sphi 0, %s90
      %s92 = sphi 0, %s90
      %s93 = sphi 0, %s92
      %s107 = sphi 0, %s93
      %s111 = sphi 0, %s111
      %s113 = sphi 0, %s111
      %s114 = sphi 0, %s113
      %s128 = sphi 0, %s114
      %s132 = sphi 0, %s132
      %s134 = sphi 0, %s132
      %s135 = sphi 0, %s134
      %s149 = sphi 0, %s135
      %s153 = sphi 0, %s153
      %s155 = sphi 0, %s153
      %s156 = sphi 0, %s155
      %s170 = sphi 0, %s156
      %s174 = sphi 0, %s174
      %s176 = sphi 0, %s174
      %s177 = sphi 0, %s176
      %s191 = sphi 0, %s177
      %s195 = sphi 0, %s195
      %s197 = sphi 0, %s195
      %s198 = sphi 0, %s197
      %s212 = sphi 0, %s198
      %s216 = sphi 0, %s216
      %s218 = sphi 0, %s216
      %s219 = sphi 0, %s218
      %s233 = sphi 0, %s219
      %s237 = sphi 0, %s237
      %s239 = sphi 0, %s237
      %s240 = sphi 0, %s239
      %s254 = sphi 0, %s240
      %s258 = sphi 0, %s258
      %s260 = sphi 0, %s258
      %s261 = sphi 0, %s260
      %s275 = sphi 0, %s261
      %s279 = sphi 0, %s279
      %s281 = sphi 0, %s279
      %s282 = sphi 0, %s281
      %s296 = sphi 0, %s282
      %s300 = sphi 0, %s300
      %s302 = sphi 0, %s300
      %s303 = sphi 0, %s302
      %s317 = sphi 0, %s303
      %s321 = sphi 0, %s321
      %s323 = sphi 0, %s321
      %s324 = sphi 0, %s323
      %s338 = sphi 0, %s324
      %s344 = sphi 0, %s346
      %s347 = sphi 0, %s344
      %s348 = sphi 0, %s347
      %s364 = sphi 0, %s348
    $region4: #{tpu_custom_call.1} parent=1 // loop_header_branch
      %33 = sbr.rel (%p31) target = $region8
    $region5: #{tpu_custom_call.1} parent=1 // loop_body
      %s35 = ssub.s32 %s30, 1
      %s36 = ssub.s32 %s30, 2
      %s37 = sadd.s32 %s30, 1
      %s38 = ssub.s32 %s30, %s37
      %p39 = scmp.eq.s32.totalorder %s38, 0
      %s41 = sadd.s32 %s40, 1
      %s42 = scalar_select %p39, %s40, %s41
      %p45 = pneg %p39
      %p46 = scmp.eq.s32.totalorder %s30, 1
      %p47 = por %p45, %p46
      %p48 = scmp.ne.s32.totalorder %s40, %s43
      %p49 = scmp.eq.s32.totalorder %s30, 0
      %p50 = por %p48, %p49
      %p51 = scmp.ne.s32.totalorder %s40, %s43
      %p52 = scmp.eq.s32.totalorder %s35, 1
      %p53 = por %p51, %p52
      %p54 = scmp.ne.s32.totalorder %s43, %s44
      %p55 = scmp.eq.s32.totalorder %s35, 0
      %p56 = por %p54, %p55
      %p57 = scmp.ne.s32.totalorder %s43, %s44
      %p58 = scmp.eq.s32.totalorder %s36, 1
      %p59 = por %p57, %p58
      %p61 = scmp.ne.s32.totalorder %s44, %s60
      %p62 = scmp.eq.s32.totalorder %s36, 0
      %p63 = por %p61, %p62
      %s64 = ssub.s32 %s30, %s37
      %p65 = scmp.eq.s32.totalorder %s64, 0
      %s67 = sadd.s32 %s66, 1
      %s68 = scalar_select %p65, %s66, %s67
      %p71 = pneg %p65
      %p72 = scmp.eq.s32.totalorder %s30, 1
      %p73 = por %p71, %p72
      %p74 = scmp.ne.s32.totalorder %s66, %s69
      %p75 = scmp.eq.s32.totalorder %s30, 0
      %p76 = por %p74, %p75
      %p77 = scmp.ne.s32.totalorder %s66, %s69
      %p78 = scmp.eq.s32.totalorder %s35, 1
      %p79 = por %p77, %p78
      %p80 = scmp.ne.s32.totalorder %s69, %s70
      %p81 = scmp.eq.s32.totalorder %s35, 0
      %p82 = por %p80, %p81
      %p83 = scmp.ne.s32.totalorder %s69, %s70
      %p84 = scmp.eq.s32.totalorder %s36, 1
      %p85 = por %p83, %p84
      %p87 = scmp.ne.s32.totalorder %s70, %s86
      %p88 = scmp.eq.s32.totalorder %s36, 0
      %p89 = por %p87, %p88
      %s91 = sadd.s32 %s90, 1
      %p94 = scmp.eq.s32.totalorder %s30, 1
      %p95 = scmp.ne.s32.totalorder %s90, %s92
      %p96 = scmp.eq.s32.totalorder %s30, 0
      %p97 = por %p95, %p96
      %p98 = scmp.ne.s32.totalorder %s90, %s92
      %p99 = scmp.eq.s32.totalorder %s35, 1
      %p100 = por %p98, %p99
      %p101 = scmp.ne.s32.totalorder %s92, %s93
      %p102 = scmp.eq.s32.totalorder %s35, 0
      %p103 = por %p101, %p102
      %p104 = scmp.ne.s32.totalorder %s92, %s93
      %p105 = scmp.eq.s32.totalorder %s36, 1
      %p106 = por %p104, %p105
      %p108 = scmp.ne.s32.totalorder %s93, %s107
      %p109 = scmp.eq.s32.totalorder %s36, 0
      %p110 = por %p108, %p109
      %s112 = sadd.s32 %s111, 1
      %p115 = scmp.eq.s32.totalorder %s30, 1
      %p116 = scmp.ne.s32.totalorder %s111, %s113
      %p117 = scmp.eq.s32.totalorder %s30, 0
      %p118 = por %p116, %p117
      %p119 = scmp.ne.s32.totalorder %s111, %s113
      %p120 = scmp.eq.s32.totalorder %s35, 1
      %p121 = por %p119, %p120
      %p122 = scmp.ne.s32.totalorder %s113, %s114
      %p123 = scmp.eq.s32.totalorder %s35, 0
      %p124 = por %p122, %p123
      %p125 = scmp.ne.s32.totalorder %s113, %s114
      %p126 = scmp.eq.s32.totalorder %s36, 1
      %p127 = por %p125, %p126
      %p129 = scmp.ne.s32.totalorder %s114, %s128
      %p130 = scmp.eq.s32.totalorder %s36, 0
      %p131 = por %p129, %p130
      %s133 = sadd.s32 %s132, 1
      %p136 = scmp.eq.s32.totalorder %s30, 1
      %p137 = scmp.ne.s32.totalorder %s132, %s134
      %p138 = scmp.eq.s32.totalorder %s30, 0
      %p139 = por %p137, %p138
      %p140 = scmp.ne.s32.totalorder %s132, %s134
      %p141 = scmp.eq.s32.totalorder %s35, 1
      %p142 = por %p140, %p141
      %p143 = scmp.ne.s32.totalorder %s134, %s135
      %p144 = scmp.eq.s32.totalorder %s35, 0
      %p145 = por %p143, %p144
      %p146 = scmp.ne.s32.totalorder %s134, %s135
      %p147 = scmp.eq.s32.totalorder %s36, 1
      %p148 = por %p146, %p147
      %p150 = scmp.ne.s32.totalorder %s135, %s149
      %p151 = scmp.eq.s32.totalorder %s36, 0
      %p152 = por %p150, %p151
      %s154 = sadd.s32 %s153, 1
      %p157 = scmp.eq.s32.totalorder %s30, 1
      %p158 = scmp.ne.s32.totalorder %s153, %s155
      %p159 = scmp.eq.s32.totalorder %s30, 0
      %p160 = por %p158, %p159
      %p161 = scmp.ne.s32.totalorder %s153, %s155
      %p162 = scmp.eq.s32.totalorder %s35, 1
      %p163 = por %p161, %p162
      %p164 = scmp.ne.s32.totalorder %s155, %s156
      %p165 = scmp.eq.s32.totalorder %s35, 0
      %p166 = por %p164, %p165
      %p167 = scmp.ne.s32.totalorder %s155, %s156
      %p168 = scmp.eq.s32.totalorder %s36, 1
      %p169 = por %p167, %p168
      %p171 = scmp.ne.s32.totalorder %s156, %s170
      %p172 = scmp.eq.s32.totalorder %s36, 0
      %p173 = por %p171, %p172
      %s175 = sadd.s32 %s174, 1
      %p178 = scmp.eq.s32.totalorder %s30, 1
      %p179 = scmp.ne.s32.totalorder %s174, %s176
      %p180 = scmp.eq.s32.totalorder %s30, 0
      %p181 = por %p179, %p180
      %p182 = scmp.ne.s32.totalorder %s174, %s176
      %p183 = scmp.eq.s32.totalorder %s35, 1
      %p184 = por %p182, %p183
      %p185 = scmp.ne.s32.totalorder %s176, %s177
      %p186 = scmp.eq.s32.totalorder %s35, 0
      %p187 = por %p185, %p186
      %p188 = scmp.ne.s32.totalorder %s176, %s177
      %p189 = scmp.eq.s32.totalorder %s36, 1
      %p190 = por %p188, %p189
      %p192 = scmp.ne.s32.totalorder %s177, %s191
      %p193 = scmp.eq.s32.totalorder %s36, 0
      %p194 = por %p192, %p193
      %s196 = sadd.s32 %s195, 1
      %p199 = scmp.eq.s32.totalorder %s30, 1
      %p200 = scmp.ne.s32.totalorder %s195, %s197
      %p201 = scmp.eq.s32.totalorder %s30, 0
      %p202 = por %p200, %p201
      %p203 = scmp.ne.s32.totalorder %s195, %s197
      %p204 = scmp.eq.s32.totalorder %s35, 1
      %p205 = por %p203, %p204
      %p206 = scmp.ne.s32.totalorder %s197, %s198
      %p207 = scmp.eq.s32.totalorder %s35, 0
      %p208 = por %p206, %p207
      %p209 = scmp.ne.s32.totalorder %s197, %s198
      %p210 = scmp.eq.s32.totalorder %s36, 1
      %p211 = por %p209, %p210
      %p213 = scmp.ne.s32.totalorder %s198, %s212
      %p214 = scmp.eq.s32.totalorder %s36, 0
      %p215 = por %p213, %p214
      %s217 = sadd.s32 %s216, 1
      %p220 = scmp.eq.s32.totalorder %s30, 1
      %p221 = scmp.ne.s32.totalorder %s216, %s218
      %p222 = scmp.eq.s32.totalorder %s30, 0
      %p223 = por %p221, %p222
      %p224 = scmp.ne.s32.totalorder %s216, %s218
      %p225 = scmp.eq.s32.totalorder %s35, 1
      %p226 = por %p224, %p225
      %p227 = scmp.ne.s32.totalorder %s218, %s219
      %p228 = scmp.eq.s32.totalorder %s35, 0
      %p229 = por %p227, %p228
      %p230 = scmp.ne.s32.totalorder %s218, %s219
      %p231 = scmp.eq.s32.totalorder %s36, 1
      %p232 = por %p230, %p231
      %p234 = scmp.ne.s32.totalorder %s219, %s233
      %p235 = scmp.eq.s32.totalorder %s36, 0
      %p236 = por %p234, %p235
      %s238 = sadd.s32 %s237, 1
      %p241 = scmp.eq.s32.totalorder %s30, 1
      %p242 = scmp.ne.s32.totalorder %s237, %s239
      %p243 = scmp.eq.s32.totalorder %s30, 0
      %p244 = por %p242, %p243
      %p245 = scmp.ne.s32.totalorder %s237, %s239
      %p246 = scmp.eq.s32.totalorder %s35, 1
      %p247 = por %p245, %p246
      %p248 = scmp.ne.s32.totalorder %s239, %s240
      %p249 = scmp.eq.s32.totalorder %s35, 0
      %p250 = por %p248, %p249
      %p251 = scmp.ne.s32.totalorder %s239, %s240
      %p252 = scmp.eq.s32.totalorder %s36, 1
      %p253 = por %p251, %p252
      %p255 = scmp.ne.s32.totalorder %s240, %s254
      %p256 = scmp.eq.s32.totalorder %s36, 0
      %p257 = por %p255, %p256
      %s259 = sadd.s32 %s258, 1
      %p262 = scmp.eq.s32.totalorder %s30, 1
      %p263 = scmp.ne.s32.totalorder %s258, %s260
      %p264 = scmp.eq.s32.totalorder %s30, 0
      %p265 = por %p263, %p264
      %p266 = scmp.ne.s32.totalorder %s258, %s260
      %p267 = scmp.eq.s32.totalorder %s35, 1
      %p268 = por %p266, %p267
      %p269 = scmp.ne.s32.totalorder %s260, %s261
      %p270 = scmp.eq.s32.totalorder %s35, 0
      %p271 = por %p269, %p270
      %p272 = scmp.ne.s32.totalorder %s260, %s261
      %p273 = scmp.eq.s32.totalorder %s36, 1
      %p274 = por %p272, %p273
      %p276 = scmp.ne.s32.totalorder %s261, %s275
      %p277 = scmp.eq.s32.totalorder %s36, 0
      %p278 = por %p276, %p277
      %s280 = sadd.s32 %s279, 1
      %p283 = scmp.eq.s32.totalorder %s30, 1
      %p284 = scmp.ne.s32.totalorder %s279, %s281
      %p285 = scmp.eq.s32.totalorder %s30, 0
      %p286 = por %p284, %p285
      %p287 = scmp.ne.s32.totalorder %s279, %s281
      %p288 = scmp.eq.s32.totalorder %s35, 1
      %p289 = por %p287, %p288
      %p290 = scmp.ne.s32.totalorder %s281, %s282
      %p291 = scmp.eq.s32.totalorder %s35, 0
      %p292 = por %p290, %p291
      %p293 = scmp.ne.s32.totalorder %s281, %s282
      %p294 = scmp.eq.s32.totalorder %s36, 1
      %p295 = por %p293, %p294
      %p297 = scmp.ne.s32.totalorder %s282, %s296
      %p298 = scmp.eq.s32.totalorder %s36, 0
      %p299 = por %p297, %p298
      %s301 = sadd.s32 %s300, 1
      %p304 = scmp.eq.s32.totalorder %s30, 1
      %p305 = scmp.ne.s32.totalorder %s300, %s302
      %p306 = scmp.eq.s32.totalorder %s30, 0
      %p307 = por %p305, %p306
      %p308 = scmp.ne.s32.totalorder %s300, %s302
      %p309 = scmp.eq.s32.totalorder %s35, 1
      %p310 = por %p308, %p309
      %p311 = scmp.ne.s32.totalorder %s302, %s303
      %p312 = scmp.eq.s32.totalorder %s35, 0
      %p313 = por %p311, %p312
      %p314 = scmp.ne.s32.totalorder %s302, %s303
      %p315 = scmp.eq.s32.totalorder %s36, 1
      %p316 = por %p314, %p315
      %p318 = scmp.ne.s32.totalorder %s303, %s317
      %p319 = scmp.eq.s32.totalorder %s36, 0
      %p320 = por %p318, %p319
      %s322 = sadd.s32 %s321, 1
      %p325 = scmp.eq.s32.totalorder %s30, 1
      %p326 = scmp.ne.s32.totalorder %s321, %s323
      %p327 = scmp.eq.s32.totalorder %s30, 0
      %p328 = por %p326, %p327
      %p329 = scmp.ne.s32.totalorder %s321, %s323
      %p330 = scmp.eq.s32.totalorder %s35, 1
      %p331 = por %p329, %p330
      %p332 = scmp.ne.s32.totalorder %s323, %s324
      %p333 = scmp.eq.s32.totalorder %s35, 0
      %p334 = por %p332, %p333
      %p335 = scmp.ne.s32.totalorder %s323, %s324
      %p336 = scmp.eq.s32.totalorder %s36, 1
      %p337 = por %p335, %p336
      %p339 = scmp.ne.s32.totalorder %s324, %s338
      %p340 = scmp.eq.s32.totalorder %s36, 0
      %p341 = por %p339, %p340
      %s342 = ssub.s32 %s30, %s37
      %p343 = scmp.eq.s32.totalorder %s342, 0
      %s345 = sadd.s32 %s344, 1
      %s346 = scalar_select %p343, %s344, %s345
      %p349 = pneg %p343
      %p350 = scmp.eq.s32.totalorder %s30, 1
      %p351 = por %p349, %p350
      %p352 = scmp.ne.s32.totalorder %s344, %s347
      %p353 = scmp.eq.s32.totalorder %s30, 0
      %p354 = por %p352, %p353
      %p355 = scmp.ne.s32.totalorder %s344, %s347
      %p356 = scmp.eq.s32.totalorder %s35, 1
      %p357 = por %p355, %p356
      %p358 = scmp.ne.s32.totalorder %s347, %s348
      %p359 = scmp.eq.s32.totalorder %s35, 0
      %p360 = por %p358, %p359
      %p361 = scmp.ne.s32.totalorder %s347, %s348
      %p362 = scmp.eq.s32.totalorder %s36, 1
      %p363 = por %p361, %p362
      %p365 = scmp.ne.s32.totalorder %s348, %s364
      %p366 = scmp.eq.s32.totalorder %s36, 0
      %p367 = por %p365, %p366
      %p368 = scmp.le.s32.totalorder 1, %s30
      %p369 = scmp.lt.s32.totalorder %s30, 3
      %p370 = pnand %p368, %p369
      %p371 = pneg %p370
      // Predicated region
      $region9: #{tpu_custom_call.1} parent=5 // pred_check
        _
      $region10: #{tpu_custom_call.1} parent=5 // pred_check_branch
        %373 = sbr.rel (%p370) target = $region12
      $region11: #{tpu_custom_call.1} parent=5 // pred_region
        %s374 = ssub.s32 %s30, 1
        // Predicated region
        $region13: #{tpu_custom_call.1} parent=11 // pred_check
          %p375 = pneg %p103
        $region14: #{tpu_custom_call.1} parent=11 // pred_check_branch
          %377 = sbr.rel (%p375) target = $region16
        $region15: #{tpu_custom_call.1} parent=11 // pred_region
          _
        $region16: #{tpu_custom_call.1} parent=11 // pred_fallthru
          _
        // Predicated region
        $region17: #{tpu_custom_call.1} parent=11 // pred_check
          %p378 = pneg %p124
        $region18: #{tpu_custom_call.1} parent=11 // pred_check_branch
          %380 = sbr.rel (%p378) target = $region20
        $region19: #{tpu_custom_call.1} parent=11 // pred_region
          _
        $region20: #{tpu_custom_call.1} parent=11 // pred_fallthru
          _
        // Predicated region
        $region21: #{tpu_custom_call.1} parent=11 // pred_check
          %p381 = pneg %p145
        $region22: #{tpu_custom_call.1} parent=11 // pred_check_branch
          %383 = sbr.rel (%p381) target = $region24
        $region23: #{tpu_custom_call.1} parent=11 // pred_region
          _
        $region24: #{tpu_custom_call.1} parent=11 // pred_fallthru
          _
        // Predicated region
        $region25: #{tpu_custom_call.1} parent=11 // pred_check
          %p384 = pneg %p166
        $region26: #{tpu_custom_call.1} parent=11 // pred_check_branch
          %386 = sbr.rel (%p384) target = $region28
        $region27: #{tpu_custom_call.1} parent=11 // pred_region
          %s388 = ssub.s32 256, 256
          %389 = vsyncadd [#allocation6], %s388
          %s390 = sshll.u32 [#allocation7], 4
          %s391 = int_to_ptr.vmem [resolvable:$true] %s390
          %396 = dma.hbm_to_vmem [thread:$0]  %s5, 256, %s391, [#allocation6], 64, 64, 4
        $region28: #{tpu_custom_call.1} parent=11 // pred_fallthru
          _
        // Predicated region
        $region29: #{tpu_custom_call.1} parent=11 // pred_check
          %p397 = pneg %p187
        $region30: #{tpu_custom_call.1} parent=11 // pred_check_branch
          %399 = sbr.rel (%p397) target = $region32
        $region31: #{tpu_custom_call.1} parent=11 // pred_region
          %s401 = ssub.s32 256, 256
          %402 = vsyncadd [#allocation9], %s401
          %s403 = sshll.u32 [#allocation8], 4
          %s404 = int_to_ptr.vmem [resolvable:$true] %s403
          %409 = dma.hbm_to_vmem [thread:$0]  %s6, 256, %s404, [#allocation9], 64, 64, 4
        $region32: #{tpu_custom_call.1} parent=11 // pred_fallthru
          _
        // Predicated region
        $region33: #{tpu_custom_call.1} parent=11 // pred_check
          %p410 = pneg %p208
        $region34: #{tpu_custom_call.1} parent=11 // pred_check_branch
          %412 = sbr.rel (%p410) target = $region36
        $region35: #{tpu_custom_call.1} parent=11 // pred_region
          _
        $region36: #{tpu_custom_call.1} parent=11 // pred_fallthru
          _
        // Predicated region
        $region37: #{tpu_custom_call.1} parent=11 // pred_check
          %p413 = pneg %p229
        $region38: #{tpu_custom_call.1} parent=11 // pred_check_branch
          %415 = sbr.rel (%p413) target = $region40
        $region39: #{tpu_custom_call.1} parent=11 // pred_region
          _
        $region40: #{tpu_custom_call.1} parent=11 // pred_fallthru
          _
        // Predicated region
        $region41: #{tpu_custom_call.1} parent=11 // pred_check
          %p416 = pneg %p250
        $region42: #{tpu_custom_call.1} parent=11 // pred_check_branch
          %418 = sbr.rel (%p416) target = $region44
        $region43: #{tpu_custom_call.1} parent=11 // pred_region
          _
        $region44: #{tpu_custom_call.1} parent=11 // pred_fallthru
          _
        // Predicated region
        $region45: #{tpu_custom_call.1} parent=11 // pred_check
          %p419 = pneg %p271
        $region46: #{tpu_custom_call.1} parent=11 // pred_check_branch
          %421 = sbr.rel (%p419) target = $region48
        $region47: #{tpu_custom_call.1} parent=11 // pred_region
          _
        $region48: #{tpu_custom_call.1} parent=11 // pred_fallthru
          _
        // Predicated region
        $region49: #{tpu_custom_call.1} parent=11 // pred_check
          %p422 = pneg %p292
        $region50: #{tpu_custom_call.1} parent=11 // pred_check_branch
          %424 = sbr.rel (%p422) target = $region52
        $region51: #{tpu_custom_call.1} parent=11 // pred_region
          _
        $region52: #{tpu_custom_call.1} parent=11 // pred_fallthru
          _
        // Predicated region
        $region53: #{tpu_custom_call.1} parent=11 // pred_check
          %p425 = pneg %p313
        $region54: #{tpu_custom_call.1} parent=11 // pred_check_branch
          %427 = sbr.rel (%p425) target = $region56
        $region55: #{tpu_custom_call.1} parent=11 // pred_region
          _
        $region56: #{tpu_custom_call.1} parent=11 // pred_fallthru
          _
        // Predicated region
        $region57: #{tpu_custom_call.1} parent=11 // pred_check
          %p428 = pneg %p334
        $region58: #{tpu_custom_call.1} parent=11 // pred_check_branch
          %430 = sbr.rel (%p428) target = $region60
        $region59: #{tpu_custom_call.1} parent=11 // pred_region
          _
        $region60: #{tpu_custom_call.1} parent=11 // pred_fallthru
          _
      $region12: #{tpu_custom_call.1} parent=5 // pred_fallthru
        _
      %p431 = scmp.lt.s32.totalorder %s30, 2
      // Predicated region
      $region61: #{tpu_custom_call.1} parent=5 // pred_check
        %p432 = pneg %p431
      $region62: #{tpu_custom_call.1} parent=5 // pred_check_branch
        %434 = sbr.rel (%p432) target = $region64
      $region63: #{tpu_custom_call.1} parent=5 // pred_region
        // Predicated region
        $region65: #{tpu_custom_call.1} parent=63 // pred_check
          %p435 = pneg %p50
        $region66: #{tpu_custom_call.1} parent=63 // pred_check_branch
          %437 = sbr.rel (%p435) target = $region68
        $region67: #{tpu_custom_call.1} parent=63 // pred_region
          %s438 = sand.u32 %s40, 1
          %s439 = scalar_lea.sflag [#allocation3], %s438
          %s440 = sand.u32 %s40, 1
          %s441 = scalar_lea.vmem [#allocation2], %s440
          %s443 = ssub.s32 16, 16
          %444 = vsyncadd %s439, %s443
          %s445 = smul.addr %s30, 16
          %s446 = scalar_lea.hbm %s0, %s445
          %s448 = sshll.u32 %s441, 4
          %s449 = int_to_ptr.vmem [resolvable:$true] %s448
          %451 = dma.hbm_to_vmem [thread:$0]  %s446, 16, %s449, %s439
        $region68: #{tpu_custom_call.1} parent=63 // pred_fallthru
          _
        // Predicated region
        $region69: #{tpu_custom_call.1} parent=63 // pred_check
          %p452 = pneg %p76
        $region70: #{tpu_custom_call.1} parent=63 // pred_check_branch
          %454 = sbr.rel (%p452) target = $region72
        $region71: #{tpu_custom_call.1} parent=63 // pred_region
          %s455 = sand.u32 %s30, 1
          %s456 = scalar_lea.sflag [#allocation6], %s455
          %s457 = sand.u32 %s66, 1
          %s458 = smul.addr %s457, 4
          %s459 = scalar_lea.vmem [#allocation5], %s458
          %s461 = ssub.s32 64, 64
          %462 = vsyncadd %s456, %s461
          %s463 = smul.addr %s30, 64
          %s464 = scalar_lea.hbm %s1, %s463
          %s466 = sshll.u32 %s459, 4
          %s467 = int_to_ptr.vmem [resolvable:$true] %s466
          %469 = dma.hbm_to_vmem [thread:$0]  %s464, 64, %s467, %s456
        $region72: #{tpu_custom_call.1} parent=63 // pred_fallthru
          _
      $region64: #{tpu_custom_call.1} parent=5 // pred_fallthru
        _
      %p470 = scmp.le.s32.totalorder 1, %s30
      %p471 = scmp.lt.s32.totalorder %s30, 3
      %p472 = pnand %p470, %p471
      %p473 = pneg %p472
      // Predicated region
      $region73: #{tpu_custom_call.1} parent=5 // pred_check
        _
      $region74: #{tpu_custom_call.1} parent=5 // pred_check_branch
        %475 = sbr.rel (%p472) target = $region76
      $region75: #{tpu_custom_call.1} parent=5 // pred_region
        %s476 = ssub.s32 %s30, 1
        %s477 = sand.u32 %s43, 1
        %s478 = scalar_lea.sflag [#allocation3], %s477
        %s479 = sand.u32 %s43, 1
        %s480 = scalar_lea.vmem [#allocation2], %s479
        // Predicated region
        $region77: #{tpu_custom_call.1} parent=75 // pred_check
          %p481 = pneg %p56
        $region78: #{tpu_custom_call.1} parent=75 // pred_check_branch
          %483 = sbr.rel (%p481) target = $region80
        $region79: #{tpu_custom_call.1} parent=75 // pred_region
          %484 = dma.done %s478, 16
        $region80: #{tpu_custom_call.1} parent=75 // pred_fallthru
          _
        %s485 = sand.u32 %s35, 1
        %s486 = scalar_lea.sflag [#allocation6], %s485
        %s487 = sand.u32 %s69, 1
        %s488 = smul.addr %s487, 4
        %s489 = scalar_lea.vmem [#allocation5], %s488
        // Predicated region
        $region81: #{tpu_custom_call.1} parent=75 // pred_check
          %p490 = pneg %p82
        $region82: #{tpu_custom_call.1} parent=75 // pred_check_branch
          %492 = sbr.rel (%p490) target = $region84
        $region83: #{tpu_custom_call.1} parent=75 // pred_region
          %493 = dma.done %s486, 64
        $region84: #{tpu_custom_call.1} parent=75 // pred_fallthru
          _
        // Predicated region
        $region85: #{tpu_custom_call.1} parent=75 // pred_check
          %p494 = pneg %p166
        $region86: #{tpu_custom_call.1} parent=75 // pred_check_branch
          %496 = sbr.rel (%p494) target = $region88
        $region87: #{tpu_custom_call.1} parent=75 // pred_region
          %497 = dma.done [#allocation6], 256
        $region88: #{tpu_custom_call.1} parent=75 // pred_fallthru
          _
        // Predicated region
        $region89: #{tpu_custom_call.1} parent=75 // pred_check
          %p498 = pneg %p187
        $region90: #{tpu_custom_call.1} parent=75 // pred_check_branch
          %500 = sbr.rel (%p498) target = $region92
        $region91: #{tpu_custom_call.1} parent=75 // pred_region
          %501 = dma.done [#allocation9], 256
        $region92: #{tpu_custom_call.1} parent=75 // pred_fallthru
          _
        %s502 = sand.u32 %s43, 1
        %s503 = scalar_lea.sflag [#allocation3], %s502
        %s504 = sand.u32 %s43, 1
        %s505 = scalar_lea.vmem [#allocation2], %s504
        %p506 = pneg %p56
        %p507 = pneg %p53
        %s508 = sand.u32 %s35, 1
        %s509 = scalar_lea.sflag [#allocation6], %s508
        %s510 = sand.u32 %s69, 1
        %s511 = smul.addr %s510, 4
        %s512 = scalar_lea.vmem [#allocation5], %s511
        %p513 = pneg %p82
        %p514 = pneg %p79
        %p515 = pneg %p103
        %p516 = pneg %p100
        %p517 = pneg %p124
        %p518 = pneg %p121
        %p519 = pneg %p145
        %p520 = pneg %p142
        %p521 = pneg %p166
        %p522 = pneg %p163
        %p523 = pneg %p187
        %p524 = pneg %p184
        %p525 = pneg %p208
        %p526 = pneg %p205
        %p527 = pneg %p229
        %p528 = pneg %p226
        %p529 = pneg %p250
        %p530 = pneg %p247
        %p531 = pneg %p271
        %p532 = pneg %p268
        %p533 = pneg %p292
        %p534 = pneg %p289
        %p535 = pneg %p313
        %p536 = pneg %p310
        %p537 = pneg %p334
        %p538 = pneg %p331
        %p539 = pneg %p360
        %p540 = pneg %p357
        %s541 = sand.u32 %s347, 1
        %s542 = scalar_lea.sflag [#allocation4], %s541
        %s543 = sand.u32 %s347, 1
        %s544 = smul.addr %s543, 8
        %s545 = scalar_lea.vmem [#allocation10], %s544
        %v547 = vld [vmem:[%s489] sm:$0xf]
        %v548 = vunpack.c.l.bf16 %v547
        %v549 = vpack.c.bf16 %v548, %v548
        %v550 = vld [vmem:[%s2] sm:$0xf]
        %v551 = vld [vmem:[%s2 + $0x4] sm:$0xf]
        %v552 = vld [vmem:[%s2 + $0x8] sm:$0xf]
        %v553 = vld [vmem:[%s2 + $0xc] sm:$0xf]
        %v558 = vunpack.c.l.b16 %v550
        %v559 = vunpack.c.l.b16 %v551
        %v560 = vunpack.c.l.b16 %v552
        %v561 = vunpack.c.l.b16 %v553
        %v562 = vpack.c.b16 %v559, %v558
        %v563 = vpack.c.b16 %v561, %v560
        %vm566 = vcmask 261120
        %v568 = vsel %vm566, %v549, 0
        %570 = vmatprep.subr.bf16.mxu0 0
        %571 = vmatpush1.bf16.msra.mxu0 %v562
        %572 = vmatprep.subr.bf16.mxu0 0
        %573 = vmatpush1.bf16.msra.mxu0 %v563
        %574 = vmatprep.subr.bf16.mxu0 0
        %575 = vmatpush1.bf16.msra.mxu0 0
        %576 = vmatprep.subr.bf16.mxu0 0
        %577 = vmatpush1.bf16.msra.mxu0 0
        %578 = vmatprep.subr.bf16.mxu0 0
        %579 = vmatpush1.bf16.msra.mxu0 0
        %580 = vmatprep.subr.bf16.mxu0 0
        %581 = vmatpush1.bf16.msra.mxu0 0
        %582 = vmatprep.subr.bf16.mxu0 0
        %583 = vmatpush1.bf16.msra.mxu0 0
        %584 = vmatprep.subr.bf16.mxu0 0
        %585 = vmatpush1.bf16.msra.mxu0 0
        %586 = vmatprep.subr.bf16.mxu0 0
        %587 = vmatpush1.bf16.msra.mxu0 0
        %588 = vmatprep.subr.bf16.mxu0 0
        %589 = vmatpush1.bf16.msra.mxu0 0
        %590 = vmatprep.subr.bf16.mxu0 0
        %591 = vmatpush1.bf16.msra.mxu0 0
        %592 = vmatprep.subr.bf16.mxu0 0
        %593 = vmatpush1.bf16.msra.mxu0 0
        %594 = vmatprep.subr.bf16.mxu0 0
        %595 = vmatpush1.bf16.msra.mxu0 0
        %596 = vmatprep.subr.bf16.mxu0 0
        %597 = vmatpush1.bf16.msra.mxu0 0
        %598 = vmatprep.subr.bf16.mxu0 0
        %599 = vmatpush1.bf16.msra.mxu0 0
        %600 = vmatprep.subr.bf16.mxu0 0
        %601 = vmatpush1.bf16.msra.mxu0 0
        %602 = vmatprep.mubr.bf16.mxu0 0
        %603 = vmatmul.mubr.bf16.gmra.mrb[0].mxu0 %v568
        %v604 = vpop.f32.mrb[0].mxu0
        %v605 = vadd.f32 0.0, %v604
        %v606 = vpop.f32.mrb[0].mxu0
        %v607 = vpop.f32.mrb[0].mxu0
        %v608 = vpop.f32.mrb[0].mxu0
        %609 = vdwg.mxu0
        %v610 = vld [vmem:[%s3] sm:$0xf]
        %v611 = vld [vmem:[%s3 + $0x4] sm:$0xf]
        %v612 = vld [vmem:[%s3 + $0x8] sm:$0xf]
        %v613 = vld [vmem:[%s3 + $0xc] sm:$0xf]
        %v618 = vunpack.c.l.b16 %v610
        %v619 = vunpack.c.l.b16 %v611
        %v620 = vunpack.c.l.b16 %v612
        %v621 = vunpack.c.l.b16 %v613
        %v622 = vpack.c.b16 %v619, %v618
        %v623 = vpack.c.b16 %v621, %v620
        %626 = vmatprep.subr.bf16.mxu0 0
        %627 = vmatpush1.bf16.msra.mxu0 %v622
        %628 = vmatprep.subr.bf16.mxu0 0
        %629 = vmatpush1.bf16.msra.mxu0 %v623
        %630 = vmatprep.subr.bf16.mxu0 0
        %631 = vmatpush1.bf16.msra.mxu0 0
        %632 = vmatprep.subr.bf16.mxu0 0
        %633 = vmatpush1.bf16.msra.mxu0 0
        %634 = vmatprep.subr.bf16.mxu0 0
        %635 = vmatpush1.bf16.msra.mxu0 0
        %636 = vmatprep.subr.bf16.mxu0 0
        %637 = vmatpush1.bf16.msra.mxu0 0
        %638 = vmatprep.subr.bf16.mxu0 0
        %639 = vmatpush1.bf16.msra.mxu0 0
        %640 = vmatprep.subr.bf16.mxu0 0
        %641 = vmatpush1.bf16.msra.mxu0 0
        %642 = vmatprep.subr.bf16.mxu0 0
        %643 = vmatpush1.bf16.msra.mxu0 0
        %644 = vmatprep.subr.bf16.mxu0 0
        %645 = vmatpush1.bf16.msra.mxu0 0
        %646 = vmatprep.subr.bf16.mxu0 0
        %647 = vmatpush1.bf16.msra.mxu0 0
        %648 = vmatprep.subr.bf16.mxu0 0
        %649 = vmatpush1.bf16.msra.mxu0 0
        %650 = vmatprep.subr.bf16.mxu0 0
        %651 = vmatpush1.bf16.msra.mxu0 0
        %652 = vmatprep.subr.bf16.mxu0 0
        %653 = vmatpush1.bf16.msra.mxu0 0
        %654 = vmatprep.subr.bf16.mxu0 0
        %655 = vmatpush1.bf16.msra.mxu0 0
        %656 = vmatprep.subr.bf16.mxu0 0
        %657 = vmatpush1.bf16.msra.mxu0 0
        %658 = vmatprep.mubr.bf16.mxu0 0
        %659 = vmatmul.mubr.bf16.gmra.mrb[0].mxu0 %v568
        %v660 = vpop.f32.mrb[0].mxu0
        %v661 = vadd.f32 0.0, %v660
        %v662 = vpop.f32.mrb[0].mxu0
        %v663 = vpop.f32.mrb[0].mxu0
        %v664 = vpop.f32.mrb[0].mxu0
        %665 = vdwg.mxu0
        %v666 = vld [vmem:[%s4] sm:$0xf]
        %v667 = vld [vmem:[%s4 + $0x4] sm:$0xf]
        %v668 = vld [vmem:[%s4 + $0x8] sm:$0xf]
        %v669 = vld [vmem:[%s4 + $0xc] sm:$0xf]
        %v674 = vunpack.c.l.b16 %v666
        %v675 = vunpack.c.l.b16 %v667
        %v676 = vunpack.c.l.b16 %v668
        %v677 = vunpack.c.l.b16 %v669
        %v678 = vpack.c.b16 %v675, %v674
        %v679 = vpack.c.b16 %v677, %v676
        %682 = vmatprep.subr.bf16.mxu0 0
        %683 = vmatpush1.bf16.msra.mxu0 %v678
        %684 = vmatprep.subr.bf16.mxu0 0
        %685 = vmatpush1.bf16.msra.mxu0 %v679
        %686 = vmatprep.subr.bf16.mxu0 0
        %687 = vmatpush1.bf16.msra.mxu0 0
        %688 = vmatprep.subr.bf16.mxu0 0
        %689 = vmatpush1.bf16.msra.mxu0 0
        %690 = vmatprep.subr.bf16.mxu0 0
        %691 = vmatpush1.bf16.msra.mxu0 0
        %692 = vmatprep.subr.bf16.mxu0 0
        %693 = vmatpush1.bf16.msra.mxu0 0
        %694 = vmatprep.subr.bf16.mxu0 0
        %695 = vmatpush1.bf16.msra.mxu0 0
        %696 = vmatprep.subr.bf16.mxu0 0
        %697 = vmatpush1.bf16.msra.mxu0 0
        %698 = vmatprep.subr.bf16.mxu0 0
        %699 = vmatpush1.bf16.msra.mxu0 0
        %700 = vmatprep.subr.bf16.mxu0 0
        %701 = vmatpush1.bf16.msra.mxu0 0
        %702 = vmatprep.subr.bf16.mxu0 0
        %703 = vmatpush1.bf16.msra.mxu0 0
        %704 = vmatprep.subr.bf16.mxu0 0
        %705 = vmatpush1.bf16.msra.mxu0 0
        %706 = vmatprep.subr.bf16.mxu0 0
        %707 = vmatpush1.bf16.msra.mxu0 0
        %708 = vmatprep.subr.bf16.mxu0 0
        %709 = vmatpush1.bf16.msra.mxu0 0
        %710 = vmatprep.subr.bf16.mxu0 0
        %711 = vmatpush1.bf16.msra.mxu0 0
        %712 = vmatprep.subr.bf16.mxu0 0
        %713 = vmatpush1.bf16.msra.mxu0 0
        %714 = vmatprep.mubr.bf16.mxu0 0
        %715 = vmatmul.mubr.bf16.gmra.mrb[0].mxu0 %v568
        %v716 = vpop.f32.mrb[0].mxu0
        %v717 = vadd.f32 0.0, %v716
        %v718 = vpop.f32.mrb[0].mxu0
        %v719 = vpop.f32.mrb[0].mxu0
        %v720 = vpop.f32.mrb[0].mxu0
        %721 = vdwg.mxu0
        %v722 = vpack.c.bf16 %v605, %v605
        %724 = vrot.lane.b32.xlu0 %v722, 120
        %v725 = vpop.permute.xlu0 %724
        %726 = vrot.lane.b32.xlu0 %v722, 112
        %v727 = vpop.permute.xlu0 %726
        %728 = vrot.lane.b32.xlu0 %v722, 104
        %v729 = vpop.permute.xlu0 %728
        %v730 = vpack.c.bf16 %v661, %v661
        %732 = vrot.lane.b32.xlu0 %v730, 120
        %v733 = vpop.permute.xlu0 %732
        %734 = vrot.lane.b32.xlu0 %v730, 112
        %v735 = vpop.permute.xlu0 %734
        %736 = vrot.lane.b32.xlu0 %v730, 104
        %v737 = vpop.permute.xlu0 %736
        %v738 = vpack.c.bf16 %v717, %v717
        %740 = vrot.lane.b32.xlu0 %v738, 120
        %v741 = vpop.permute.xlu0 %740
        %742 = vrot.lane.b32.xlu0 %v738, 112
        %v743 = vpop.permute.xlu0 %742
        %744 = vrot.lane.b32.xlu0 %v738, 104
        %v745 = vpop.permute.xlu0 %744
        %v746 = vld [vmem:[%s480] sm:$0x1]
        %v747 = vsub.f32 %v746, 1.0
        %v748 = vmul.f32 %v747, 1e+09
        %vm749 = vcmask 64512
        %v751 = vsel %vm749, %v722, 0
        %v754 = vsel %vm749, %v730, 0
        %756 = vmatprep.subr.bf16.mxu0 0
        %757 = vmatpush1.bf16.xpose.msra.mxu0 %v754
        %758 = vmatprep.subr.bf16.mxu0 0
        %759 = vmatpush1.bf16.xpose.msra.mxu0 0
        %760 = vmatprep.subr.bf16.mxu0 0
        %761 = vmatpush1.bf16.xpose.msra.mxu0 0
        %762 = vmatprep.subr.bf16.mxu0 0
        %763 = vmatpush1.bf16.xpose.msra.mxu0 0
        %764 = vmatprep.subr.bf16.mxu0 0
        %765 = vmatpush1.bf16.xpose.msra.mxu0 0
        %766 = vmatprep.subr.bf16.mxu0 0
        %767 = vmatpush1.bf16.xpose.msra.mxu0 0
        %768 = vmatprep.subr.bf16.mxu0 0
        %769 = vmatpush1.bf16.xpose.msra.mxu0 0
        %770 = vmatprep.subr.bf16.mxu0 0
        %771 = vmatpush1.bf16.xpose.msra.mxu0 0
        %772 = vmatprep.subr.bf16.mxu0 0
        %773 = vmatpush1.bf16.xpose.msra.mxu0 0
        %774 = vmatprep.subr.bf16.mxu0 0
        %775 = vmatpush1.bf16.xpose.msra.mxu0 0
        %776 = vmatprep.subr.bf16.mxu0 0
        %777 = vmatpush1.bf16.xpose.msra.mxu0 0
        %778 = vmatprep.subr.bf16.mxu0 0
        %779 = vmatpush1.bf16.xpose.msra.mxu0 0
        %780 = vmatprep.subr.bf16.mxu0 0
        %781 = vmatpush1.bf16.xpose.msra.mxu0 0
        %782 = vmatprep.subr.bf16.mxu0 0
        %783 = vmatpush1.bf16.xpose.msra.mxu0 0
        %784 = vmatprep.subr.bf16.mxu0 0
        %785 = vmatpush1.bf16.xpose.msra.mxu0 0
        %786 = vmatprep.subr.bf16.mxu0 0
        %787 = vmatpush1.bf16.xpose.msra.mxu0 0
        %788 = vmatprep.mubr.bf16.mxu0 0
        %789 = vmatmul.mubr.bf16.gmra.mrb[0].mxu0 %v751
        %v790 = vpop.f32.mrb[0].mxu0
        %v791 = vadd.f32 0.0, %v790
        %v792 = vpop.f32.mrb[0].mxu0
        %v793 = vpop.f32.mrb[0].mxu0
        %v794 = vpop.f32.mrb[0].mxu0
        %795 = vdwg.mxu0
        %v797 = vsel %vm749, %v725, 0
        %v800 = vsel %vm749, %v733, 0
        %802 = vmatprep.subr.bf16.mxu0 0
        %803 = vmatpush1.bf16.xpose.msra.mxu0 %v800
        %804 = vmatprep.subr.bf16.mxu0 0
        %805 = vmatpush1.bf16.xpose.msra.mxu0 0
        %806 = vmatprep.subr.bf16.mxu0 0
        %807 = vmatpush1.bf16.xpose.msra.mxu0 0
        %808 = vmatprep.subr.bf16.mxu0 0
        %809 = vmatpush1.bf16.xpose.msra.mxu0 0
        %810 = vmatprep.subr.bf16.mxu0 0
        %811 = vmatpush1.bf16.xpose.msra.mxu0 0
        %812 = vmatprep.subr.bf16.mxu0 0
        %813 = vmatpush1.bf16.xpose.msra.mxu0 0
        %814 = vmatprep.subr.bf16.mxu0 0
        %815 = vmatpush1.bf16.xpose.msra.mxu0 0
        %816 = vmatprep.subr.bf16.mxu0 0
        %817 = vmatpush1.bf16.xpose.msra.mxu0 0
        %818 = vmatprep.subr.bf16.mxu0 0
        %819 = vmatpush1.bf16.xpose.msra.mxu0 0
        %820 = vmatprep.subr.bf16.mxu0 0
        %821 = vmatpush1.bf16.xpose.msra.mxu0 0
        %822 = vmatprep.subr.bf16.mxu0 0
        %823 = vmatpush1.bf16.xpose.msra.mxu0 0
        %824 = vmatprep.subr.bf16.mxu0 0
        %825 = vmatpush1.bf16.xpose.msra.mxu0 0
        %826 = vmatprep.subr.bf16.mxu0 0
        %827 = vmatpush1.bf16.xpose.msra.mxu0 0
        %828 = vmatprep.subr.bf16.mxu0 0
        %829 = vmatpush1.bf16.xpose.msra.mxu0 0
        %830 = vmatprep.subr.bf16.mxu0 0
        %831 = vmatpush1.bf16.xpose.msra.mxu0 0
        %832 = vmatprep.subr.bf16.mxu0 0
        %833 = vmatpush1.bf16.xpose.msra.mxu0 0
        %834 = vmatprep.mubr.bf16.mxu0 0
        %835 = vmatmul.mubr.bf16.gmra.mrb[0].mxu0 %v797
        %v836 = vpop.f32.mrb[0].mxu0
        %v837 = vadd.f32 0.0, %v836
        %v838 = vpop.f32.mrb[0].mxu0
        %v839 = vpop.f32.mrb[0].mxu0
        %v840 = vpop.f32.mrb[0].mxu0
        %841 = vdwg.mxu0
        %v843 = vsel %vm749, %v727, 0
        %v846 = vsel %vm749, %v735, 0
        %848 = vmatprep.subr.bf16.mxu0 0
        %849 = vmatpush1.bf16.xpose.msra.mxu0 %v846
        %850 = vmatprep.subr.bf16.mxu0 0
        %851 = vmatpush1.bf16.xpose.msra.mxu0 0
        %852 = vmatprep.subr.bf16.mxu0 0
        %853 = vmatpush1.bf16.xpose.msra.mxu0 0
        %854 = vmatprep.subr.bf16.mxu0 0
        %855 = vmatpush1.bf16.xpose.msra.mxu0 0
        %856 = vmatprep.subr.bf16.mxu0 0
        %857 = vmatpush1.bf16.xpose.msra.mxu0 0
        %858 = vmatprep.subr.bf16.mxu0 0
        %859 = vmatpush1.bf16.xpose.msra.mxu0 0
        %860 = vmatprep.subr.bf16.mxu0 0
        %861 = vmatpush1.bf16.xpose.msra.mxu0 0
        %862 = vmatprep.subr.bf16.mxu0 0
        %863 = vmatpush1.bf16.xpose.msra.mxu0 0
        %864 = vmatprep.subr.bf16.mxu0 0
        %865 = vmatpush1.bf16.xpose.msra.mxu0 0
        %866 = vmatprep.subr.bf16.mxu0 0
        %867 = vmatpush1.bf16.xpose.msra.mxu0 0
        %868 = vmatprep.subr.bf16.mxu0 0
        %869 = vmatpush1.bf16.xpose.msra.mxu0 0
        %870 = vmatprep.subr.bf16.mxu0 0
        %871 = vmatpush1.bf16.xpose.msra.mxu0 0
        %872 = vmatprep.subr.bf16.mxu0 0
        %873 = vmatpush1.bf16.xpose.msra.mxu0 0
        %874 = vmatprep.subr.bf16.mxu0 0
        %875 = vmatpush1.bf16.xpose.msra.mxu0 0
        %876 = vmatprep.subr.bf16.mxu0 0
        %877 = vmatpush1.bf16.xpose.msra.mxu0 0
        %878 = vmatprep.subr.bf16.mxu0 0
        %879 = vmatpush1.bf16.xpose.msra.mxu0 0
        %880 = vmatprep.mubr.bf16.mxu0 0
        %881 = vmatmul.mubr.bf16.gmra.mrb[0].mxu0 %v843
        %v882 = vpop.f32.mrb[0].mxu0
        %v883 = vadd.f32 0.0, %v882
        %v884 = vpop.f32.mrb[0].mxu0
        %v885 = vpop.f32.mrb[0].mxu0
        %v886 = vpop.f32.mrb[0].mxu0
        %887 = vdwg.mxu0
        %v889 = vsel %vm749, %v729, 0
        %v892 = vsel %vm749, %v737, 0
        %894 = vmatprep.subr.bf16.mxu0 0
        %895 = vmatpush1.bf16.xpose.msra.mxu0 %v892
        %896 = vmatprep.subr.bf16.mxu0 0
        %897 = vmatpush1.bf16.xpose.msra.mxu0 0
        %898 = vmatprep.subr.bf16.mxu0 0
        %899 = vmatpush1.bf16.xpose.msra.mxu0 0
        %900 = vmatprep.subr.bf16.mxu0 0
        %901 = vmatpush1.bf16.xpose.msra.mxu0 0
        %902 = vmatprep.subr.bf16.mxu0 0
        %903 = vmatpush1.bf16.xpose.msra.mxu0 0
        %904 = vmatprep.subr.bf16.mxu0 0
        %905 = vmatpush1.bf16.xpose.msra.mxu0 0
        %906 = vmatprep.subr.bf16.mxu0 0
        %907 = vmatpush1.bf16.xpose.msra.mxu0 0
        %908 = vmatprep.subr.bf16.mxu0 0
        %909 = vmatpush1.bf16.xpose.msra.mxu0 0
        %910 = vmatprep.subr.bf16.mxu0 0
        %911 = vmatpush1.bf16.xpose.msra.mxu0 0
        %912 = vmatprep.subr.bf16.mxu0 0
        %913 = vmatpush1.bf16.xpose.msra.mxu0 0
        %914 = vmatprep.subr.bf16.mxu0 0
        %915 = vmatpush1.bf16.xpose.msra.mxu0 0
        %916 = vmatprep.subr.bf16.mxu0 0
        %917 = vmatpush1.bf16.xpose.msra.mxu0 0
        %918 = vmatprep.subr.bf16.mxu0 0
        %919 = vmatpush1.bf16.xpose.msra.mxu0 0
        %920 = vmatprep.subr.bf16.mxu0 0
        %921 = vmatpush1.bf16.xpose.msra.mxu0 0
        %922 = vmatprep.subr.bf16.mxu0 0
        %923 = vmatpush1.bf16.xpose.msra.mxu0 0
        %924 = vmatprep.subr.bf16.mxu0 0
        %925 = vmatpush1.bf16.xpose.msra.mxu0 0
        %926 = vmatprep.mubr.bf16.mxu0 0
        %927 = vmatmul.mubr.bf16.gmra.mrb[0].mxu0 %v889
        %v928 = vpop.f32.mrb[0].mxu0
        %v929 = vadd.f32 0.0, %v928
        %v930 = vpop.f32.mrb[0].mxu0
        %v931 = vpop.f32.mrb[0].mxu0
        %v932 = vpop.f32.mrb[0].mxu0
        %933 = vdwg.mxu0
        %v934 = vmul.f32 %v791, 0.35355338
        %v935 = vmul.f32 %v837, 0.35355338
        %v936 = vmul.f32 %v883, 0.35355338
        %v937 = vmul.f32 %v929, 0.35355338
        %v939 = vlaneseq
        %v940 = vshrl.u32 %v939, 7
        %v941 = vsub.s32 0, %v940
        %v942 = vrot.slane %v748, %v941
        %v944 = vadd.f32 %v934, %v942
        %v945 = vadd.f32 %v935, %v942
        %v946 = vadd.f32 %v936, %v942
        %v947 = vadd.f32 %v937, %v942
        %v948 = vsel %vm749, %v944, -inf
        %949 = vmax.xlane.f32.xlu0 %v948
        %v950 = vpop.xlane.xlu0 %949
        %v951 = vsel %vm749, %v945, -inf
        %952 = vmax.xlane.f32.xlu0 %v951
        %v953 = vpop.xlane.xlu0 %952
        %v954 = vsel %vm749, %v946, -inf
        %955 = vmax.xlane.f32.xlu0 %v954
        %v956 = vpop.xlane.xlu0 %955
        %v957 = vsel %vm749, %v947, -inf
        %958 = vmax.xlane.f32.xlu0 %v957
        %v959 = vpop.xlane.xlu0 %958
        %v960 = vsub.f32 %v944, %v950
        %v961 = vsub.f32 %v945, %v953
        %v962 = vsub.f32 %v946, %v956
        %v963 = vsub.f32 %v947, %v959
        %v964 = vmul.f32 %v960, 1.442695
        %v965 = vpow.pop %v964
        %v966 = vmul.f32 %v961, 1.442695
        %v967 = vpow.pop %v966
        %v968 = vmul.f32 %v962, 1.442695
        %v969 = vpow.pop %v968
        %v970 = vmul.f32 %v963, 1.442695
        %v971 = vpow.pop %v970
        %v972 = vsel %vm749, %v965, 0.0
        %973 = vadd.xlane.f32.xlu0 %v972
        %v974 = vpop.xlane.xlu0 %973
        %v975 = vsel %vm749, %v967, 0.0
        %976 = vadd.xlane.f32.xlu0 %v975
        %v977 = vpop.xlane.xlu0 %976
        %v978 = vsel %vm749, %v969, 0.0
        %979 = vadd.xlane.f32.xlu0 %v978
        %v980 = vpop.xlane.xlu0 %979
        %v981 = vsel %vm749, %v971, 0.0
        %982 = vadd.xlane.f32.xlu0 %v981
        %v983 = vpop.xlane.xlu0 %982
        %v984 = vrcp.pop %v974
        %v985 = vrcp.pop %v977
        %v986 = vrcp.pop %v980
        %v987 = vrcp.pop %v983
        %v988 = vmul.f32 %v965, %v984
        %v989 = vmul.f32 %v967, %v985
        %v990 = vmul.f32 %v969, %v986
        %v991 = vmul.f32 %v971, %v987
        %v992 = vpack.c.bf16 %v988, %v988
        %v993 = vpack.c.bf16 %v989, %v989
        %v994 = vpack.c.bf16 %v990, %v990
        %v995 = vpack.c.bf16 %v991, %v991
        %v997 = vsel %vm749, %v992, 0
        %vm999 = vcmask 1043456
        %v1001 = vsel %vm999, %v738, 0
        %1003 = vmatprep.subr.bf16.mxu0 0
        %1004 = vmatpush1.bf16.msra.mxu0 %v1001
        %1005 = vmatprep.subr.bf16.mxu0 0
        %1006 = vmatpush1.bf16.msra.mxu0 0
        %1007 = vmatprep.subr.bf16.mxu0 0
        %1008 = vmatpush1.bf16.msra.mxu0 0
        %1009 = vmatprep.subr.bf16.mxu0 0
        %1010 = vmatpush1.bf16.msra.mxu0 0
        %1011 = vmatprep.subr.bf16.mxu0 0
        %1012 = vmatpush1.bf16.msra.mxu0 0
        %1013 = vmatprep.subr.bf16.mxu0 0
        %1014 = vmatpush1.bf16.msra.mxu0 0
        %1015 = vmatprep.subr.bf16.mxu0 0
        %1016 = vmatpush1.bf16.msra.mxu0 0
        %1017 = vmatprep.subr.bf16.mxu0 0
        %1018 = vmatpush1.bf16.msra.mxu0 0
        %1019 = vmatprep.subr.bf16.mxu0 0
        %1020 = vmatpush1.bf16.msra.mxu0 0
        %1021 = vmatprep.subr.bf16.mxu0 0
        %1022 = vmatpush1.bf16.msra.mxu0 0
        %1023 = vmatprep.subr.bf16.mxu0 0
        %1024 = vmatpush1.bf16.msra.mxu0 0
        %1025 = vmatprep.subr.bf16.mxu0 0
        %1026 = vmatpush1.bf16.msra.mxu0 0
        %1027 = vmatprep.subr.bf16.mxu0 0
        %1028 = vmatpush1.bf16.msra.mxu0 0
        %1029 = vmatprep.subr.bf16.mxu0 0
        %1030 = vmatpush1.bf16.msra.mxu0 0
        %1031 = vmatprep.subr.bf16.mxu0 0
        %1032 = vmatpush1.bf16.msra.mxu0 0
        %1033 = vmatprep.subr.bf16.mxu0 0
        %1034 = vmatpush1.bf16.msra.mxu0 0
        %1035 = vmatprep.mubr.bf16.mxu0 0
        %1036 = vmatmul.mubr.bf16.gmra.mrb[0].mxu0 %v997
        %v1037 = vpop.f32.mrb[0].mxu0
        %v1038 = vadd.f32 0.0, %v1037
        %v1039 = vpop.f32.mrb[0].mxu0
        %v1040 = vpop.f32.mrb[0].mxu0
        %v1041 = vpop.f32.mrb[0].mxu0
        %1042 = vdwg.mxu0
        %v1044 = vsel %vm749, %v993, 0
        %v1047 = vsel %vm999, %v741, 0
        %1049 = vmatprep.subr.bf16.mxu0 0
        %1050 = vmatpush1.bf16.msra.mxu0 %v1047
        %1051 = vmatprep.subr.bf16.mxu0 0
        %1052 = vmatpush1.bf16.msra.mxu0 0
        %1053 = vmatprep.subr.bf16.mxu0 0
        %1054 = vmatpush1.bf16.msra.mxu0 0
        %1055 = vmatprep.subr.bf16.mxu0 0
        %1056 = vmatpush1.bf16.msra.mxu0 0
        %1057 = vmatprep.subr.bf16.mxu0 0
        %1058 = vmatpush1.bf16.msra.mxu0 0
        %1059 = vmatprep.subr.bf16.mxu0 0
        %1060 = vmatpush1.bf16.msra.mxu0 0
        %1061 = vmatprep.subr.bf16.mxu0 0
        %1062 = vmatpush1.bf16.msra.mxu0 0
        %1063 = vmatprep.subr.bf16.mxu0 0
        %1064 = vmatpush1.bf16.msra.mxu0 0
        %1065 = vmatprep.subr.bf16.mxu0 0
        %1066 = vmatpush1.bf16.msra.mxu0 0
        %1067 = vmatprep.subr.bf16.mxu0 0
        %1068 = vmatpush1.bf16.msra.mxu0 0
        %1069 = vmatprep.subr.bf16.mxu0 0
        %1070 = vmatpush1.bf16.msra.mxu0 0
        %1071 = vmatprep.subr.bf16.mxu0 0
        %1072 = vmatpush1.bf16.msra.mxu0 0
        %1073 = vmatprep.subr.bf16.mxu0 0
        %1074 = vmatpush1.bf16.msra.mxu0 0
        %1075 = vmatprep.subr.bf16.mxu0 0
        %1076 = vmatpush1.bf16.msra.mxu0 0
        %1077 = vmatprep.subr.bf16.mxu0 0
        %1078 = vmatpush1.bf16.msra.mxu0 0
        %1079 = vmatprep.subr.bf16.mxu0 0
        %1080 = vmatpush1.bf16.msra.mxu0 0
        %1081 = vmatprep.mubr.bf16.mxu0 0
        %1082 = vmatmul.mubr.bf16.gmra.mrb[0].mxu0 %v1044
        %v1083 = vpop.f32.mrb[0].mxu0
        %v1084 = vadd.f32 0.0, %v1083
        %v1085 = vpop.f32.mrb[0].mxu0
        %v1086 = vpop.f32.mrb[0].mxu0
        %v1087 = vpop.f32.mrb[0].mxu0
        %1088 = vdwg.mxu0
        %v1090 = vsel %vm749, %v994, 0
        %v1093 = vsel %vm999, %v743, 0
        %1095 = vmatprep.subr.bf16.mxu0 0
        %1096 = vmatpush1.bf16.msra.mxu0 %v1093
        %1097 = vmatprep.subr.bf16.mxu0 0
        %1098 = vmatpush1.bf16.msra.mxu0 0
        %1099 = vmatprep.subr.bf16.mxu0 0
        %1100 = vmatpush1.bf16.msra.mxu0 0
        %1101 = vmatprep.subr.bf16.mxu0 0
        %1102 = vmatpush1.bf16.msra.mxu0 0
        %1103 = vmatprep.subr.bf16.mxu0 0
        %1104 = vmatpush1.bf16.msra.mxu0 0
        %1105 = vmatprep.subr.bf16.mxu0 0
        %1106 = vmatpush1.bf16.msra.mxu0 0
        %1107 = vmatprep.subr.bf16.mxu0 0
        %1108 = vmatpush1.bf16.msra.mxu0 0
        %1109 = vmatprep.subr.bf16.mxu0 0
        %1110 = vmatpush1.bf16.msra.mxu0 0
        %1111 = vmatprep.subr.bf16.mxu0 0
        %1112 = vmatpush1.bf16.msra.mxu0 0
        %1113 = vmatprep.subr.bf16.mxu0 0
        %1114 = vmatpush1.bf16.msra.mxu0 0
        %1115 = vmatprep.subr.bf16.mxu0 0
        %1116 = vmatpush1.bf16.msra.mxu0 0
        %1117 = vmatprep.subr.bf16.mxu0 0
        %1118 = vmatpush1.bf16.msra.mxu0 0
        %1119 = vmatprep.subr.bf16.mxu0 0
        %1120 = vmatpush1.bf16.msra.mxu0 0
        %1121 = vmatprep.subr.bf16.mxu0 0
        %1122 = vmatpush1.bf16.msra.mxu0 0
        %1123 = vmatprep.subr.bf16.mxu0 0
        %1124 = vmatpush1.bf16.msra.mxu0 0
        %1125 = vmatprep.subr.bf16.mxu0 0
        %1126 = vmatpush1.bf16.msra.mxu0 0
        %1127 = vmatprep.mubr.bf16.mxu0 0
        %1128 = vmatmul.mubr.bf16.gmra.mrb[0].mxu0 %v1090
        %v1129 = vpop.f32.mrb[0].mxu0
        %v1130 = vadd.f32 0.0, %v1129
        %v1131 = vpop.f32.mrb[0].mxu0
        %v1132 = vpop.f32.mrb[0].mxu0
        %v1133 = vpop.f32.mrb[0].mxu0
        %1134 = vdwg.mxu0
        %v1136 = vsel %vm749, %v995, 0
        %v1139 = vsel %vm999, %v745, 0
        %1141 = vmatprep.subr.bf16.mxu0 0
        %1142 = vmatpush1.bf16.msra.mxu0 %v1139
        %1143 = vmatprep.subr.bf16.mxu0 0
        %1144 = vmatpush1.bf16.msra.mxu0 0
        %1145 = vmatprep.subr.bf16.mxu0 0
        %1146 = vmatpush1.bf16.msra.mxu0 0
        %1147 = vmatprep.subr.bf16.mxu0 0
        %1148 = vmatpush1.bf16.msra.mxu0 0
        %1149 = vmatprep.subr.bf16.mxu0 0
        %1150 = vmatpush1.bf16.msra.mxu0 0
        %1151 = vmatprep.subr.bf16.mxu0 0
        %1152 = vmatpush1.bf16.msra.mxu0 0
        %1153 = vmatprep.subr.bf16.mxu0 0
        %1154 = vmatpush1.bf16.msra.mxu0 0
        %1155 = vmatprep.subr.bf16.mxu0 0
        %1156 = vmatpush1.bf16.msra.mxu0 0
        %1157 = vmatprep.subr.bf16.mxu0 0
        %1158 = vmatpush1.bf16.msra.mxu0 0
        %1159 = vmatprep.subr.bf16.mxu0 0
        %1160 = vmatpush1.bf16.msra.mxu0 0
        %1161 = vmatprep.subr.bf16.mxu0 0
        %1162 = vmatpush1.bf16.msra.mxu0 0
        %1163 = vmatprep.subr.bf16.mxu0 0
        %1164 = vmatpush1.bf16.msra.mxu0 0
        %1165 = vmatprep.subr.bf16.mxu0 0
        %1166 = vmatpush1.bf16.msra.mxu0 0
        %1167 = vmatprep.subr.bf16.mxu0 0
        %1168 = vmatpush1.bf16.msra.mxu0 0
        %1169 = vmatprep.subr.bf16.mxu0 0
        %1170 = vmatpush1.bf16.msra.mxu0 0
        %1171 = vmatprep.subr.bf16.mxu0 0
        %1172 = vmatpush1.bf16.msra.mxu0 0
        %1173 = vmatprep.mubr.bf16.mxu0 0
        %1174 = vmatmul.mubr.bf16.gmra.mrb[0].mxu0 %v1136
        %v1175 = vpop.f32.mrb[0].mxu0
        %v1176 = vadd.f32 0.0, %v1175
        %v1177 = vpop.f32.mrb[0].mxu0
        %v1178 = vpop.f32.mrb[0].mxu0
        %v1179 = vpop.f32.mrb[0].mxu0
        %1180 = vdwg.mxu0
        %v1181 = vpack.c.bf16 %v1038, %v1038
        %v1182 = vpack.c.bf16 %v1084, %v1084
        %v1183 = vpack.c.bf16 %v1130, %v1130
        %v1184 = vpack.c.bf16 %v1176, %v1176
        %v1185 = vld [vmem:[#allocation7] sm:$0xf]
        %v1186 = vld [vmem:[#allocation7 + $0x4] sm:$0xf]
        %v1188 = vsel %vm749, %v1182, 0
        %v1191 = vsel %vm999, %v1186, 0
        %1193 = vmatprep.subr.bf16.mxu0 0
        %1194 = vmatpush1.bf16.msra.mxu0 %v1191
        %1195 = vmatprep.subr.bf16.mxu0 0
        %1196 = vmatpush1.bf16.msra.mxu0 0
        %1197 = vmatprep.subr.bf16.mxu0 0
        %1198 = vmatpush1.bf16.msra.mxu0 0
        %1199 = vmatprep.subr.bf16.mxu0 0
        %1200 = vmatpush1.bf16.msra.mxu0 0
        %1201 = vmatprep.subr.bf16.mxu0 0
        %1202 = vmatpush1.bf16.msra.mxu0 0
        %1203 = vmatprep.subr.bf16.mxu0 0
        %1204 = vmatpush1.bf16.msra.mxu0 0
        %1205 = vmatprep.subr.bf16.mxu0 0
        %1206 = vmatpush1.bf16.msra.mxu0 0
        %1207 = vmatprep.subr.bf16.mxu0 0
        %1208 = vmatpush1.bf16.msra.mxu0 0
        %1209 = vmatprep.subr.bf16.mxu0 0
        %1210 = vmatpush1.bf16.msra.mxu0 0
        %1211 = vmatprep.subr.bf16.mxu0 0
        %1212 = vmatpush1.bf16.msra.mxu0 0
        %1213 = vmatprep.subr.bf16.mxu0 0
        %1214 = vmatpush1.bf16.msra.mxu0 0
        %1215 = vmatprep.subr.bf16.mxu0 0
        %1216 = vmatpush1.bf16.msra.mxu0 0
        %1217 = vmatprep.subr.bf16.mxu0 0
        %1218 = vmatpush1.bf16.msra.mxu0 0
        %1219 = vmatprep.subr.bf16.mxu0 0
        %1220 = vmatpush1.bf16.msra.mxu0 0
        %1221 = vmatprep.subr.bf16.mxu0 0
        %1222 = vmatpush1.bf16.msra.mxu0 0
        %1223 = vmatprep.subr.bf16.mxu0 0
        %1224 = vmatpush1.bf16.msra.mxu0 0
        %1225 = vmatprep.mubr.bf16.mxu0 0
        %1226 = vmatmul.mubr.bf16.gmra.mrb[0].mxu0 %v1188
        %v1227 = vpop.f32.mrb[0].mxu0
        %v1228 = vadd.f32 0.0, %v1227
        %v1229 = vpop.f32.mrb[0].mxu0
        %v1230 = vpop.f32.mrb[0].mxu0
        %v1231 = vpop.f32.mrb[0].mxu0
        %1232 = vdwg.mxu0
        %v1234 = vsel %vm749, %v1181, 0
        %v1237 = vsel %vm999, %v1185, 0
        %1239 = vmatprep.subr.bf16.mxu0 0
        %1240 = vmatpush1.bf16.msra.mxu0 %v1237
        %1241 = vmatprep.subr.bf16.mxu0 0
        %1242 = vmatpush1.bf16.msra.mxu0 0
        %1243 = vmatprep.subr.bf16.mxu0 0
        %1244 = vmatpush1.bf16.msra.mxu0 0
        %1245 = vmatprep.subr.bf16.mxu0 0
        %1246 = vmatpush1.bf16.msra.mxu0 0
        %1247 = vmatprep.subr.bf16.mxu0 0
        %1248 = vmatpush1.bf16.msra.mxu0 0
        %1249 = vmatprep.subr.bf16.mxu0 0
        %1250 = vmatpush1.bf16.msra.mxu0 0
        %1251 = vmatprep.subr.bf16.mxu0 0
        %1252 = vmatpush1.bf16.msra.mxu0 0
        %1253 = vmatprep.subr.bf16.mxu0 0
        %1254 = vmatpush1.bf16.msra.mxu0 0
        %1255 = vmatprep.subr.bf16.mxu0 0
        %1256 = vmatpush1.bf16.msra.mxu0 0
        %1257 = vmatprep.subr.bf16.mxu0 0
        %1258 = vmatpush1.bf16.msra.mxu0 0
        %1259 = vmatprep.subr.bf16.mxu0 0
        %1260 = vmatpush1.bf16.msra.mxu0 0
        %1261 = vmatprep.subr.bf16.mxu0 0
        %1262 = vmatpush1.bf16.msra.mxu0 0
        %1263 = vmatprep.subr.bf16.mxu0 0
        %1264 = vmatpush1.bf16.msra.mxu0 0
        %1265 = vmatprep.subr.bf16.mxu0 0
        %1266 = vmatpush1.bf16.msra.mxu0 0
        %1267 = vmatprep.subr.bf16.mxu0 0
        %1268 = vmatpush1.bf16.msra.mxu0 0
        %1269 = vmatprep.subr.bf16.mxu0 0
        %1270 = vmatpush1.bf16.msra.mxu0 0
        %1271 = vmatprep.mubr.bf16.mxu0 0
        %1272 = vmatmul.mubr.bf16.gmra.mrb[0].mxu0 %v1234
        %v1273 = vpop.f32.mrb[0].mxu0
        %v1274 = vadd.f32 %v1228, %v1273
        %v1275 = vpop.f32.mrb[0].mxu0
        %v1276 = vpop.f32.mrb[0].mxu0
        %v1277 = vpop.f32.mrb[0].mxu0
        %1278 = vdwg.mxu0
        %v1279 = vld [vmem:[#allocation7 + $0x8] sm:$0xf]
        %v1281 = vsel %vm749, %v1183, 0
        %v1284 = vsel %vm999, %v1279, 0
        %1286 = vmatprep.subr.bf16.mxu0 0
        %1287 = vmatpush1.bf16.msra.mxu0 %v1284
        %1288 = vmatprep.subr.bf16.mxu0 0
        %1289 = vmatpush1.bf16.msra.mxu0 0
        %1290 = vmatprep.subr.bf16.mxu0 0
        %1291 = vmatpush1.bf16.msra.mxu0 0
        %1292 = vmatprep.subr.bf16.mxu0 0
        %1293 = vmatpush1.bf16.msra.mxu0 0
        %1294 = vmatprep.subr.bf16.mxu0 0
        %1295 = vmatpush1.bf16.msra.mxu0 0
        %1296 = vmatprep.subr.bf16.mxu0 0
        %1297 = vmatpush1.bf16.msra.mxu0 0
        %1298 = vmatprep.subr.bf16.mxu0 0
        %1299 = vmatpush1.bf16.msra.mxu0 0
        %1300 = vmatprep.subr.bf16.mxu0 0
        %1301 = vmatpush1.bf16.msra.mxu0 0
        %1302 = vmatprep.subr.bf16.mxu0 0
        %1303 = vmatpush1.bf16.msra.mxu0 0
        %1304 = vmatprep.subr.bf16.mxu0 0
        %1305 = vmatpush1.bf16.msra.mxu0 0
        %1306 = vmatprep.subr.bf16.mxu0 0
        %1307 = vmatpush1.bf16.msra.mxu0 0
        %1308 = vmatprep.subr.bf16.mxu0 0
        %1309 = vmatpush1.bf16.msra.mxu0 0
        %1310 = vmatprep.subr.bf16.mxu0 0
        %1311 = vmatpush1.bf16.msra.mxu0 0
        %1312 = vmatprep.subr.bf16.mxu0 0
        %1313 = vmatpush1.bf16.msra.mxu0 0
        %1314 = vmatprep.subr.bf16.mxu0 0
        %1315 = vmatpush1.bf16.msra.mxu0 0
        %1316 = vmatprep.subr.bf16.mxu0 0
        %1317 = vmatpush1.bf16.msra.mxu0 0
        %1318 = vmatprep.mubr.bf16.mxu0 0
        %1319 = vmatmul.mubr.bf16.gmra.mrb[0].mxu0 %v1281
        %v1320 = vpop.f32.mrb[0].mxu0
        %v1321 = vadd.f32 0.0, %v1320
        %v1322 = vpop.f32.mrb[0].mxu0
        %v1323 = vpop.f32.mrb[0].mxu0
        %v1324 = vpop.f32.mrb[0].mxu0
        %1325 = vdwg.mxu0
        %v1326 = vadd.f32 %v1274, %v1321
        %v1327 = vld [vmem:[#allocation7 + $0xc] sm:$0xf]
        %v1329 = vsel %vm749, %v1184, 0
        %v1332 = vsel %vm999, %v1327, 0
        %1334 = vmatprep.subr.bf16.mxu0 0
        %1335 = vmatpush1.bf16.msra.mxu0 %v1332
        %1336 = vmatprep.subr.bf16.mxu0 0
        %1337 = vmatpush1.bf16.msra.mxu0 0
        %1338 = vmatprep.subr.bf16.mxu0 0
        %1339 = vmatpush1.bf16.msra.mxu0 0
        %1340 = vmatprep.subr.bf16.mxu0 0
        %1341 = vmatpush1.bf16.msra.mxu0 0
        %1342 = vmatprep.subr.bf16.mxu0 0
        %1343 = vmatpush1.bf16.msra.mxu0 0
        %1344 = vmatprep.subr.bf16.mxu0 0
        %1345 = vmatpush1.bf16.msra.mxu0 0
        %1346 = vmatprep.subr.bf16.mxu0 0
        %1347 = vmatpush1.bf16.msra.mxu0 0
        %1348 = vmatprep.subr.bf16.mxu0 0
        %1349 = vmatpush1.bf16.msra.mxu0 0
        %1350 = vmatprep.subr.bf16.mxu0 0
        %1351 = vmatpush1.bf16.msra.mxu0 0
        %1352 = vmatprep.subr.bf16.mxu0 0
        %1353 = vmatpush1.bf16.msra.mxu0 0
        %1354 = vmatprep.subr.bf16.mxu0 0
        %1355 = vmatpush1.bf16.msra.mxu0 0
        %1356 = vmatprep.subr.bf16.mxu0 0
        %1357 = vmatpush1.bf16.msra.mxu0 0
        %1358 = vmatprep.subr.bf16.mxu0 0
        %1359 = vmatpush1.bf16.msra.mxu0 0
        %1360 = vmatprep.subr.bf16.mxu0 0
        %1361 = vmatpush1.bf16.msra.mxu0 0
        %1362 = vmatprep.subr.bf16.mxu0 0
        %1363 = vmatpush1.bf16.msra.mxu0 0
        %1364 = vmatprep.subr.bf16.mxu0 0
        %1365 = vmatpush1.bf16.msra.mxu0 0
        %1366 = vmatprep.mubr.bf16.mxu0 0
        %1367 = vmatmul.mubr.bf16.gmra.mrb[0].mxu0 %v1329
        %v1368 = vpop.f32.mrb[0].mxu0
        %v1369 = vadd.f32 0.0, %v1368
        %v1370 = vpop.f32.mrb[0].mxu0
        %v1371 = vpop.f32.mrb[0].mxu0
        %v1372 = vpop.f32.mrb[0].mxu0
        %1373 = vdwg.mxu0
        %v1374 = vadd.f32 %v1326, %v1369
        %v1375 = vadd.f32 %v548, %v1374
        %v1376 = vld [vmem:[%s10] sm:$0x1]
        %v1377 = vld [vmem:[%s11] sm:$0x1]
        %v1378 = vsel %vm566, %v1375, 0.0
        %1379 = vadd.xlane.f32.xlu0 %v1378
        %v1380 = vpop.xlane.xlu0 %1379
        %v1381 = vrcp.pop 32.0
        %v1382 = vmul.f32 %v1380, %v1381
        %v1383 = vsub.f32 %v1375, %v1382
        %v1384 = vmul.f32 %v1383, %v1383
        %v1385 = vsel %vm566, %v1384, 0.0
        %1386 = vadd.xlane.f32.xlu0 %v1385
        %v1387 = vpop.xlane.xlu0 %1386
        %v1388 = vmul.f32 %v1387, %v1381
        %v1389 = vadd.f32 %v1388, 1e-05
        %v1390 = vrsqrt.pop %v1389
        %v1391 = vmul.f32 %v1383, %v1390
        %v1393 = vlaneseq
        %v1394 = vshrl.u32 %v1393, 7
        %v1395 = vsub.s32 0, %v1394
        %v1396 = vrot.slane %v1376, %v1395
        %v1398 = vmul.f32 %v1391, %v1396
        %v1400 = vlaneseq
        %v1401 = vshrl.u32 %v1400, 7
        %v1402 = vsub.s32 0, %v1401
        %v1403 = vrot.slane %v1377, %v1402
        %v1405 = vadd.f32 %v1398, %v1403
        %v1406 = vpack.c.bf16 %v1405, %v1405
        %v1407 = vld [vmem:[#allocation8] sm:$0xf]
        %v1408 = vld [vmem:[#allocation8 + $0x4] sm:$0xf]
        %v1409 = vld [vmem:[#allocation8 + $0x8] sm:$0xf]
        %v1410 = vld [vmem:[#allocation8 + $0xc] sm:$0xf]
        %v1411 = vld [vmem:[%s7] sm:$0x1]
        %v1413 = vlaneseq
        %v1414 = vshrl.u32 %v1413, 7
        %v1415 = vsub.s32 0, %v1414
        %v1416 = vrot.slane %v1411, %v1415
        %v1422 = vunpack.c.l.b16 %v1407
        %v1423 = vunpack.c.l.b16 %v1408
        %v1424 = vunpack.c.l.b16 %v1409
        %v1425 = vunpack.c.l.b16 %v1410
        %v1426 = vpack.c.b16 %v1423, %v1422
        %v1427 = vpack.c.b16 %v1425, %v1424
        %v1431 = vsel %vm566, %v1406, 0
        %1433 = vmatprep.subr.bf16.mxu0 0
        %1434 = vmatpush1.bf16.msra.mxu0 %v1426
        %1435 = vmatprep.subr.bf16.mxu0 0
        %1436 = vmatpush1.bf16.msra.mxu0 %v1427
        %1437 = vmatprep.subr.bf16.mxu0 0
        %1438 = vmatpush1.bf16.msra.mxu0 0
        %1439 = vmatprep.subr.bf16.mxu0 0
        %1440 = vmatpush1.bf16.msra.mxu0 0
        %1441 = vmatprep.subr.bf16.mxu0 0
        %1442 = vmatpush1.bf16.msra.mxu0 0
        %1443 = vmatprep.subr.bf16.mxu0 0
        %1444 = vmatpush1.bf16.msra.mxu0 0
        %1445 = vmatprep.subr.bf16.mxu0 0
        %1446 = vmatpush1.bf16.msra.mxu0 0
        %1447 = vmatprep.subr.bf16.mxu0 0
        %1448 = vmatpush1.bf16.msra.mxu0 0
        %1449 = vmatprep.subr.bf16.mxu0 0
        %1450 = vmatpush1.bf16.msra.mxu0 0
        %1451 = vmatprep.subr.bf16.mxu0 0
        %1452 = vmatpush1.bf16.msra.mxu0 0
        %1453 = vmatprep.subr.bf16.mxu0 0
        %1454 = vmatpush1.bf16.msra.mxu0 0
        %1455 = vmatprep.subr.bf16.mxu0 0
        %1456 = vmatpush1.bf16.msra.mxu0 0
        %1457 = vmatprep.subr.bf16.mxu0 0
        %1458 = vmatpush1.bf16.msra.mxu0 0
        %1459 = vmatprep.subr.bf16.mxu0 0
        %1460 = vmatpush1.bf16.msra.mxu0 0
        %1461 = vmatprep.subr.bf16.mxu0 0
        %1462 = vmatpush1.bf16.msra.mxu0 0
        %1463 = vmatprep.subr.bf16.mxu0 0
        %1464 = vmatpush1.bf16.msra.mxu0 0
        %1465 = vmatprep.mubr.bf16.mxu0 0
        %1466 = vmatmul.mubr.bf16.gmra.mrb[0].mxu0 %v1431
        %v1467 = vpop.f32.mrb[0].mxu0
        %v1468 = vadd.f32 %v1416, %v1467
        %v1469 = vpop.f32.mrb[0].mxu0
        %v1470 = vpop.f32.mrb[0].mxu0
        %v1471 = vpop.f32.mrb[0].mxu0
        %1472 = vdwg.mxu0
        %v1473 = vmax.f32 %v1468, 0.0
        %v1474 = vpack.c.bf16 %v1473, %v1473
        %v1475 = vld [vmem:[%s8] sm:$0xf]
        %v1476 = vld [vmem:[%s8 + $0x4] sm:$0xf]
        %v1477 = vld [vmem:[%s8 + $0x8] sm:$0xf]
        %v1478 = vld [vmem:[%s8 + $0xc] sm:$0xf]
        %v1479 = vld [vmem:[%s8 + $0x10] sm:$0xf]
        %v1480 = vld [vmem:[%s8 + $0x14] sm:$0xf]
        %v1481 = vld [vmem:[%s8 + $0x18] sm:$0xf]
        %v1482 = vld [vmem:[%s8 + $0x1c] sm:$0xf]
        %v1483 = vld [vmem:[%s9] sm:$0x1]
        %v1485 = vlaneseq
        %v1486 = vshrl.u32 %v1485, 7
        %v1487 = vsub.s32 0, %v1486
        %v1488 = vrot.slane %v1483, %v1487
        %v1498 = vunpack.c.l.b16 %v1475
        %v1499 = vunpack.c.l.b16 %v1476
        %v1500 = vunpack.c.l.b16 %v1477
        %v1501 = vunpack.c.l.b16 %v1478
        %v1502 = vunpack.c.l.b16 %v1479
        %v1503 = vunpack.c.l.b16 %v1480
        %v1504 = vunpack.c.l.b16 %v1481
        %v1505 = vunpack.c.l.b16 %v1482
        %v1506 = vpack.c.b16 %v1499, %v1498
        %v1507 = vpack.c.b16 %v1501, %v1500
        %v1508 = vpack.c.b16 %v1503, %v1502
        %v1509 = vpack.c.b16 %v1505, %v1504
        %vm1514 = vcmask 523264
        %v1516 = vsel %vm1514, %v1474, 0
        %1518 = vmatprep.subr.bf16.mxu0 0
        %1519 = vmatpush1.bf16.msra.mxu0 %v1506
        %1520 = vmatprep.subr.bf16.mxu0 0
        %1521 = vmatpush1.bf16.msra.mxu0 %v1507
        %1522 = vmatprep.subr.bf16.mxu0 0
        %1523 = vmatpush1.bf16.msra.mxu0 %v1508
        %1524 = vmatprep.subr.bf16.mxu0 0
        %1525 = vmatpush1.bf16.msra.mxu0 %v1509
        %1526 = vmatprep.subr.bf16.mxu0 0
        %1527 = vmatpush1.bf16.msra.mxu0 0
        %1528 = vmatprep.subr.bf16.mxu0 0
        %1529 = vmatpush1.bf16.msra.mxu0 0
        %1530 = vmatprep.subr.bf16.mxu0 0
        %1531 = vmatpush1.bf16.msra.mxu0 0
        %1532 = vmatprep.subr.bf16.mxu0 0
        %1533 = vmatpush1.bf16.msra.mxu0 0
        %1534 = vmatprep.subr.bf16.mxu0 0
        %1535 = vmatpush1.bf16.msra.mxu0 0
        %1536 = vmatprep.subr.bf16.mxu0 0
        %1537 = vmatpush1.bf16.msra.mxu0 0
        %1538 = vmatprep.subr.bf16.mxu0 0
        %1539 = vmatpush1.bf16.msra.mxu0 0
        %1540 = vmatprep.subr.bf16.mxu0 0
        %1541 = vmatpush1.bf16.msra.mxu0 0
        %1542 = vmatprep.subr.bf16.mxu0 0
        %1543 = vmatpush1.bf16.msra.mxu0 0
        %1544 = vmatprep.subr.bf16.mxu0 0
        %1545 = vmatpush1.bf16.msra.mxu0 0
        %1546 = vmatprep.subr.bf16.mxu0 0
        %1547 = vmatpush1.bf16.msra.mxu0 0
        %1548 = vmatprep.subr.bf16.mxu0 0
        %1549 = vmatpush1.bf16.msra.mxu0 0
        %1550 = vmatprep.mubr.bf16.mxu0 0
        %1551 = vmatmul.mubr.bf16.gmra.mrb[0].mxu0 %v1516
        %v1552 = vpop.f32.mrb[0].mxu0
        %v1553 = vadd.f32 %v1488, %v1552
        %v1554 = vpop.f32.mrb[0].mxu0
        %v1555 = vpop.f32.mrb[0].mxu0
        %v1556 = vpop.f32.mrb[0].mxu0
        %1557 = vdwg.mxu0
        %v1558 = vadd.f32 %v1405, %v1553
        %v1559 = vld [vmem:[%s12] sm:$0x1]
        %v1560 = vld [vmem:[%s13] sm:$0x1]
        %v1561 = vsel %vm566, %v1558, 0.0
        %1562 = vadd.xlane.f32.xlu0 %v1561
        %v1563 = vpop.xlane.xlu0 %1562
        %v1564 = vmul.f32 %v1563, %v1381
        %v1565 = vsub.f32 %v1558, %v1564
        %v1566 = vmul.f32 %v1565, %v1565
        %v1567 = vsel %vm566, %v1566, 0.0
        %1568 = vadd.xlane.f32.xlu0 %v1567
        %v1569 = vpop.xlane.xlu0 %1568
        %v1570 = vmul.f32 %v1569, %v1381
        %v1571 = vadd.f32 %v1570, 1e-05
        %v1572 = vrsqrt.pop %v1571
        %v1573 = vmul.f32 %v1565, %v1572
        %v1575 = vlaneseq
        %v1576 = vshrl.u32 %v1575, 7
        %v1577 = vsub.s32 0, %v1576
        %v1578 = vrot.slane %v1559, %v1577
        %v1580 = vmul.f32 %v1573, %v1578
        %v1582 = vlaneseq
        %v1583 = vshrl.u32 %v1582, 7
        %v1584 = vsub.s32 0, %v1583
        %v1585 = vrot.slane %v1560, %v1584
        %v1587 = vadd.f32 %v1580, %v1585
        %1588 = vst.msk [vmem:[%s545] sm:$0xff] %vm566, %v1587
        %s1589 = sand.u32 %s347, 1
        %s1590 = scalar_lea.sflag [#allocation4], %s1589
        %s1591 = sand.u32 %s347, 1
        %s1592 = smul.addr %s1591, 8
        %s1593 = scalar_lea.vmem [#allocation10], %s1592
        // Predicated region
        $region93: #{tpu_custom_call.1} parent=75 // pred_check
          %p1594 = pneg %p357
        $region94: #{tpu_custom_call.1} parent=75 // pred_check_branch
          %1596 = sbr.rel (%p1594) target = $region96
        $region95: #{tpu_custom_call.1} parent=75 // pred_region
          %s1598 = ssub.s32 128, 128
          %1599 = vsyncadd %s1590, %s1598
          %s1600 = smul.addr %s35, 128
          %s1601 = scalar_lea.hbm %s14, %s1600
          %s1603 = sshll.u32 %s1593, 4
          %s1604 = int_to_ptr.vmem [resolvable:$true] %s1603
          %1606 = dma.vmem_to_hbm [thread:$0]  %s1604, 128, %s1601, %s1590
        $region96: #{tpu_custom_call.1} parent=75 // pred_fallthru
          _
      $region76: #{tpu_custom_call.1} parent=5 // pred_fallthru
        _
      %p1607 = scmp.le.s32.totalorder 2, %s30
      // Predicated region
      $region97: #{tpu_custom_call.1} parent=5 // pred_check
        %p1608 = pneg %p1607
      $region98: #{tpu_custom_call.1} parent=5 // pred_check_branch
        %1610 = sbr.rel (%p1608) target = $region100
      $region99: #{tpu_custom_call.1} parent=5 // pred_region
        %s1611 = ssub.s32 %s30, 2
        // Predicated region
        $region101: #{tpu_custom_call.1} parent=99 // pred_check
          %p1612 = pneg %p363
        $region102: #{tpu_custom_call.1} parent=99 // pred_check_branch
          %1614 = sbr.rel (%p1612) target = $region104
        $region103: #{tpu_custom_call.1} parent=99 // pred_region
          %s1615 = sand.u32 %s348, 1
          %s1616 = scalar_lea.sflag [#allocation4], %s1615
          %s1617 = sand.u32 %s348, 1
          %s1618 = smul.addr %s1617, 8
          %s1619 = scalar_lea.vmem [#allocation10], %s1618
          %1620 = dma.done %s1616, 128
        $region104: #{tpu_custom_call.1} parent=99 // pred_fallthru
          _
      $region100: #{tpu_custom_call.1} parent=5 // pred_fallthru
        _
    $region6: #{tpu_custom_call.1} parent=1 // loop_footer
      %s34 = sadd.s32 1, %s30
    $region7: #{tpu_custom_call.1} parent=1 // loop_footer_branch
      %29 = sbr.rel target = $region3
    $region8: #{tpu_custom_call.1} parent=1 // loop_exit
      _
    %1621 = vsyncpa [#allocation3], 1
    %s1622 = scalar_lea.sflag [#allocation3], 1
    %1623 = vsyncpa %s1622, 1
    %1624 = vsyncpa [#allocation6], 1
    %s1625 = scalar_lea.sflag [#allocation6], 1
    %1626 = vsyncpa %s1625, 1
    %1627 = vsyncpa [#allocation9], 1
    %1628 = vsyncpa [#allocation4], 1
    %s1629 = scalar_lea.sflag [#allocation4], 1
    %1630 = vsyncpa %s1629, 1

// kernel: tpu_custom_call.1
$region0: #{tpu_custom_call.1}
  #allocation0 [shape = 'u32[]', space=smem, size = 0x4, offset = 0x4, fixed_abs, tag = 'smem constant byte address 0x4 - core index']
  #allocation1 [shape = 'u32[144,128]{1,0:T(1,128)}', space=vmem, size = 0x12000, scoped, tag = 'internal scratch']
  %s0 = inlined_call_operand.hbm [shape: f32[2,1,8], index: 0, kind: input, shape index: {}]
  %s1 = inlined_call_operand.hbm [shape: bf16[2,8,32], index: 1, kind: input, shape index: {}]
  %s2 = inlined_call_operand.vmem [shape: bf16[32,32], index: 2, kind: input, shape index: {}]
  %s3 = inlined_call_operand.vmem [shape: bf16[32,32], index: 3, kind: input, shape index: {}]
  %s4 = inlined_call_operand.vmem [shape: bf16[32,32], index: 4, kind: input, shape index: {}]
  %s5 = inlined_call_operand.hbm [shape: bf16[32,32], index: 5, kind: input, shape index: {}]
  %s6 = inlined_call_operand.hbm [shape: bf16[32,64], index: 6, kind: input, shape index: {}]
  %s7 = inlined_call_operand.vmem [shape: f32[1,64], index: 7, kind: input, shape index: {}]
  %s8 = inlined_call_operand.vmem [shape: bf16[64,32], index: 8, kind: input, shape index: {}]
  %s9 = inlined_call_operand.vmem [shape: f32[1,32], index: 9, kind: input, shape index: {}]
  %s10 = inlined_call_operand.vmem [shape: f32[1,32], index: 10, kind: input, shape index: {}]
  %s11 = inlined_call_operand.vmem [shape: f32[1,32], index: 11, kind: input, shape index: {}]
  %s12 = inlined_call_operand.vmem [shape: f32[1,32], index: 12, kind: input, shape index: {}]
  %s13 = inlined_call_operand.vmem [shape: f32[1,32], index: 13, kind: input, shape index: {}]
  %s14 = inlined_call_operand.hbm [shape: f32[2,8,32], index: 14, kind: output, shape index: {}]
  %s15 = sld [smem:[#allocation0]]
  $region105: #{tpu_custom_call.1} parent=0
    _
  %s17 = ssub.s32 1, %s15
  %s18 = scalar_select 0, %s17, %s15
  $region1: #{tpu_custom_call.1} parent=0
    #allocation2 [shape = 'u8[1024]{0}', space=vmem, size = 0x400, scoped, tag = 'input window, operand 0']
    #allocation3 [shape = 's32[2]{0}', space=sflag, size = 0x8, scoped, tag = 'scoped memory for tpu_custom_call.1']
    #allocation4 [shape = 's32[2]{0}', space=sflag, size = 0x8, scoped, tag = 'scoped memory for tpu_custom_call.1']
    #allocation5 [shape = 'u8[4096]{0}', space=vmem, size = 0x1000, scoped, tag = 'input window, operand 1']
    #allocation6 [shape = 's32[2]{0}', space=sflag, size = 0x8, scoped, tag = 'scoped memory for tpu_custom_call.1']
    #allocation7 [shape = 'u8[8192]{0}', space=vmem, size = 0x2000, scoped, tag = 'input window, operand 5, single buffered']
    #allocation8 [shape = 'u8[8192]{0}', space=vmem, size = 0x2000, scoped, tag = 'input window, operand 6, single buffered']
    #allocation9 [shape = 's32[1]{0}', space=sflag, size = 0x4, scoped, tag = 'scoped memory for tpu_custom_call.1']
    #allocation10 [shape = 'u8[8192]{0}', space=vmem, size = 0x2000, scoped, tag = 'output window, operand 0']
    %19 = vsyncpa [#allocation3], 0
    %s20 = scalar_lea.sflag [#allocation3], 1
    %21 = vsyncpa %s20, 0
    %22 = vsyncpa [#allocation6], 0
    %s23 = scalar_lea.sflag [#allocation6], 1
    %24 = vsyncpa %s23, 0
    %25 = vsyncpa [#allocation9], 0
    %26 = vsyncpa [#allocation4], 0
    %s27 = scalar_lea.sflag [#allocation4], 1
    %28 = vsyncpa %s27, 0
    loop: start=0, step=1, limit=4
    $region2: #{tpu_custom_call.1} parent=1 // loop_pre_header
      _
    $region3: #{tpu_custom_call.1} parent=1 // loop_header
      %s30 = sphi 0, %s34
      %p31 = scmp.ge.s32.totalorder %s30, 4
      %s40 = sphi 0, %s42
      %s43 = sphi 0, %s40
      %s44 = sphi 0, %s43
      %s60 = sphi 0, %s44
      %s66 = sphi 0, %s68
      %s69 = sphi 0, %s66
      %s70 = sphi 0, %s69
      %s86 = sphi 0, %s70
      %s90 = sphi 0, %s90
      %s92 = sphi 0, %s90
      %s93 = sphi 0, %s92
      %s107 = sphi 0, %s93
      %s111 = sphi 0, %s111
      %s113 = sphi 0, %s111
      %s114 = sphi 0, %s113
      %s128 = sphi 0, %s114
      %s132 = sphi 0, %s132
      %s134 = sphi 0, %s132
      %s135 = sphi 0, %s134
      %s149 = sphi 0, %s135
      %s153 = sphi 0, %s153
      %s155 = sphi 0, %s153
      %s156 = sphi 0, %s155
      %s170 = sphi 0, %s156
      %s174 = sphi 0, %s174
      %s176 = sphi 0, %s174
      %s177 = sphi 0, %s176
      %s191 = sphi 0, %s177
      %s195 = sphi 0, %s195
      %s197 = sphi 0, %s195
      %s198 = sphi 0, %s197
      %s212 = sphi 0, %s198
      %s216 = sphi 0, %s216
      %s218 = sphi 0, %s216
      %s219 = sphi 0, %s218
      %s233 = sphi 0, %s219
      %s237 = sphi 0, %s237
      %s239 = sphi 0, %s237
      %s240 = sphi 0, %s239
      %s254 = sphi 0, %s240
      %s258 = sphi 0, %s258
      %s260 = sphi 0, %s258
      %s261 = sphi 0, %s260
      %s275 = sphi 0, %s261
      %s279 = sphi 0, %s279
      %s281 = sphi 0, %s279
      %s282 = sphi 0, %s281
      %s296 = sphi 0, %s282
      %s300 = sphi 0, %s300
      %s302 = sphi 0, %s300
      %s303 = sphi 0, %s302
      %s317 = sphi 0, %s303
      %s321 = sphi 0, %s321
      %s323 = sphi 0, %s321
      %s324 = sphi 0, %s323
      %s338 = sphi 0, %s324
      %s344 = sphi 0, %s346
      %s347 = sphi 0, %s344
      %s348 = sphi 0, %s347
      %s364 = sphi 0, %s348
    $region4: #{tpu_custom_call.1} parent=1 // loop_header_branch
      %33 = sbr.rel (%p31) target = $region8
    $region5: #{tpu_custom_call.1} parent=1 // loop_body
      %s35 = ssub.s32 %s30, 1
      %s36 = ssub.s32 %s30, 2
      %s37 = sadd.s32 %s30, 1
      %s38 = ssub.s32 %s30, %s37
      %p39 = scmp.eq.s32.totalorder %s38, 0
      %s41 = sadd.s32 %s40, 1
      %s42 = scalar_select %p39, %s40, %s41
      %p45 = pneg %p39
      %p46 = scmp.eq.s32.totalorder %s30, 1
      %p47 = por %p45, %p46
      %p48 = scmp.ne.s32.totalorder %s40, %s43
      %p49 = scmp.eq.s32.totalorder %s30, 0
      %p50 = por %p48, %p49
      %p51 = scmp.ne.s32.totalorder %s40, %s43
      %p52 = scmp.eq.s32.totalorder %s35, 1
      %p53 = por %p51, %p52
      %p54 = scmp.ne.s32.totalorder %s43, %s44
      %p55 = scmp.eq.s32.totalorder %s35, 0
      %p56 = por %p54, %p55
      %p57 = scmp.ne.s32.totalorder %s43, %s44
      %p58 = scmp.eq.s32.totalorder %s36, 1
      %p59 = por %p57, %p58
      %p61 = scmp.ne.s32.totalorder %s44, %s60
      %p62 = scmp.eq.s32.totalorder %s36, 0
      %p63 = por %p61, %p62
      %s64 = ssub.s32 %s30, %s37
      %p65 = scmp.eq.s32.totalorder %s64, 0
      %s67 = sadd.s32 %s66, 1
      %s68 = scalar_select %p65, %s66, %s67
      %p71 = pneg %p65
      %p72 = scmp.eq.s32.totalorder %s30, 1
      %p73 = por %p71, %p72
      %p74 = scmp.ne.s32.totalorder %s66, %s69
      %p75 = scmp.eq.s32.totalorder %s30, 0
      %p76 = por %p74, %p75
      %p77 = scmp.ne.s32.totalorder %s66, %s69
      %p78 = scmp.eq.s32.totalorder %s35, 1
      %p79 = por %p77, %p78
      %p80 = scmp.ne.s32.totalorder %s69, %s70
      %p81 = scmp.eq.s32.totalorder %s35, 0
      %p82 = por %p80, %p81
      %p83 = scmp.ne.s32.totalorder %s69, %s70
      %p84 = scmp.eq.s32.totalorder %s36, 1
      %p85 = por %p83, %p84
      %p87 = scmp.ne.s32.totalorder %s70, %s86
      %p88 = scmp.eq.s32.totalorder %s36, 0
      %p89 = por %p87, %p88
      %s91 = sadd.s32 %s90, 1
      %p94 = scmp.eq.s32.totalorder %s30, 1
      %p95 = scmp.ne.s32.totalorder %s90, %s92
      %p96 = scmp.eq.s32.totalorder %s30, 0
      %p97 = por %p95, %p96
      %p98 = scmp.ne.s32.totalorder %s90, %s92
      %p99 = scmp.eq.s32.totalorder %s35, 1
      %p100 = por %p98, %p99
      %p101 = scmp.ne.s32.totalorder %s92, %s93
      %p102 = scmp.eq.s32.totalorder %s35, 0
      %p103 = por %p101, %p102
      %p104 = scmp.ne.s32.totalorder %s92, %s93
      %p105 = scmp.eq.s32.totalorder %s36, 1
      %p106 = por %p104, %p105
      %p108 = scmp.ne.s32.totalorder %s93, %s107
      %p109 = scmp.eq.s32.totalorder %s36, 0
      %p110 = por %p108, %p109
      %s112 = sadd.s32 %s111, 1
      %p115 = scmp.eq.s32.totalorder %s30, 1
      %p116 = scmp.ne.s32.totalorder %s111, %s113
      %p117 = scmp.eq.s32.totalorder %s30, 0
      %p118 = por %p116, %p117
      %p119 = scmp.ne.s32.totalorder %s111, %s113
      %p120 = scmp.eq.s32.totalorder %s35, 1
      %p121 = por %p119, %p120
      %p122 = scmp.ne.s32.totalorder %s113, %s114
      %p123 = scmp.eq.s32.totalorder %s35, 0
      %p124 = por %p122, %p123
      %p125 = scmp.ne.s32.totalorder %s113, %s114
      %p126 = scmp.eq.s32.totalorder %s36, 1
      %p127 = por %p125, %p126
      %p129 = scmp.ne.s32.totalorder %s114, %s128
      %p130 = scmp.eq.s32.totalorder %s36, 0
      %p131 = por %p129, %p130
      %s133 = sadd.s32 %s132, 1
      %p136 = scmp.eq.s32.totalorder %s30, 1
      %p137 = scmp.ne.s32.totalorder %s132, %s134
      %p138 = scmp.eq.s32.totalorder %s30, 0
      %p139 = por %p137, %p138
      %p140 = scmp.ne.s32.totalorder %s132, %s134
      %p141 = scmp.eq.s32.totalorder %s35, 1
      %p142 = por %p140, %p141
      %p143 = scmp.ne.s32.totalorder %s134, %s135
      %p144 = scmp.eq.s32.totalorder %s35, 0
      %p145 = por %p143, %p144
      %p146 = scmp.ne.s32.totalorder %s134, %s135
      %p147 = scmp.eq.s32.totalorder %s36, 1
      %p148 = por %p146, %p147
      %p150 = scmp.ne.s32.totalorder %s135, %s149
      %p151 = scmp.eq.s32.totalorder %s36, 0
      %p152 = por %p150, %p151
      %s154 = sadd.s32 %s153, 1
      %p157 = scmp.eq.s32.totalorder %s30, 1
      %p158 = scmp.ne.s32.totalorder %s153, %s155
      %p159 = scmp.eq.s32.totalorder %s30, 0
      %p160 = por %p158, %p159
      %p161 = scmp.ne.s32.totalorder %s153, %s155
      %p162 = scmp.eq.s32.totalorder %s35, 1
      %p163 = por %p161, %p162
      %p164 = scmp.ne.s32.totalorder %s155, %s156
      %p165 = scmp.eq.s32.totalorder %s35, 0
      %p166 = por %p164, %p165
      %p167 = scmp.ne.s32.totalorder %s155, %s156
      %p168 = scmp.eq.s32.totalorder %s36, 1
      %p169 = por %p167, %p168
      %p171 = scmp.ne.s32.totalorder %s156, %s170
      %p172 = scmp.eq.s32.totalorder %s36, 0
      %p173 = por %p171, %p172
      %s175 = sadd.s32 %s174, 1
      %p178 = scmp.eq.s32.totalorder %s30, 1
      %p179 = scmp.ne.s32.totalorder %s174, %s176
      %p180 = scmp.eq.s32.totalorder %s30, 0
      %p181 = por %p179, %p180
      %p182 = scmp.ne.s32.totalorder %s174, %s176
      %p183 = scmp.eq.s32.totalorder %s35, 1
      %p184 = por %p182, %p183
      %p185 = scmp.ne.s32.totalorder %s176, %s177
      %p186 = scmp.eq.s32.totalorder %s35, 0
      %p187 = por %p185, %p186
      %p188 = scmp.ne.s32.totalorder %s176, %s177
      %p189 = scmp.eq.s32.totalorder %s36, 1
      %p190 = por %p188, %p189
      %p192 = scmp.ne.s32.totalorder %s177, %s191
      %p193 = scmp.eq.s32.totalorder %s36, 0
      %p194 = por %p192, %p193
      %s196 = sadd.s32 %s195, 1
      %p199 = scmp.eq.s32.totalorder %s30, 1
      %p200 = scmp.ne.s32.totalorder %s195, %s197
      %p201 = scmp.eq.s32.totalorder %s30, 0
      %p202 = por %p200, %p201
      %p203 = scmp.ne.s32.totalorder %s195, %s197
      %p204 = scmp.eq.s32.totalorder %s35, 1
      %p205 = por %p203, %p204
      %p206 = scmp.ne.s32.totalorder %s197, %s198
      %p207 = scmp.eq.s32.totalorder %s35, 0
      %p208 = por %p206, %p207
      %p209 = scmp.ne.s32.totalorder %s197, %s198
      %p210 = scmp.eq.s32.totalorder %s36, 1
      %p211 = por %p209, %p210
      %p213 = scmp.ne.s32.totalorder %s198, %s212
      %p214 = scmp.eq.s32.totalorder %s36, 0
      %p215 = por %p213, %p214
      %s217 = sadd.s32 %s216, 1
      %p220 = scmp.eq.s32.totalorder %s30, 1
      %p221 = scmp.ne.s32.totalorder %s216, %s218
      %p222 = scmp.eq.s32.totalorder %s30, 0
      %p223 = por %p221, %p222
      %p224 = scmp.ne.s32.totalorder %s216, %s218
      %p225 = scmp.eq.s32.totalorder %s35, 1
      %p226 = por %p224, %p225
      %p227 = scmp.ne.s32.totalorder %s218, %s219
      %p228 = scmp.eq.s32.totalorder %s35, 0
      %p229 = por %p227, %p228
      %p230 = scmp.ne.s32.totalorder %s218, %s219
      %p231 = scmp.eq.s32.totalorder %s36, 1
      %p232 = por %p230, %p231
      %p234 = scmp.ne.s32.totalorder %s219, %s233
      %p235 = scmp.eq.s32.totalorder %s36, 0
      %p236 = por %p234, %p235
      %s238 = sadd.s32 %s237, 1
      %p241 = scmp.eq.s32.totalorder %s30, 1
      %p242 = scmp.ne.s32.totalorder %s237, %s239
      %p243 = scmp.eq.s32.totalorder %s30, 0
      %p244 = por %p242, %p243
      %p245 = scmp.ne.s32.totalorder %s237, %s239
      %p246 = scmp.eq.s32.totalorder %s35, 1
      %p247 = por %p245, %p246
      %p248 = scmp.ne.s32.totalorder %s239, %s240
      %p249 = scmp.eq.s32.totalorder %s35, 0
      %p250 = por %p248, %p249
      %p251 = scmp.ne.s32.totalorder %s239, %s240
      %p252 = scmp.eq.s32.totalorder %s36, 1
      %p253 = por %p251, %p252
      %p255 = scmp.ne.s32.totalorder %s240, %s254
      %p256 = scmp.eq.s32.totalorder %s36, 0
      %p257 = por %p255, %p256
      %s259 = sadd.s32 %s258, 1
      %p262 = scmp.eq.s32.totalorder %s30, 1
      %p263 = scmp.ne.s32.totalorder %s258, %s260
      %p264 = scmp.eq.s32.totalorder %s30, 0
      %p265 = por %p263, %p264
      %p266 = scmp.ne.s32.totalorder %s258, %s260
      %p267 = scmp.eq.s32.totalorder %s35, 1
      %p268 = por %p266, %p267
      %p269 = scmp.ne.s32.totalorder %s260, %s261
      %p270 = scmp.eq.s32.totalorder %s35, 0
      %p271 = por %p269, %p270
      %p272 = scmp.ne.s32.totalorder %s260, %s261
      %p273 = scmp.eq.s32.totalorder %s36, 1
      %p274 = por %p272, %p273
      %p276 = scmp.ne.s32.totalorder %s261, %s275
      %p277 = scmp.eq.s32.totalorder %s36, 0
      %p278 = por %p276, %p277
      %s280 = sadd.s32 %s279, 1
      %p283 = scmp.eq.s32.totalorder %s30, 1
      %p284 = scmp.ne.s32.totalorder %s279, %s281
      %p285 = scmp.eq.s32.totalorder %s30, 0
      %p286 = por %p284, %p285
      %p287 = scmp.ne.s32.totalorder %s279, %s281
      %p288 = scmp.eq.s32.totalorder %s35, 1
      %p289 = por %p287, %p288
      %p290 = scmp.ne.s32.totalorder %s281, %s282
      %p291 = scmp.eq.s32.totalorder %s35, 0
      %p292 = por %p290, %p291
      %p293 = scmp.ne.s32.totalorder %s281, %s282
      %p294 = scmp.eq.s32.totalorder %s36, 1
      %p295 = por %p293, %p294
      %p297 = scmp.ne.s32.totalorder %s282, %s296
      %p298 = scmp.eq.s32.totalorder %s36, 0
      %p299 = por %p297, %p298
      %s301 = sadd.s32 %s300, 1
      %p304 = scmp.eq.s32.totalorder %s30, 1
      %p305 = scmp.ne.s32.totalorder %s300, %s302
      %p306 = scmp.eq.s32.totalorder %s30, 0
      %p307 = por %p305, %p306
      %p308 = scmp.ne.s32.totalorder %s300, %s302
      %p309 = scmp.eq.s32.totalorder %s35, 1
      %p310 = por %p308, %p309
      %p311 = scmp.ne.s32.totalorder %s302, %s303
      %p312 = scmp.eq.s32.totalorder %s35, 0
      %p313 = por %p311, %p312
      %p314 = scmp.ne.s32.totalorder %s302, %s303
      %p315 = scmp.eq.s32.totalorder %s36, 1
      %p316 = por %p314, %p315
      %p318 = scmp.ne.s32.totalorder %s303, %s317
      %p319 = scmp.eq.s32.totalorder %s36, 0
      %p320 = por %p318, %p319
      %s322 = sadd.s32 %s321, 1
      %p325 = scmp.eq.s32.totalorder %s30, 1
      %p326 = scmp.ne.s32.totalorder %s321, %s323
      %p327 = scmp.eq.s32.totalorder %s30, 0
      %p328 = por %p326, %p327
      %p329 = scmp.ne.s32.totalorder %s321, %s323
      %p330 = scmp.eq.s32.totalorder %s35, 1
      %p331 = por %p329, %p330
      %p332 = scmp.ne.s32.totalorder %s323, %s324
      %p333 = scmp.eq.s32.totalorder %s35, 0
      %p334 = por %p332, %p333
      %p335 = scmp.ne.s32.totalorder %s323, %s324
      %p336 = scmp.eq.s32.totalorder %s36, 1
      %p337 = por %p335, %p336
      %p339 = scmp.ne.s32.totalorder %s324, %s338
      %p340 = scmp.eq.s32.totalorder %s36, 0
      %p341 = por %p339, %p340
      %s342 = ssub.s32 %s30, %s37
      %p343 = scmp.eq.s32.totalorder %s342, 0
      %s345 = sadd.s32 %s344, 1
      %s346 = scalar_select %p343, %s344, %s345
      %p349 = pneg %p343
      %p350 = scmp.eq.s32.totalorder %s30, 1
      %p351 = por %p349, %p350
      %p352 = scmp.ne.s32.totalorder %s344, %s347
      %p353 = scmp.eq.s32.totalorder %s30, 0
      %p354 = por %p352, %p353
      %p355 = scmp.ne.s32.totalorder %s344, %s347
      %p356 = scmp.eq.s32.totalorder %s35, 1
      %p357 = por %p355, %p356
      %p358 = scmp.ne.s32.totalorder %s347, %s348
      %p359 = scmp.eq.s32.totalorder %s35, 0
      %p360 = por %p358, %p359
      %p361 = scmp.ne.s32.totalorder %s347, %s348
      %p362 = scmp.eq.s32.totalorder %s36, 1
      %p363 = por %p361, %p362
      %p365 = scmp.ne.s32.totalorder %s348, %s364
      %p366 = scmp.eq.s32.totalorder %s36, 0
      %p367 = por %p365, %p366
      %p368 = scmp.le.s32.totalorder 1, %s30
      %p369 = scmp.lt.s32.totalorder %s30, 3
      %p370 = pnand %p368, %p369
      %p371 = pneg %p370
      // Predicated region
      $region9: #{tpu_custom_call.1} parent=5 // pred_check
        _
      $region10: #{tpu_custom_call.1} parent=5 // pred_check_branch
        %373 = sbr.rel (%p370) target = $region12
      $region11: #{tpu_custom_call.1} parent=5 // pred_region
        %s374 = ssub.s32 %s30, 1
        // Predicated region
        $region13: #{tpu_custom_call.1} parent=11 // pred_check
          %p375 = pneg %p103
        $region14: #{tpu_custom_call.1} parent=11 // pred_check_branch
          %377 = sbr.rel (%p375) target = $region16
        $region15: #{tpu_custom_call.1} parent=11 // pred_region
          _
        $region16: #{tpu_custom_call.1} parent=11 // pred_fallthru
          _
        // Predicated region
        $region17: #{tpu_custom_call.1} parent=11 // pred_check
          %p378 = pneg %p124
        $region18: #{tpu_custom_call.1} parent=11 // pred_check_branch
          %380 = sbr.rel (%p378) target = $region20
        $region19: #{tpu_custom_call.1} parent=11 // pred_region
          _
        $region20: #{tpu_custom_call.1} parent=11 // pred_fallthru
          _
        // Predicated region
        $region21: #{tpu_custom_call.1} parent=11 // pred_check
          %p381 = pneg %p145
        $region22: #{tpu_custom_call.1} parent=11 // pred_check_branch
          %383 = sbr.rel (%p381) target = $region24
        $region23: #{tpu_custom_call.1} parent=11 // pred_region
          _
        $region24: #{tpu_custom_call.1} parent=11 // pred_fallthru
          _
        // Predicated region
        $region25: #{tpu_custom_call.1} parent=11 // pred_check
          %p384 = pneg %p166
        $region26: #{tpu_custom_call.1} parent=11 // pred_check_branch
          %386 = sbr.rel (%p384) target = $region28
        $region27: #{tpu_custom_call.1} parent=11 // pred_region
          %s388 = ssub.s32 256, 256
          %389 = vsyncadd [#allocation6], %s388
          %s390 = sshll.u32 [#allocation7], 4
          %s391 = int_to_ptr.vmem [resolvable:$true] %s390
          %396 = dma.hbm_to_vmem [thread:$0]  %s5, 256, %s391, [#allocation6], 64, 64, 4
        $region28: #{tpu_custom_call.1} parent=11 // pred_fallthru
          _
        // Predicated region
        $region29: #{tpu_custom_call.1} parent=11 // pred_check
          %p397 = pneg %p187
        $region30: #{tpu_custom_call.1} parent=11 // pred_check_branch
          %399 = sbr.rel (%p397) target = $region32
        $region31: #{tpu_custom_call.1} parent=11 // pred_region
          %s401 = ssub.s32 256, 256
          %402 = vsyncadd [#allocation9], %s401
          %s403 = sshll.u32 [#allocation8], 4
          %s404 = int_to_ptr.vmem [resolvable:$true] %s403
          %409 = dma.hbm_to_vmem [thread:$0]  %s6, 256, %s404, [#allocation9], 64, 64, 4
        $region32: #{tpu_custom_call.1} parent=11 // pred_fallthru
          _
        // Predicated region
        $region33: #{tpu_custom_call.1} parent=11 // pred_check
          %p410 = pneg %p208
        $region34: #{tpu_custom_call.1} parent=11 // pred_check_branch
          %412 = sbr.rel (%p410) target = $region36
        $region35: #{tpu_custom_call.1} parent=11 // pred_region
          _
        $region36: #{tpu_custom_call.1} parent=11 // pred_fallthru
          _
        // Predicated region
        $region37: #{tpu_custom_call.1} parent=11 // pred_check
          %p413 = pneg %p229
        $region38: #{tpu_custom_call.1} parent=11 // pred_check_branch
          %415 = sbr.rel (%p413) target = $region40
        $region39: #{tpu_custom_call.1} parent=11 // pred_region
          _
        $region40: #{tpu_custom_call.1} parent=11 // pred_fallthru
          _
        // Predicated region
        $region41: #{tpu_custom_call.1} parent=11 // pred_check
          %p416 = pneg %p250
        $region42: #{tpu_custom_call.1} parent=11 // pred_check_branch
          %418 = sbr.rel (%p416) target = $region44
        $region43: #{tpu_custom_call.1} parent=11 // pred_region
          _
        $region44: #{tpu_custom_call.1} parent=11 // pred_fallthru
          _
        // Predicated region
        $region45: #{tpu_custom_call.1} parent=11 // pred_check
          %p419 = pneg %p271
        $region46: #{tpu_custom_call.1} parent=11 // pred_check_branch
          %421 = sbr.rel (%p419) target = $region48
        $region47: #{tpu_custom_call.1} parent=11 // pred_region
          _
        $region48: #{tpu_custom_call.1} parent=11 // pred_fallthru
          _
        // Predicated region
        $region49: #{tpu_custom_call.1} parent=11 // pred_check
          %p422 = pneg %p292
        $region50: #{tpu_custom_call.1} parent=11 // pred_check_branch
          %424 = sbr.rel (%p422) target = $region52
        $region51: #{tpu_custom_call.1} parent=11 // pred_region
          _
        $region52: #{tpu_custom_call.1} parent=11 // pred_fallthru
          _
        // Predicated region
        $region53: #{tpu_custom_call.1} parent=11 // pred_check
          %p425 = pneg %p313
        $region54: #{tpu_custom_call.1} parent=11 // pred_check_branch
          %427 = sbr.rel (%p425) target = $region56
        $region55: #{tpu_custom_call.1} parent=11 // pred_region
          _
        $region56: #{tpu_custom_call.1} parent=11 // pred_fallthru
          _
        // Predicated region
        $region57: #{tpu_custom_call.1} parent=11 // pred_check
          %p428 = pneg %p334
        $region58: #{tpu_custom_call.1} parent=11 // pred_check_branch
          %430 = sbr.rel (%p428) target = $region60
        $region59: #{tpu_custom_call.1} parent=11 // pred_region
          _
        $region60: #{tpu_custom_call.1} parent=11 // pred_fallthru
          _
      $region12: #{tpu_custom_call.1} parent=5 // pred_fallthru
        _
      %p431 = scmp.lt.s32.totalorder %s30, 2
      // Predicated region
      $region61: #{tpu_custom_call.1} parent=5 // pred_check
        %p432 = pneg %p431
      $region62: #{tpu_custom_call.1} parent=5 // pred_check_branch
        %434 = sbr.rel (%p432) target = $region64
      $region63: #{tpu_custom_call.1} parent=5 // pred_region
        // Predicated region
        $region65: #{tpu_custom_call.1} parent=63 // pred_check
          %p435 = pneg %p50
        $region66: #{tpu_custom_call.1} parent=63 // pred_check_branch
          %437 = sbr.rel (%p435) target = $region68
        $region67: #{tpu_custom_call.1} parent=63 // pred_region
          %s438 = sand.u32 %s40, 1
          %s439 = scalar_lea.sflag [#allocation3], %s438
          %s440 = sand.u32 %s40, 1
          %s441 = scalar_lea.vmem [#allocation2], %s440
          %s443 = ssub.s32 16, 16
          %444 = vsyncadd %s439, %s443
          %s445 = smul.addr %s30, 16
          %s446 = scalar_lea.hbm %s0, %s445
          %s448 = sshll.u32 %s441, 4
          %s449 = int_to_ptr.vmem [resolvable:$true] %s448
          %451 = dma.hbm_to_vmem [thread:$0]  %s446, 16, %s449, %s439
        $region68: #{tpu_custom_call.1} parent=63 // pred_fallthru
          _
        // Predicated region
        $region69: #{tpu_custom_call.1} parent=63 // pred_check
          %p452 = pneg %p76
        $region70: #{tpu_custom_call.1} parent=63 // pred_check_branch
          %454 = sbr.rel (%p452) target = $region72
        $region71: #{tpu_custom_call.1} parent=63 // pred_region
          %s455 = sand.u32 %s30, 1
          %s456 = scalar_lea.sflag [#allocation6], %s455
          %s457 = sand.u32 %s66, 1
          %s458 = smul.addr %s457, 4
          %s459 = scalar_lea.vmem [#allocation5], %s458
          %s461 = ssub.s32 64, 64
          %462 = vsyncadd %s456, %s461
          %s463 = smul.addr %s30, 64
          %s464 = scalar_lea.hbm %s1, %s463
          %s466 = sshll.u32 %s459, 4
          %s467 = int_to_ptr.vmem [resolvable:$true] %s466
          %469 = dma.hbm_to_vmem [thread:$0]  %s464, 64, %s467, %s456
        $region72: #{tpu_custom_call.1} parent=63 // pred_fallthru
          _
      $region64: #{tpu_custom_call.1} parent=5 // pred_fallthru
        _
      %p470 = scmp.le.s32.totalorder 1, %s30
      %p471 = scmp.lt.s32.totalorder %s30, 3
      %p472 = pnand %p470, %p471
      %p473 = pneg %p472
      // Predicated region
      $region73: #{tpu_custom_call.1} parent=5 // pred_check
        _
      $region74: #{tpu_custom_call.1} parent=5 // pred_check_branch
        %475 = sbr.rel (%p472) target = $region76
      $region75: #{tpu_custom_call.1} parent=5 // pred_region
        %s476 = ssub.s32 %s30, 1
        %s477 = sand.u32 %s43, 1
        %s478 = scalar_lea.sflag [#allocation3], %s477
        %s479 = sand.u32 %s43, 1
        %s480 = scalar_lea.vmem [#allocation2], %s479
        // Predicated region
        $region77: #{tpu_custom_call.1} parent=75 // pred_check
          %p481 = pneg %p56
        $region78: #{tpu_custom_call.1} parent=75 // pred_check_branch
          %483 = sbr.rel (%p481) target = $region80
        $region79: #{tpu_custom_call.1} parent=75 // pred_region
          %484 = dma.done %s478, 16
        $region80: #{tpu_custom_call.1} parent=75 // pred_fallthru
          _
        %s485 = sand.u32 %s35, 1
        %s486 = scalar_lea.sflag [#allocation6], %s485
        %s487 = sand.u32 %s69, 1
        %s488 = smul.addr %s487, 4
        %s489 = scalar_lea.vmem [#allocation5], %s488
        // Predicated region
        $region81: #{tpu_custom_call.1} parent=75 // pred_check
          %p490 = pneg %p82
        $region82: #{tpu_custom_call.1} parent=75 // pred_check_branch
          %492 = sbr.rel (%p490) target = $region84
        $region83: #{tpu_custom_call.1} parent=75 // pred_region
          %493 = dma.done %s486, 64
        $region84: #{tpu_custom_call.1} parent=75 // pred_fallthru
          _
        // Predicated region
        $region85: #{tpu_custom_call.1} parent=75 // pred_check
          %p494 = pneg %p166
        $region86: #{tpu_custom_call.1} parent=75 // pred_check_branch
          %496 = sbr.rel (%p494) target = $region88
        $region87: #{tpu_custom_call.1} parent=75 // pred_region
          %497 = dma.done [#allocation6], 256
        $region88: #{tpu_custom_call.1} parent=75 // pred_fallthru
          _
        // Predicated region
        $region89: #{tpu_custom_call.1} parent=75 // pred_check
          %p498 = pneg %p187
        $region90: #{tpu_custom_call.1} parent=75 // pred_check_branch
          %500 = sbr.rel (%p498) target = $region92
        $region91: #{tpu_custom_call.1} parent=75 // pred_region
          %501 = dma.done [#allocation9], 256
        $region92: #{tpu_custom_call.1} parent=75 // pred_fallthru
          _
        %s502 = sand.u32 %s43, 1
        %s503 = scalar_lea.sflag [#allocation3], %s502
        %s504 = sand.u32 %s43, 1
        %s505 = scalar_lea.vmem [#allocation2], %s504
        %p506 = pneg %p56
        %p507 = pneg %p53
        %s508 = sand.u32 %s35, 1
        %s509 = scalar_lea.sflag [#allocation6], %s508
        %s510 = sand.u32 %s69, 1
        %s511 = smul.addr %s510, 4
        %s512 = scalar_lea.vmem [#allocation5], %s511
        %p513 = pneg %p82
        %p514 = pneg %p79
        %p515 = pneg %p103
        %p516 = pneg %p100
        %p517 = pneg %p124
        %p518 = pneg %p121
        %p519 = pneg %p145
        %p520 = pneg %p142
        %p521 = pneg %p166
        %p522 = pneg %p163
        %p523 = pneg %p187
        %p524 = pneg %p184
        %p525 = pneg %p208
        %p526 = pneg %p205
        %p527 = pneg %p229
        %p528 = pneg %p226
        %p529 = pneg %p250
        %p530 = pneg %p247
        %p531 = pneg %p271
        %p532 = pneg %p268
        %p533 = pneg %p292
        %p534 = pneg %p289
        %p535 = pneg %p313
        %p536 = pneg %p310
        %p537 = pneg %p334
        %p538 = pneg %p331
        %p539 = pneg %p360
        %p540 = pneg %p357
        %s541 = sand.u32 %s347, 1
        %s542 = scalar_lea.sflag [#allocation4], %s541
        %s543 = sand.u32 %s347, 1
        %s544 = smul.addr %s543, 8
        %s545 = scalar_lea.vmem [#allocation10], %s544
        %v547 = vld [vmem:[%s489] sm:$0xf]
        %v548 = vunpack.c.l.bf16 %v547
        %v549 = vpack.c.bf16 %v548, %v548
        %v550 = vld [vmem:[%s2] sm:$0xf]
        %v551 = vld [vmem:[%s2 + $0x4] sm:$0xf]
        %v552 = vld [vmem:[%s2 + $0x8] sm:$0xf]
        %v553 = vld [vmem:[%s2 + $0xc] sm:$0xf]
        %v558 = vunpack.c.l.b16 %v550
        %v559 = vunpack.c.l.b16 %v551
        %v560 = vunpack.c.l.b16 %v552
        %v561 = vunpack.c.l.b16 %v553
        %v562 = vpack.c.b16 %v559, %v558
        %v563 = vpack.c.b16 %v561, %v560
        %vm566 = vcmask 261120
        %v568 = vsel %vm566, %v549, 0
        %570 = vmatprep.subr.bf16.mxu0 0
        %571 = vmatpush1.bf16.msra.mxu0 %v562
        %572 = vmatprep.subr.bf16.mxu0 0
        %573 = vmatpush1.bf16.msra.mxu0 %v563
        %574 = vmatprep.subr.bf16.mxu0 0
        %575 = vmatpush1.bf16.msra.mxu0 0
        %576 = vmatprep.subr.bf16.mxu0 0
        %577 = vmatpush1.bf16.msra.mxu0 0
        %578 = vmatprep.subr.bf16.mxu0 0
        %579 = vmatpush1.bf16.msra.mxu0 0
        %580 = vmatprep.subr.bf16.mxu0 0
        %581 = vmatpush1.bf16.msra.mxu0 0
        %582 = vmatprep.subr.bf16.mxu0 0
        %583 = vmatpush1.bf16.msra.mxu0 0
        %584 = vmatprep.subr.bf16.mxu0 0
        %585 = vmatpush1.bf16.msra.mxu0 0
        %586 = vmatprep.subr.bf16.mxu0 0
        %587 = vmatpush1.bf16.msra.mxu0 0
        %588 = vmatprep.subr.bf16.mxu0 0
        %589 = vmatpush1.bf16.msra.mxu0 0
        %590 = vmatprep.subr.bf16.mxu0 0
        %591 = vmatpush1.bf16.msra.mxu0 0
        %592 = vmatprep.subr.bf16.mxu0 0
        %593 = vmatpush1.bf16.msra.mxu0 0
        %594 = vmatprep.subr.bf16.mxu0 0
        %595 = vmatpush1.bf16.msra.mxu0 0
        %596 = vmatprep.subr.bf16.mxu0 0
        %597 = vmatpush1.bf16.msra.mxu0 0
        %598 = vmatprep.subr.bf16.mxu0 0
        %599 = vmatpush1.bf16.msra.mxu0 0
        %600 = vmatprep.subr.bf16.mxu0 0
        %601 = vmatpush1.bf16.msra.mxu0 0
        %602 = vmatprep.mubr.bf16.mxu0 0
        %603 = vmatmul.mubr.bf16.gmra.mrb[0].mxu0 %v568
        %v604 = vpop.f32.mrb[0].mxu0
        %v605 = vadd.f32 0.0, %v604
        %v606 = vpop.f32.mrb[0].mxu0
        %v607 = vpop.f32.mrb[0].mxu0
        %v608 = vpop.f32.mrb[0].mxu0
        %609 = vdwg.mxu0
        %v610 = vld [vmem:[%s3] sm:$0xf]
        %v611 = vld [vmem:[%s3 + $0x4] sm:$0xf]
        %v612 = vld [vmem:[%s3 + $0x8] sm:$0xf]
        %v613 = vld [vmem:[%s3 + $0xc] sm:$0xf]
        %v618 = vunpack.c.l.b16 %v610
        %v619 = vunpack.c.l.b16 %v611
        %v620 = vunpack.c.l.b16 %v612
        %v621 = vunpack.c.l.b16 %v613
        %v622 = vpack.c.b16 %v619, %v618
        %v623 = vpack.c.b16 %v621, %v620
        %626 = vmatprep.subr.bf16.mxu0 0
        %627 = vmatpush1.bf16.msra.mxu0 %v622
        %628 = vmatprep.subr.bf16.mxu0 0
        %629 = vmatpush1.bf16.msra.mxu0 %v623
        %630 = vmatprep.subr.bf16.mxu0 0
        %631 = vmatpush1.bf16.msra.mxu0 0
        %632 = vmatprep.subr.bf16.mxu0 0
        %633 = vmatpush1.bf16.msra.mxu0 0
        %634 = vmatprep.subr.bf16.mxu0 0
        %635 = vmatpush1.bf16.msra.mxu0 0
        %636 = vmatprep.subr.bf16.mxu0 0
        %637 = vmatpush1.bf16.msra.mxu0 0
        %638 = vmatprep.subr.bf16.mxu0 0
        %639 = vmatpush1.bf16.msra.mxu0 0
        %640 = vmatprep.subr.bf16.mxu0 0
        %641 = vmatpush1.bf16.msra.mxu0 0
        %642 = vmatprep.subr.bf16.mxu0 0
        %643 = vmatpush1.bf16.msra.mxu0 0
        %644 = vmatprep.subr.bf16.mxu0 0
        %645 = vmatpush1.bf16.msra.mxu0 0
        %646 = vmatprep.subr.bf16.mxu0 0
        %647 = vmatpush1.bf16.msra.mxu0 0
        %648 = vmatprep.subr.bf16.mxu0 0
        %649 = vmatpush1.bf16.msra.mxu0 0
        %650 = vmatprep.subr.bf16.mxu0 0
        %651 = vmatpush1.bf16.msra.mxu0 0
        %652 = vmatprep.subr.bf16.mxu0 0
        %653 = vmatpush1.bf16.msra.mxu0 0
        %654 = vmatprep.subr.bf16.mxu0 0
        %655 = vmatpush1.bf16.msra.mxu0 0
        %656 = vmatprep.subr.bf16.mxu0 0
        %657 = vmatpush1.bf16.msra.mxu0 0
        %658 = vmatprep.mubr.bf16.mxu0 0
        %659 = vmatmul.mubr.bf16.gmra.mrb[0].mxu0 %v568
        %v660 = vpop.f32.mrb[0].mxu0
        %v661 = vadd.f32 0.0, %v660
        %v662 = vpop.f32.mrb[0].mxu0
        %v663 = vpop.f32.mrb[0].mxu0
        %v664 = vpop.f32.mrb[0].mxu0
        %665 = vdwg.mxu0
        %v666 = vld [vmem:[%s4] sm:$0xf]
        %v667 = vld [vmem:[%s4 + $0x4] sm:$0xf]
        %v668 = vld [vmem:[%s4 + $0x8] sm:$0xf]
        %v669 = vld [vmem:[%s4 + $0xc] sm:$0xf]
        %v674 = vunpack.c.l.b16 %v666
        %v675 = vunpack.c.l.b16 %v667
        %v676 = vunpack.c.l.b16 %v668
        %v677 = vunpack.c.l.b16 %v669
        %v678 = vpack.c.b16 %v675, %v674
        %v679 = vpack.c.b16 %v677, %v676
        %682 = vmatprep.subr.bf16.mxu0 0
        %683 = vmatpush1.bf16.msra.mxu0 %v678
        %684 = vmatprep.subr.bf16.mxu0 0
        %685 = vmatpush1.bf16.msra.mxu0 %v679
        %686 = vmatprep.subr.bf16.mxu0 0
        %687 = vmatpush1.bf16.msra.mxu0 0
        %688 = vmatprep.subr.bf16.mxu0 0
        %689 = vmatpush1.bf16.msra.mxu0 0
        %690 = vmatprep.subr.bf16.mxu0 0
        %691 = vmatpush1.bf16.msra.mxu0 0
        %692 = vmatprep.subr.bf16.mxu0 0
        %693 = vmatpush1.bf16.msra.mxu0 0
        %694 = vmatprep.subr.bf16.mxu0 0
        %695 = vmatpush1.bf16.msra.mxu0 0
        %696 = vmatprep.subr.bf16.mxu0 0
        %697 = vmatpush1.bf16.msra.mxu0 0
        %698 = vmatprep.subr.bf16.mxu0 0
        %699 = vmatpush1.bf16.msra.mxu0 0
        %700 = vmatprep.subr.bf16.mxu0 0
        %701 = vmatpush1.bf16.msra.mxu0 0
        %702 = vmatprep.subr.bf16.mxu0 0
        %703 = vmatpush1.bf16.msra.mxu0 0
        %704 = vmatprep.subr.bf16.mxu0 0
        %705 = vmatpush1.bf16.msra.mxu0 0
        %706 = vmatprep.subr.bf16.mxu0 0
        %707 = vmatpush1.bf16.msra.mxu0 0
        %708 = vmatprep.subr.bf16.mxu0 0
        %709 = vmatpush1.bf16.msra.mxu0 0
        %710 = vmatprep.subr.bf16.mxu0 0
        %711 = vmatpush1.bf16.msra.mxu0 0
        %712 = vmatprep.subr.bf16.mxu0 0
        %713 = vmatpush1.bf16.msra.mxu0 0
        %714 = vmatprep.mubr.bf16.mxu0 0
        %715 = vmatmul.mubr.bf16.gmra.mrb[0].mxu0 %v568
        %v716 = vpop.f32.mrb[0].mxu0
        %v717 = vadd.f32 0.0, %v716
        %v718 = vpop.f32.mrb[0].mxu0
        %v719 = vpop.f32.mrb[0].mxu0
        %v720 = vpop.f32.mrb[0].mxu0
        %721 = vdwg.mxu0
        %v722 = vpack.c.bf16 %v605, %v605
        %724 = vrot.lane.b32.xlu0 %v722, 120
        %v725 = vpop.permute.xlu0 %724
        %726 = vrot.lane.b32.xlu0 %v722, 112
        %v727 = vpop.permute.xlu0 %726
        %728 = vrot.lane.b32.xlu0 %v722, 104
        %v729 = vpop.permute.xlu0 %728
        %v730 = vpack.c.bf16 %v661, %v661
        %732 = vrot.lane.b32.xlu0 %v730, 120
        %v733 = vpop.permute.xlu0 %732
        %734 = vrot.lane.b32.xlu0 %v730, 112
        %v735 = vpop.permute.xlu0 %734
        %736 = vrot.lane.b32.xlu0 %v730, 104
        %v737 = vpop.permute.xlu0 %736
        %v738 = vpack.c.bf16 %v717, %v717
        %740 = vrot.lane.b32.xlu0 %v738, 120
        %v741 = vpop.permute.xlu0 %740
        %742 = vrot.lane.b32.xlu0 %v738, 112
        %v743 = vpop.permute.xlu0 %742
        %744 = vrot.lane.b32.xlu0 %v738, 104
        %v745 = vpop.permute.xlu0 %744
        %v746 = vld [vmem:[%s480] sm:$0x1]
        %v747 = vsub.f32 %v746, 1.0
        %v748 = vmul.f32 %v747, 1e+09
        %vm749 = vcmask 64512
        %v751 = vsel %vm749, %v722, 0
        %v754 = vsel %vm749, %v730, 0
        %756 = vmatprep.subr.bf16.mxu0 0
        %757 = vmatpush1.bf16.xpose.msra.mxu0 %v754
        %758 = vmatprep.subr.bf16.mxu0 0
        %759 = vmatpush1.bf16.xpose.msra.mxu0 0
        %760 = vmatprep.subr.bf16.mxu0 0
        %761 = vmatpush1.bf16.xpose.msra.mxu0 0
        %762 = vmatprep.subr.bf16.mxu0 0
        %763 = vmatpush1.bf16.xpose.msra.mxu0 0
        %764 = vmatprep.subr.bf16.mxu0 0
        %765 = vmatpush1.bf16.xpose.msra.mxu0 0
        %766 = vmatprep.subr.bf16.mxu0 0
        %767 = vmatpush1.bf16.xpose.msra.mxu0 0
        %768 = vmatprep.subr.bf16.mxu0 0
        %769 = vmatpush1.bf16.xpose.msra.mxu0 0
        %770 = vmatprep.subr.bf16.mxu0 0
        %771 = vmatpush1.bf16.xpose.msra.mxu0 0
        %772 = vmatprep.subr.bf16.mxu0 0
        %773 = vmatpush1.bf16.xpose.msra.mxu0 0
        %774 = vmatprep.subr.bf16.mxu0 0
        %775 = vmatpush1.bf16.xpose.msra.mxu0 0
        %776 = vmatprep.subr.bf16.mxu0 0
        %777 = vmatpush1.bf16.xpose.msra.mxu0 0
        %778 = vmatprep.subr.bf16.mxu0 0
        %779 = vmatpush1.bf16.xpose.msra.mxu0 0
        %780 = vmatprep.subr.bf16.mxu0 0
        %781 = vmatpush1.bf16.xpose.msra.mxu0 0
        %782 = vmatprep.subr.bf16.mxu0 0
        %783 = vmatpush1.bf16.xpose.msra.mxu0 0
        %784 = vmatprep.subr.bf16.mxu0 0
        %785 = vmatpush1.bf16.xpose.msra.mxu0 0
        %786 = vmatprep.subr.bf16.mxu0 0
        %787 = vmatpush1.bf16.xpose.msra.mxu0 0
        %788 = vmatprep.mubr.bf16.mxu0 0
        %789 = vmatmul.mubr.bf16.gmra.mrb[0].mxu0 %v751
        %v790 = vpop.f32.mrb[0].mxu0
        %v791 = vadd.f32 0.0, %v790
        %v792 = vpop.f32.mrb[0].mxu0
        %v793 = vpop.f32.mrb[0].mxu0
        %v794 = vpop.f32.mrb[0].mxu0
        %795 = vdwg.mxu0
        %v797 = vsel %vm749, %v725, 0
        %v800 = vsel %vm749, %v733, 0
        %802 = vmatprep.subr.bf16.mxu0 0
        %803 = vmatpush1.bf16.xpose.msra.mxu0 %v800
        %804 = vmatprep.subr.bf16.mxu0 0
        %805 = vmatpush1.bf16.xpose.msra.mxu0 0
        %806 = vmatprep.subr.bf16.mxu0 0
        %807 = vmatpush1.bf16.xpose.msra.mxu0 0
        %808 = vmatprep.subr.bf16.mxu0 0
        %809 = vmatpush1.bf16.xpose.msra.mxu0 0
        %810 = vmatprep.subr.bf16.mxu0 0
        %811 = vmatpush1.bf16.xpose.msra.mxu0 0
        %812 = vmatprep.subr.bf16.mxu0 0
        %813 = vmatpush1.bf16.xpose.msra.mxu0 0
        %814 = vmatprep.subr.bf16.mxu0 0
        %815 = vmatpush1.bf16.xpose.msra.mxu0 0
        %816 = vmatprep.subr.bf16.mxu0 0
        %817 = vmatpush1.bf16.xpose.msra.mxu0 0
        %818 = vmatprep.subr.bf16.mxu0 0
        %819 = vmatpush1.bf16.xpose.msra.mxu0 0
        %820 = vmatprep.subr.bf16.mxu0 0
        %821 = vmatpush1.bf16.xpose.msra.mxu0 0
        %822 = vmatprep.subr.bf16.mxu0 0
        %823 = vmatpush1.bf16.xpose.msra.mxu0 0
        %824 = vmatprep.subr.bf16.mxu0 0
        %825 = vmatpush1.bf16.xpose.msra.mxu0 0
        %826 = vmatprep.subr.bf16.mxu0 0
        %827 = vmatpush1.bf16.xpose.msra.mxu0 0
        %828 = vmatprep.subr.bf16.mxu0 0
        %829 = vmatpush1.bf16.xpose.msra.mxu0 0
        %830 = vmatprep.subr.bf16.mxu0 0
        %831 = vmatpush1.bf16.xpose.msra.mxu0 0
        %832 = vmatprep.subr.bf16.mxu0 0
        %833 = vmatpush1.bf16.xpose.msra.mxu0 0
        %834 = vmatprep.mubr.bf16.mxu0 0
        %835 = vmatmul.mubr.bf16.gmra.mrb[0].mxu0 %v797
        %v836 = vpop.f32.mrb[0].mxu0
        %v837 = vadd.f32 0.0, %v836
        %v838 = vpop.f32.mrb[0].mxu0
        %v839 = vpop.f32.mrb[0].mxu0
        %v840 = vpop.f32.mrb[0].mxu0
        %841 = vdwg.mxu0
        %v843 = vsel %vm749, %v727, 0
        %v846 = vsel %vm749, %v735, 0
        %848 = vmatprep.subr.bf16.mxu0 0
        %849 = vmatpush1.bf16.xpose.msra.mxu0 %v846
        %850 = vmatprep.subr.bf16.mxu0 0
        %851 = vmatpush1.bf16.xpose.msra.mxu0 0
        %852 = vmatprep.subr.bf16.mxu0 0
        %853 = vmatpush1.bf16.xpose.msra.mxu0 0
        %854 = vmatprep.subr.bf16.mxu0 0
        %855 = vmatpush1.bf16.xpose.msra.mxu0 0
        %856 = vmatprep.subr.bf16.mxu0 0
        %857 = vmatpush1.bf16.xpose.msra.mxu0 0
        %858 = vmatprep.subr.bf16.mxu0 0
        %859 = vmatpush1.bf16.xpose.msra.mxu0 0
        %860 = vmatprep.subr.bf16.mxu0 0
        %861 = vmatpush1.bf16.xpose.msra.mxu0 0
        %862 = vmatprep.subr.bf16.mxu0 0
        %863 = vmatpush1.bf16.xpose.msra.mxu0 0
        %864 = vmatprep.subr.bf16.mxu0 0
        %865 = vmatpush1.bf16.xpose.msra.mxu0 0
        %866 = vmatprep.subr.bf16.mxu0 0
        %867 = vmatpush1.bf16.xpose.msra.mxu0 0
        %868 = vmatprep.subr.bf16.mxu0 0
        %869 = vmatpush1.bf16.xpose.msra.mxu0 0
        %870 = vmatprep.subr.bf16.mxu0 0
        %871 = vmatpush1.bf16.xpose.msra.mxu0 0
        %872 = vmatprep.subr.bf16.mxu0 0
        %873 = vmatpush1.bf16.xpose.msra.mxu0 0
        %874 = vmatprep.subr.bf16.mxu0 0
        %875 = vmatpush1.bf16.xpose.msra.mxu0 0
        %876 = vmatprep.subr.bf16.mxu0 0
        %877 = vmatpush1.bf16.xpose.msra.mxu0 0
        %878 = vmatprep.subr.bf16.mxu0 0
        %879 = vmatpush1.bf16.xpose.msra.mxu0 0
        %880 = vmatprep.mubr.bf16.mxu0 0
        %881 = vmatmul.mubr.bf16.gmra.mrb[0].mxu0 %v843
        %v882 = vpop.f32.mrb[0].mxu0
        %v883 = vadd.f32 0.0, %v882
        %v884 = vpop.f32.mrb[0].mxu0
        %v885 = vpop.f32.mrb[0].mxu0
        %v886 = vpop.f32.mrb[0].mxu0
        %887 = vdwg.mxu0
        %v889 = vsel %vm749, %v729, 0
        %v892 = vsel %vm749, %v737, 0
        %894 = vmatprep.subr.bf16.mxu0 0
        %895 = vmatpush1.bf16.xpose.msra.mxu0 %v892
        %896 = vmatprep.subr.bf16.mxu0 0
        %897 = vmatpush1.bf16.xpose.msra.mxu0 0
        %898 = vmatprep.subr.bf16.mxu0 0
        %899 = vmatpush1.bf16.xpose.msra.mxu0 0
        %900 = vmatprep.subr.bf16.mxu0 0
        %901 = vmatpush1.bf16.xpose.msra.mxu0 0
        %902 = vmatprep.subr.bf16.mxu0 0
        %903 = vmatpush1.bf16.xpose.msra.mxu0 0
        %904 = vmatprep.subr.bf16.mxu0 0
        %905 = vmatpush1.bf16.xpose.msra.mxu0 0
        %906 = vmatprep.subr.bf16.mxu0 0
        %907 = vmatpush1.bf16.xpose.msra.mxu0 0
        %908 = vmatprep.subr.bf16.mxu0 0
        %909 = vmatpush1.bf16.xpose.msra.mxu0 0
        %910 = vmatprep.subr.bf16.mxu0 0
        %911 = vmatpush1.bf16.xpose.msra.mxu0 0
        %912 = vmatprep.subr.bf16.mxu0 0
        %913 = vmatpush1.bf16.xpose.msra.mxu0 0
        %914 = vmatprep.subr.bf16.mxu0 0
        %915 = vmatpush1.bf16.xpose.msra.mxu0 0
        %916 = vmatprep.subr.bf16.mxu0 0
        %917 = vmatpush1.bf16.xpose.msra.mxu0 0
        %918 = vmatprep.subr.bf16.mxu0 0
        %919 = vmatpush1.bf16.xpose.msra.mxu0 0
        %920 = vmatprep.subr.bf16.mxu0 0
        %921 = vmatpush1.bf16.xpose.msra.mxu0 0
        %922 = vmatprep.subr.bf16.mxu0 0
        %923 = vmatpush1.bf16.xpose.msra.mxu0 0
        %924 = vmatprep.subr.bf16.mxu0 0
        %925 = vmatpush1.bf16.xpose.msra.mxu0 0
        %926 = vmatprep.mubr.bf16.mxu0 0
        %927 = vmatmul.mubr.bf16.gmra.mrb[0].mxu0 %v889
        %v928 = vpop.f32.mrb[0].mxu0
        %v929 = vadd.f32 0.0, %v928
        %v930 = vpop.f32.mrb[0].mxu0
        %v931 = vpop.f32.mrb[0].mxu0
        %v932 = vpop.f32.mrb[0].mxu0
        %933 = vdwg.mxu0
        %v934 = vmul.f32 %v791, 0.35355338
        %v935 = vmul.f32 %v837, 0.35355338
        %v936 = vmul.f32 %v883, 0.35355338
        %v937 = vmul.f32 %v929, 0.35355338
        %v939 = vlaneseq
        %v940 = vshrl.u32 %v939, 7
        %v941 = vsub.s32 0, %v940
        %v942 = vrot.slane %v748, %v941
        %v944 = vadd.f32 %v934, %v942
        %v945 = vadd.f32 %v935, %v942
        %v946 = vadd.f32 %v936, %v942
        %v947 = vadd.f32 %v937, %v942
        %v948 = vsel %vm749, %v944, -inf
        %949 = vmax.xlane.f32.xlu0 %v948
        %v950 = vpop.xlane.xlu0 %949
        %v951 = vsel %vm749, %v945, -inf
        %952 = vmax.xlane.f32.xlu0 %v951
        %v953 = vpop.xlane.xlu0 %952
        %v954 = vsel %vm749, %v946, -inf
        %955 = vmax.xlane.f32.xlu0 %v954
        %v956 = vpop.xlane.xlu0 %955
        %v957 = vsel %vm749, %v947, -inf
        %958 = vmax.xlane.f32.xlu0 %v957
        %v959 = vpop.xlane.xlu0 %958
        %v960 = vsub.f32 %v944, %v950
        %v961 = vsub.f32 %v945, %v953
        %v962 = vsub.f32 %v946, %v956
        %v963 = vsub.f32 %v947, %v959
        %v964 = vmul.f32 %v960, 1.442695
        %v965 = vpow.pop %v964
        %v966 = vmul.f32 %v961, 1.442695
        %v967 = vpow.pop %v966
        %v968 = vmul.f32 %v962, 1.442695
        %v969 = vpow.pop %v968
        %v970 = vmul.f32 %v963, 1.442695
        %v971 = vpow.pop %v970
        %v972 = vsel %vm749, %v965, 0.0
        %973 = vadd.xlane.f32.xlu0 %v972
        %v974 = vpop.xlane.xlu0 %973
        %v975 = vsel %vm749, %v967, 0.0
        %976 = vadd.xlane.f32.xlu0 %v975
        %v977 = vpop.xlane.xlu0 %976
        %v978 = vsel %vm749, %v969, 0.0
        %979 = vadd.xlane.f32.xlu0 %v978
        %v980 = vpop.xlane.xlu0 %979
        %v981 = vsel %vm749, %v971, 0.0
        %982 = vadd.xlane.f32.xlu0 %v981
        %v983 = vpop.xlane.xlu0 %982
        %v984 = vrcp.pop %v974
        %v985 = vrcp.pop %v977
        %v986 = vrcp.pop %v980
        %v987 = vrcp.pop %v983
        %v988 = vmul.f32 %v965, %v984
        %v989 = vmul.f32 %v967, %v985
        %v990 = vmul.f32 %v969, %v986
        %v991 = vmul.f32 %v971, %v987
        %v992 = vpack.c.bf16 %v988, %v988
        %v993 = vpack.c.bf16 %v989, %v989
        %v994 = vpack.c.bf16 %v990, %v990
        %v995 = vpack.c.bf16 %v991, %v991
        %v997 = vsel %vm749, %v992, 0
        %vm999 = vcmask 1043456
        %v1001 = vsel %vm999, %v738, 0
        %1003 = vmatprep.subr.bf16.mxu0 0
        %1004 = vmatpush1.bf16.msra.mxu0 %v1001
        %1005 = vmatprep.subr.bf16.mxu0 0
        %1006 = vmatpush1.bf16.msra.mxu0 0
        %1007 = vmatprep.subr.bf16.mxu0 0
        %1008 = vmatpush1.bf16.msra.mxu0 0
        %1009 = vmatprep.subr.bf16.mxu0 0
        %1010 = vmatpush1.bf16.msra.mxu0 0
        %1011 = vmatprep.subr.bf16.mxu0 0
        %1012 = vmatpush1.bf16.msra.mxu0 0
        %1013 = vmatprep.subr.bf16.mxu0 0
        %1014 = vmatpush1.bf16.msra.mxu0 0
        %1015 = vmatprep.subr.bf16.mxu0 0
        %1016 = vmatpush1.bf16.msra.mxu0 0
        %1017 = vmatprep.subr.bf16.mxu0 0
        %1018 = vmatpush1.bf16.msra.mxu0 0
        %1019 = vmatprep.subr.bf16.mxu0 0
        %1020 = vmatpush1.bf16.msra.mxu0 0
        %1021 = vmatprep.subr.bf16.mxu0 0
        %1022 = vmatpush1.bf16.msra.mxu0 0
        %1023 = vmatprep.subr.bf16.mxu0 0
        %1024 = vmatpush1.bf16.msra.mxu0 0
        %1025 = vmatprep.subr.bf16.mxu0 0
        %1026 = vmatpush1.bf16.msra.mxu0 0
        %1027 = vmatprep.subr.bf16.mxu0 0
        %1028 = vmatpush1.bf16.msra.mxu0 0
        %1029 = vmatprep.subr.bf16.mxu0 0
        %1030 = vmatpush1.bf16.msra.mxu0 0
        %1031 = vmatprep.subr.bf16.mxu0 0
        %1032 = vmatpush1.bf16.msra.mxu0 0
        %1033 = vmatprep.subr.bf16.mxu0 0
        %1034 = vmatpush1.bf16.msra.mxu0 0
        %1035 = vmatprep.mubr.bf16.mxu0 0
        %1036 = vmatmul.mubr.bf16.gmra.mrb[0].mxu0 %v997
        %v1037 = vpop.f32.mrb[0].mxu0
        %v1038 = vadd.f32 0.0, %v1037
        %v1039 = vpop.f32.mrb[0].mxu0
        %v1040 = vpop.f32.mrb[0].mxu0
        %v1041 = vpop.f32.mrb[0].mxu0
        %1042 = vdwg.mxu0
        %v1044 = vsel %vm749, %v993, 0
        %v1047 = vsel %vm999, %v741, 0
        %1049 = vmatprep.subr.bf16.mxu0 0
        %1050 = vmatpush1.bf16.msra.mxu0 %v1047
        %1051 = vmatprep.subr.bf16.mxu0 0
        %1052 = vmatpush1.bf16.msra.mxu0 0
        %1053 = vmatprep.subr.bf16.mxu0 0
        %1054 = vmatpush1.bf16.msra.mxu0 0
        %1055 = vmatprep.subr.bf16.mxu0 0
        %1056 = vmatpush1.bf16.msra.mxu0 0
        %1057 = vmatprep.subr.bf16.mxu0 0
        %1058 = vmatpush1.bf16.msra.mxu0 0
        %1059 = vmatprep.subr.bf16.mxu0 0
        %1060 = vmatpush1.bf16.msra.mxu0 0
        %1061 = vmatprep.subr.bf16.mxu0 0
        %1062 = vmatpush1.bf16.msra.mxu0 0
        %1063 = vmatprep.subr.bf16.mxu0 0
        %1064 = vmatpush1.bf16.msra.mxu0 0
        %1065 = vmatprep.subr.bf16.mxu0 0
        %1066 = vmatpush1.bf16.msra.mxu0 0
        %1067 = vmatprep.subr.bf16.mxu0 0
        %1068 = vmatpush1.bf16.msra.mxu0 0
        %1069 = vmatprep.subr.bf16.mxu0 0
        %1070 = vmatpush1.bf16.msra.mxu0 0
        %1071 = vmatprep.subr.bf16.mxu0 0
        %1072 = vmatpush1.bf16.msra.mxu0 0
        %1073 = vmatprep.subr.bf16.mxu0 0
        %1074 = vmatpush1.bf16.msra.mxu0 0
        %1075 = vmatprep.subr.bf16.mxu0 0
        %1076 = vmatpush1.bf16.msra.mxu0 0
        %1077 = vmatprep.subr.bf16.mxu0 0
        %1078 = vmatpush1.bf16.msra.mxu0 0
        %1079 = vmatprep.subr.bf16.mxu0 0
        %1080 = vmatpush1.bf16.msra.mxu0 0
        %1081 = vmatprep.mubr.bf16.mxu0 0
        %1082 = vmatmul.mubr.bf16.gmra.mrb[0].mxu0 %v1044
        %v1083 = vpop.f32.mrb[0].mxu0
        %v1084 = vadd.f32 0.0, %v1083
        %v1085 = vpop.f32.mrb[0].mxu0
        %v1086 = vpop.f32.mrb[0].mxu0
        %v1087 = vpop.f32.mrb[0].mxu0
        %1088 = vdwg.mxu0
        %v1090 = vsel %vm749, %v994, 0
        %v1093 = vsel %vm999, %v743, 0
        %1095 = vmatprep.subr.bf16.mxu0 0
        %1096 = vmatpush1.bf16.msra.mxu0 %v1093
        %1097 = vmatprep.subr.bf16.mxu0 0
        %1098 = vmatpush1.bf16.msra.mxu0 0
        %1099 = vmatprep.subr.bf16.mxu0 0
        %1100 = vmatpush1.bf16.msra.mxu0 0
        %1101 = vmatprep.subr.bf16.mxu0 0
        %1102 = vmatpush1.bf16.msra.mxu0 0
        %1103 = vmatprep.subr.bf16.mxu0 0
        %1104 = vmatpush1.bf16.msra.mxu0 0
        %1105 = vmatprep.subr.bf16.mxu0 0
        %1106 = vmatpush1.bf16.msra.mxu0 0
        %1107 = vmatprep.subr.bf16.mxu0 0
        %1108 = vmatpush1.bf16.msra.mxu0 0
        %1109 = vmatprep.subr.bf16.mxu0 0
        %1110 = vmatpush1.bf16.msra.mxu0 0
        %1111 = vmatprep.subr.bf16.mxu0 0
        %1112 = vmatpush1.bf16.msra.mxu0 0
        %1113 = vmatprep.subr.bf16.mxu0 0
        %1114 = vmatpush1.bf16.msra.mxu0 0
        %1115 = vmatprep.subr.bf16.mxu0 0
        %1116 = vmatpush1.bf16.msra.mxu0 0
        %1117 = vmatprep.subr.bf16.mxu0 0
        %1118 = vmatpush1.bf16.msra.mxu0 0
        %1119 = vmatprep.subr.bf16.mxu0 0
        %1120 = vmatpush1.bf16.msra.mxu0 0
        %1121 = vmatprep.subr.bf16.mxu0 0
        %1122 = vmatpush1.bf16.msra.mxu0 0
        %1123 = vmatprep.subr.bf16.mxu0 0
        %1124 = vmatpush1.bf16.msra.mxu0 0
        %1125 = vmatprep.subr.bf16.mxu0 0
        %1126 = vmatpush1.bf16.msra.mxu0 0
        %1127 = vmatprep.mubr.bf16.mxu0 0
        %1128 = vmatmul.mubr.bf16.gmra.mrb[0].mxu0 %v1090
        %v1129 = vpop.f32.mrb[0].mxu0
        %v1130 = vadd.f32 0.0, %v1129
        %v1131 = vpop.f32.mrb[0].mxu0
        %v1132 = vpop.f32.mrb[0].mxu0
        %v1133 = vpop.f32.mrb[0].mxu0
        %1134 = vdwg.mxu0
        %v1136 = vsel %vm749, %v995, 0
        %v1139 = vsel %vm999, %v745, 0
        %1141 = vmatprep.subr.bf16.mxu0 0
        %1142 = vmatpush1.bf16.msra.mxu0 %v1139
        %1143 = vmatprep.subr.bf16.mxu0 0
        %1144 = vmatpush1.bf16.msra.mxu0 0
        %1145 = vmatprep.subr.bf16.mxu0 0
        %1146 = vmatpush1.bf16.msra.mxu0 0
        %1147 = vmatprep.subr.bf16.mxu0 0
        %1148 = vmatpush1.bf16.msra.mxu0 0
        %1149 = vmatprep.subr.bf16.mxu0 0
        %1150 = vmatpush1.bf16.msra.mxu0 0
        %1151 = vmatprep.subr.bf16.mxu0 0
        %1152 = vmatpush1.bf16.msra.mxu0 0
        %1153 = vmatprep.subr.bf16.mxu0 0
        %1154 = vmatpush1.bf16.msra.mxu0 0
        %1155 = vmatprep.subr.bf16.mxu0 0
        %1156 = vmatpush1.bf16.msra.mxu0 0
        %1157 = vmatprep.subr.bf16.mxu0 0
        %1158 = vmatpush1.bf16.msra.mxu0 0
        %1159 = vmatprep.subr.bf16.mxu0 0
        %1160 = vmatpush1.bf16.msra.mxu0 0
        %1161 = vmatprep.subr.bf16.mxu0 0
        %1162 = vmatpush1.bf16.msra.mxu0 0
        %1163 = vmatprep.subr.bf16.mxu0 0
        %1164 = vmatpush1.bf16.msra.mxu0 0
        %1165 = vmatprep.subr.bf16.mxu0 0
        %1166 = vmatpush1.bf16.msra.mxu0 0
        %1167 = vmatprep.subr.bf16.mxu0 0
        %1168 = vmatpush1.bf16.msra.mxu0 0
        %1169 = vmatprep.subr.bf16.mxu0 0
        %1170 = vmatpush1.bf16.msra.mxu0 0
        %1171 = vmatprep.subr.bf16.mxu0 0
        %1172 = vmatpush1.bf16.msra.mxu0 0
        %1173 = vmatprep.mubr.bf16.mxu0 0
        %1174 = vmatmul.mubr.bf16.gmra.mrb[0].mxu0 %v1136
        %v1175 = vpop.f32.mrb[0].mxu0
        %v1176 = vadd.f32 0.0, %v1175
        %v1177 = vpop.f32.mrb[0].mxu0
        %v1178 = vpop.f32.mrb[0].mxu0
        %v1179 = vpop.f32.mrb[0].mxu0
        %1180 = vdwg.mxu0
        %v1181 = vpack.c.bf16 %v1038, %v1038
        %v1182 = vpack.c.bf16 %v1084, %v1084
        %v1183 = vpack.c.bf16 %v1130, %v1130
        %v1184 = vpack.c.bf16 %v1176, %v1176
        %v1185 = vld [vmem:[#allocation7] sm:$0xf]
        %v1186 = vld [vmem:[#allocation7 + $0x4] sm:$0xf]
        %v1188 = vsel %vm749, %v1182, 0
        %v1191 = vsel %vm999, %v1186, 0
        %1193 = vmatprep.subr.bf16.mxu0 0
        %1194 = vmatpush1.bf16.msra.mxu0 %v1191
        %1195 = vmatprep.subr.bf16.mxu0 0
        %1196 = vmatpush1.bf16.msra.mxu0 0
        %1197 = vmatprep.subr.bf16.mxu0 0
        %1198 = vmatpush1.bf16.msra.mxu0 0
        %1199 = vmatprep.subr.bf16.mxu0 0
        %1200 = vmatpush1.bf16.msra.mxu0 0
        %1201 = vmatprep.subr.bf16.mxu0 0
        %1202 = vmatpush1.bf16.msra.mxu0 0
        %1203 = vmatprep.subr.bf16.mxu0 0
        %1204 = vmatpush1.bf16.msra.mxu0 0
        %1205 = vmatprep.subr.bf16.mxu0 0
        %1206 = vmatpush1.bf16.msra.mxu0 0
        %1207 = vmatprep.subr.bf16.mxu0 0
        %1208 = vmatpush1.bf16.msra.mxu0 0
        %1209 = vmatprep.subr.bf16.mxu0 0
        %1210 = vmatpush1.bf16.msra.mxu0 0
        %1211 = vmatprep.subr.bf16.mxu0 0
        %1212 = vmatpush1.bf16.msra.mxu0 0
        %1213 = vmatprep.subr.bf16.mxu0 0
        %1214 = vmatpush1.bf16.msra.mxu0 0
        %1215 = vmatprep.subr.bf16.mxu0 0
        %1216 = vmatpush1.bf16.msra.mxu0 0
        %1217 = vmatprep.subr.bf16.mxu0 0
        %1218 = vmatpush1.bf16.msra.mxu0 0
        %1219 = vmatprep.subr.bf16.mxu0 0
        %1220 = vmatpush1.bf16.msra.mxu0 0
        %1221 = vmatprep.subr.bf16.mxu0 0
        %1222 = vmatpush1.bf16.msra.mxu0 0
        %1223 = vmatprep.subr.bf16.mxu0 0
        %1224 = vmatpush1.bf16.msra.mxu0 0
        %1225 = vmatprep.mubr.bf16.mxu0 0
        %1226 = vmatmul.mubr.bf16.gmra.mrb[0].mxu0 %v1188
        %v1227 = vpop.f32.mrb[0].mxu0
        %v1228 = vadd.f32 0.0, %v1227
        %v1229 = vpop.f32.mrb[0].mxu0
        %v1230 = vpop.f32.mrb[0].mxu0
        %v1231 = vpop.f32.mrb[0].mxu0
        %1232 = vdwg.mxu0
        %v1234 = vsel %vm749, %v1181, 0
        %v1237 = vsel %vm999, %v1185, 0
        %1239 = vmatprep.subr.bf16.mxu0 0
        %1240 = vmatpush1.bf16.msra.mxu0 %v1237
        %1241 = vmatprep.subr.bf16.mxu0 0
        %1242 = vmatpush1.bf16.msra.mxu0 0
        %1243 = vmatprep.subr.bf16.mxu0 0
        %1244 = vmatpush1.bf16.msra.mxu0 0
        %1245 = vmatprep.subr.bf16.mxu0 0
        %1246 = vmatpush1.bf16.msra.mxu0 0
        %1247 = vmatprep.subr.bf16.mxu0 0
        %1248 = vmatpush1.bf16.msra.mxu0 0
        %1249 = vmatprep.subr.bf16.mxu0 0
        %1250 = vmatpush1.bf16.msra.mxu0 0
        %1251 = vmatprep.subr.bf16.mxu0 0
        %1252 = vmatpush1.bf16.msra.mxu0 0
        %1253 = vmatprep.subr.bf16.mxu0 0
        %1254 = vmatpush1.bf16.msra.mxu0 0
        %1255 = vmatprep.subr.bf16.mxu0 0
        %1256 = vmatpush1.bf16.msra.mxu0 0
        %1257 = vmatprep.subr.bf16.mxu0 0
        %1258 = vmatpush1.bf16.msra.mxu0 0
        %1259 = vmatprep.subr.bf16.mxu0 0
        %1260 = vmatpush1.bf16.msra.mxu0 0
        %1261 = vmatprep.subr.bf16.mxu0 0
        %1262 = vmatpush1.bf16.msra.mxu0 0
        %1263 = vmatprep.subr.bf16.mxu0 0
        %1264 = vmatpush1.bf16.msra.mxu0 0
        %1265 = vmatprep.subr.bf16.mxu0 0
        %1266 = vmatpush1.bf16.msra.mxu0 0
        %1267 = vmatprep.subr.bf16.mxu0 0
        %1268 = vmatpush1.bf16.msra.mxu0 0
        %1269 = vmatprep.subr.bf16.mxu0 0
        %1270 = vmatpush1.bf16.msra.mxu0 0
        %1271 = vmatprep.mubr.bf16.mxu0 0
        %1272 = vmatmul.mubr.bf16.gmra.mrb[0].mxu0 %v1234
        %v1273 = vpop.f32.mrb[0].mxu0
        %v1274 = vadd.f32 %v1228, %v1273
        %v1275 = vpop.f32.mrb[0].mxu0
        %v1276 = vpop.f32.mrb[0].mxu0
        %v1277 = vpop.f32.mrb[0].mxu0
        %1278 = vdwg.mxu0
        %v1279 = vld [vmem:[#allocation7 + $0x8] sm:$0xf]
        %v1281 = vsel %vm749, %v1183, 0
        %v1284 = vsel %vm999, %v1279, 0
        %1286 = vmatprep.subr.bf16.mxu0 0
        %1287 = vmatpush1.bf16.msra.mxu0 %v1284
        %1288 = vmatprep.subr.bf16.mxu0 0
        %1289 = vmatpush1.bf16.msra.mxu0 0
        %1290 = vmatprep.subr.bf16.mxu0 0
        %1291 = vmatpush1.bf16.msra.mxu0 0
        %1292 = vmatprep.subr.bf16.mxu0 0
        %1293 = vmatpush1.bf16.msra.mxu0 0
        %1294 = vmatprep.subr.bf16.mxu0 0
        %1295 = vmatpush1.bf16.msra.mxu0 0
        %1296 = vmatprep.subr.bf16.mxu0 0
        %1297 = vmatpush1.bf16.msra.mxu0 0
        %1298 = vmatprep.subr.bf16.mxu0 0
        %1299 = vmatpush1.bf16.msra.mxu0 0
        %1300 = vmatprep.subr.bf16.mxu0 0
        %1301 = vmatpush1.bf16.msra.mxu0 0
        %1302 = vmatprep.subr.bf16.mxu0 0
        %1303 = vmatpush1.bf16.msra.mxu0 0
        %1304 = vmatprep.subr.bf16.mxu0 0
        %1305 = vmatpush1.bf16.msra.mxu0 0
        %1306 = vmatprep.subr.bf16.mxu0 0
        %1307 = vmatpush1.bf16.msra.mxu0 0
        %1308 = vmatprep.subr.bf16.mxu0 0
        %1309 = vmatpush1.bf16.msra.mxu0 0
        %1310 = vmatprep.subr.bf16.mxu0 0
        %1311 = vmatpush1.bf16.msra.mxu0 0
        %1312 = vmatprep.subr.bf16.mxu0 0
        %1313 = vmatpush1.bf16.msra.mxu0 0
        %1314 = vmatprep.subr.bf16.mxu0 0
        %1315 = vmatpush1.bf16.msra.mxu0 0
        %1316 = vmatprep.subr.bf16.mxu0 0
        %1317 = vmatpush1.bf16.msra.mxu0 0
        %1318 = vmatprep.mubr.bf16.mxu0 0
        %1319 = vmatmul.mubr.bf16.gmra.mrb[0].mxu0 %v1281
        %v1320 = vpop.f32.mrb[0].mxu0
        %v1321 = vadd.f32 0.0, %v1320
        %v1322 = vpop.f32.mrb[0].mxu0
        %v1323 = vpop.f32.mrb[0].mxu0
        %v1324 = vpop.f32.mrb[0].mxu0
        %1325 = vdwg.mxu0
        %v1326 = vadd.f32 %v1274, %v1321
        %v1327 = vld [vmem:[#allocation7 + $0xc] sm:$0xf]
        %v1329 = vsel %vm749, %v1184, 0
        %v1332 = vsel %vm999, %v1327, 0
        %1334 = vmatprep.subr.bf16.mxu0 0
        %1335 = vmatpush1.bf16.msra.mxu0 %v1332
        %1336 = vmatprep.subr.bf16.mxu0 0
        %1337 = vmatpush1.bf16.msra.mxu0 0
        %1338 = vmatprep.subr.bf16.mxu0 0
        %1339 = vmatpush1.bf16.msra.mxu0 0
        %1340 = vmatprep.subr.bf16.mxu0 0
        %1341 = vmatpush1.bf16.msra.mxu0 0
        %1342 = vmatprep.subr.bf16.mxu0 0
        %1343 = vmatpush1.bf16.msra.mxu0 0
        %1344 = vmatprep.subr.bf16.mxu0 0
        %1345 = vmatpush1.bf16.msra.mxu0 0
        %1346 = vmatprep.subr.bf16.mxu0 0
        %1347 = vmatpush1.bf16.msra.mxu0 0
        %1348 = vmatprep.subr.bf16.mxu0 0
        %1349 = vmatpush1.bf16.msra.mxu0 0
        %1350 = vmatprep.subr.bf16.mxu0 0
        %1351 = vmatpush1.bf16.msra.mxu0 0
        %1352 = vmatprep.subr.bf16.mxu0 0
        %1353 = vmatpush1.bf16.msra.mxu0 0
        %1354 = vmatprep.subr.bf16.mxu0 0
        %1355 = vmatpush1.bf16.msra.mxu0 0
        %1356 = vmatprep.subr.bf16.mxu0 0
        %1357 = vmatpush1.bf16.msra.mxu0 0
        %1358 = vmatprep.subr.bf16.mxu0 0
        %1359 = vmatpush1.bf16.msra.mxu0 0
        %1360 = vmatprep.subr.bf16.mxu0 0
        %1361 = vmatpush1.bf16.msra.mxu0 0
        %1362 = vmatprep.subr.bf16.mxu0 0
        %1363 = vmatpush1.bf16.msra.mxu0 0
        %1364 = vmatprep.subr.bf16.mxu0 0
        %1365 = vmatpush1.bf16.msra.mxu0 0
        %1366 = vmatprep.mubr.bf16.mxu0 0
        %1367 = vmatmul.mubr.bf16.gmra.mrb[0].mxu0 %v1329
        %v1368 = vpop.f32.mrb[0].mxu0
        %v1369 = vadd.f32 0.0, %v1368
        %v1370 = vpop.f32.mrb[0].mxu0
        %v1371 = vpop.f32.mrb[0].mxu0
        %v1372 = vpop.f32.mrb[0].mxu0
        %1373 = vdwg.mxu0
        %v1374 = vadd.f32 %v1326, %v1369
        %v1375 = vadd.f32 %v548, %v1374
        %v1376 = vld [vmem:[%s10] sm:$0x1]
        %v1377 = vld [vmem:[%s11] sm:$0x1]
        %v1378 = vsel %vm566, %v1375, 0.0
        %1379 = vadd.xlane.f32.xlu0 %v1378
        %v1380 = vpop.xlane.xlu0 %1379
        %v1381 = vrcp.pop 32.0
        %v1382 = vmul.f32 %v1380, %v1381
        %v1383 = vsub.f32 %v1375, %v1382
        %v1384 = vmul.f32 %v1383, %v1383
        %v1385 = vsel %vm566, %v1384, 0.0
        %1386 = vadd.xlane.f32.xlu0 %v1385
        %v1387 = vpop.xlane.xlu0 %1386
        %v1388 = vmul.f32 %v1387, %v1381
        %v1389 = vadd.f32 %v1388, 1e-05
        %v1390 = vrsqrt.pop %v1389
        %v1391 = vmul.f32 %v1383, %v1390
        %v1393 = vlaneseq
        %v1394 = vshrl.u32 %v1393, 7
        %v1395 = vsub.s32 0, %v1394
        %v1396 = vrot.slane %v1376, %v1395
        %v1398 = vmul.f32 %v1391, %v1396
        %v1400 = vlaneseq
        %v1401 = vshrl.u32 %v1400, 7
        %v1402 = vsub.s32 0, %v1401
        %v1403 = vrot.slane %v1377, %v1402
        %v1405 = vadd.f32 %v1398, %v1403
        %v1406 = vpack.c.bf16 %v1405, %v1405
        %v1407 = vld [vmem:[#allocation8] sm:$0xf]
        %v1408 = vld [vmem:[#allocation8 + $0x4] sm:$0xf]
        %v1409 = vld [vmem:[#allocation8 + $0x8] sm:$0xf]
        %v1410 = vld [vmem:[#allocation8 + $0xc] sm:$0xf]
        %v1411 = vld [vmem:[%s7] sm:$0x1]
        %v1413 = vlaneseq
        %v1414 = vshrl.u32 %v1413, 7
        %v1415 = vsub.s32 0, %v1414
        %v1416 = vrot.slane %v1411, %v1415
        %v1422 = vunpack.c.l.b16 %v1407
        %v1423 = vunpack.c.l.b16 %v1408
        %v1424 = vunpack.c.l.b16 %v1409
        %v1425 = vunpack.c.l.b16 %v1410
        %v1426 = vpack.c.b16 %v1423, %v1422
        %v1427 = vpack.c.b16 %v1425, %v1424
        %v1431 = vsel %vm566, %v1406, 0
        %1433 = vmatprep.subr.bf16.mxu0 0
        %1434 = vmatpush1.bf16.msra.mxu0 %v1426
        %1435 = vmatprep.subr.bf16.mxu0 0
        %1436 = vmatpush1.bf16.msra.mxu0 %v1427
        %1437 = vmatprep.subr.bf16.mxu0 0
        %1438 = vmatpush1.bf16.msra.mxu0 0
        %1439 = vmatprep.subr.bf16.mxu0 0
        %1440 = vmatpush1.bf16.msra.mxu0 0
        %1441 = vmatprep.subr.bf16.mxu0 0
        %1442 = vmatpush1.bf16.msra.mxu0 0
        %1443 = vmatprep.subr.bf16.mxu0 0
        %1444 = vmatpush1.bf16.msra.mxu0 0
        %1445 = vmatprep.subr.bf16.mxu0 0
        %1446 = vmatpush1.bf16.msra.mxu0 0
        %1447 = vmatprep.subr.bf16.mxu0 0
        %1448 = vmatpush1.bf16.msra.mxu0 0
        %1449 = vmatprep.subr.bf16.mxu0 0
        %1450 = vmatpush1.bf16.msra.mxu0 0
        %1451 = vmatprep.subr.bf16.mxu0 0
        %1452 = vmatpush1.bf16.msra.mxu0 0
        %1453 = vmatprep.subr.bf16.mxu0 0
        %1454 = vmatpush1.bf16.msra.mxu0 0
        %1455 = vmatprep.subr.bf16.mxu0 0
        %1456 = vmatpush1.bf16.msra.mxu0 0
        %1457 = vmatprep.subr.bf16.mxu0 0
        %1458 = vmatpush1.bf16.msra.mxu0 0
        %1459 = vmatprep.subr.bf16.mxu0 0
        %1460 = vmatpush1.bf16.msra.mxu0 0
        %1461 = vmatprep.subr.bf16.mxu0 0
        %1462 = vmatpush1.bf16.msra.mxu0 0
        %1463 = vmatprep.subr.bf16.mxu0 0
        %1464 = vmatpush1.bf16.msra.mxu0 0
        %1465 = vmatprep.mubr.bf16.mxu0 0
        %1466 = vmatmul.mubr.bf16.gmra.mrb[0].mxu0 %v1431
        %v1467 = vpop.f32.mrb[0].mxu0
        %v1468 = vadd.f32 %v1416, %v1467
        %v1469 = vpop.f32.mrb[0].mxu0
        %v1470 = vpop.f32.mrb[0].mxu0
        %v1471 = vpop.f32.mrb[0].mxu0
        %1472 = vdwg.mxu0
        %v1473 = vmax.f32 %v1468, 0.0
        %v1474 = vpack.c.bf16 %v1473, %v1473
        %v1475 = vld [vmem:[%s8] sm:$0xf]
        %v1476 = vld [vmem:[%s8 + $0x4] sm:$0xf]
        %v1477 = vld [vmem:[%s8 + $0x8] sm:$0xf]
        %v1478 = vld [vmem:[%s8 + $0xc] sm:$0xf]
        %v1479 = vld [vmem:[%s8 + $0x10] sm:$0xf]
        %v1480 = vld [vmem:[%s8 + $0x14] sm:$0xf]
        %v1481 = vld [vmem:[%s8 + $0x18] sm:$0xf]
        %v1482 = vld [vmem:[%s8 + $0x1c] sm:$0xf]
        %v1483 = vld [vmem:[%s9] sm:$0x1]
        %v1485 = vlaneseq
        %v1486 = vshrl.u32 %v1485, 7
        %v1487 = vsub.s32 0, %v1486
        %v1488 = vrot.slane %v1483, %v1487
        %v1498 = vunpack.c.l.b16 %v1475
        %v1499 = vunpack.c.l.b16 %v1476
        %v1500 = vunpack.c.l.b16 %v1477
        %v1501 = vunpack.c.l.b16 %v1478
        %v1502 = vunpack.c.l.b16 %v1479
        %v1503 = vunpack.c.l.b16 %v1480
        %v1504 = vunpack.c.l.b16 %v1481
        %v1505 = vunpack.c.l.b16 %v1482
        %v1506 = vpack.c.b16 %v1499, %v1498
        %v1507 = vpack.c.b16 %v1501, %v1500
        %v1508 = vpack.c.b16 %v1503, %v1502
        %v1509 = vpack.c.b16 %v1505, %v1504
        %vm1514 = vcmask 523264
        %v1516 = vsel %vm1514, %v1474, 0
        %1518 = vmatprep.subr.bf16.mxu0 0
        %1519 = vmatpush1.bf16.msra.mxu0 %v1506
        %1520 = vmatprep.subr.bf16.mxu0 0
        %1521 = vmatpush1.bf16.msra.mxu0 %v1507
        %1522 = vmatprep.subr.bf16.mxu0 0
        %1523 = vmatpush1.bf16.msra.mxu0 %v1508
        %1524 = vmatprep.subr.bf16.mxu0 0
        %1525 = vmatpush1.bf16.msra.mxu0 %v1509
        %1526 = vmatprep.subr.bf16.mxu0 0
        %1527 = vmatpush1.bf16.msra.mxu0 0
        %1528 = vmatprep.subr.bf16.mxu0 0
        %1529 = vmatpush1.bf16.msra.mxu0 0
        %1530 = vmatprep.subr.bf16.mxu0 0
        %1531 = vmatpush1.bf16.msra.mxu0 0
        %1532 = vmatprep.subr.bf16.mxu0 0
        %1533 = vmatpush1.bf16.msra.mxu0 0
        %1534 = vmatprep.subr.bf16.mxu0 0
        %1535 = vmatpush1.bf16.msra.mxu0 0
        %1536 = vmatprep.subr.bf16.mxu0 0
        %1537 = vmatpush1.bf16.msra.mxu0 0
        %1538 = vmatprep.subr.bf16.mxu0 0
        %1539 = vmatpush1.bf16.msra.mxu0 0
        %1540 = vmatprep.subr.bf16.mxu0 0
        %1541 = vmatpush1.bf16.msra.mxu0 0
        %1542 = vmatprep.subr.bf16.mxu0 0
        %1543 = vmatpush1.bf16.msra.mxu0 0
        %1544 = vmatprep.subr.bf16.mxu0 0
        %1545 = vmatpush1.bf16.msra.mxu0 0
        %1546 = vmatprep.subr.bf16.mxu0 0
        %1547 = vmatpush1.bf16.msra.mxu0 0
        %1548 = vmatprep.subr.bf16.mxu0 0
        %1549 = vmatpush1.bf16.msra.mxu0 0
        %1550 = vmatprep.mubr.bf16.mxu0 0
        %1551 = vmatmul.mubr.bf16.gmra.mrb[0].mxu0 %v1516
        %v1552 = vpop.f32.mrb[0].mxu0
        %v1553 = vadd.f32 %v1488, %v1552
        %v1554 = vpop.f32.mrb[0].mxu0
        %v1555 = vpop.f32.mrb[0].mxu0
        %v1556 = vpop.f32.mrb[0].mxu0
        %1557 = vdwg.mxu0
        %v1558 = vadd.f32 %v1405, %v1553
        %v1559 = vld [vmem:[%s12] sm:$0x1]
        %v1560 = vld [vmem:[%s13] sm:$0x1]
        %v1561 = vsel %vm566, %v1558, 0.0
        %1562 = vadd.xlane.f32.xlu0 %v1561
        %v1563 = vpop.xlane.xlu0 %1562
        %v1564 = vmul.f32 %v1563, %v1381
        %v1565 = vsub.f32 %v1558, %v1564
        %v1566 = vmul.f32 %v1565, %v1565
        %v1567 = vsel %vm566, %v1566, 0.0
        %1568 = vadd.xlane.f32.xlu0 %v1567
        %v1569 = vpop.xlane.xlu0 %1568
        %v1570 = vmul.f32 %v1569, %v1381
        %v1571 = vadd.f32 %v1570, 1e-05
        %v1572 = vrsqrt.pop %v1571
        %v1573 = vmul.f32 %v1565, %v1572
        %v1575 = vlaneseq
        %v1576 = vshrl.u32 %v1575, 7
        %v1577 = vsub.s32 0, %v1576
        %v1578 = vrot.slane %v1559, %v1577
        %v1580 = vmul.f32 %v1573, %v1578
        %v1582 = vlaneseq
        %v1583 = vshrl.u32 %v1582, 7
        %v1584 = vsub.s32 0, %v1583
        %v1585 = vrot.slane %v1560, %v1584
        %v1587 = vadd.f32 %v1580, %v1585
        %1588 = vst.msk [vmem:[%s545] sm:$0xff] %vm566, %v1587
        %s1589 = sand.u32 %s347, 1
        %s1590 = scalar_lea.sflag [#allocation4], %s1589
        %s1591 = sand.u32 %s347, 1
        %s1592 = smul.addr %s1591, 8
        %s1593 = scalar_lea.vmem [#allocation10], %s1592
        // Predicated region
        $region93: #{tpu_custom_call.1} parent=75 // pred_check
          %p1594 = pneg %p357
        $region94: #{tpu_custom_call.1} parent=75 // pred_check_branch
          %1596 = sbr.rel (%p1594) target = $region96
        $region95: #{tpu_custom_call.1} parent=75 // pred_region
          %s1598 = ssub.s32 128, 128
          %1599 = vsyncadd %s1590, %s1598
          %s1600 = smul.addr %s35, 128
          %s1601 = scalar_lea.hbm %s14, %s1600
          %s1603 = sshll.u32 %s1593, 4
          %s1604 = int_to_ptr.vmem [resolvable:$true] %s1603
          %1606 = dma.vmem_to_hbm [thread:$0]  %s1604, 128, %s1601, %s1590
        $region96: #{tpu_custom_call.1} parent=75 // pred_fallthru
          _
      $region76: #{tpu_custom_call.1} parent=5 // pred_fallthru
        _
      %p1607 = scmp.le.s32.totalorder 2, %s30
      // Predicated region
      $region97: #{tpu_custom_call.1} parent=5 // pred_check
        %p1608 = pneg %p1607
      $region98: #{tpu_custom_call.1} parent=5 // pred_check_branch
        %1610 = sbr.rel (%p1608) target = $region100
      $region99: #{tpu_custom_call.1} parent=5 // pred_region
        %s1611 = ssub.s32 %s30, 2
        // Predicated region
        $region101: #{tpu_custom_call.1} parent=99 // pred_check
          %p1612 = pneg %p363
        $region102: #{tpu_custom_call.1} parent=99 // pred_check_branch
          %1614 = sbr.rel (%p1612) target = $region104
        $region103: #{tpu_custom_call.1} parent=99 // pred_region
          %s1615 = sand.u32 %s348, 1
          %s1616 = scalar_lea.sflag [#allocation4], %s1615
          %s1617 = sand.u32 %s348, 1
          %s1618 = smul.addr %s1617, 8
          %s1619 = scalar_lea.vmem [#allocation10], %s1618
          %1620 = dma.done %s1616, 128
        $region104: #{tpu_custom_call.1} parent=99 // pred_fallthru
          _
      $region100: #{tpu_custom_call.1} parent=5 // pred_fallthru
        _
    $region6: #{tpu_custom_call.1} parent=1 // loop_footer
      %s34 = sadd.s32 1, %s30
    $region7: #{tpu_custom_call.1} parent=1 // loop_footer_branch
      %29 = sbr.rel target = $region3
    $region8: #{tpu_custom_call.1} parent=1 // loop_exit
      _
    %1621 = vsyncpa [#allocation3], 1
    %s1622 = scalar_lea.sflag [#allocation3], 1
    %1623 = vsyncpa %s1622, 1
    %1624 = vsyncpa [#allocation6], 1
    %s1625 = scalar_lea.sflag [#allocation6], 1
    %1626 = vsyncpa %s1625, 1
    %1627 = vsyncpa [#allocation9], 1
    %1628 = vsyncpa [#allocation4], 1
    %s1629 = scalar_lea.sflag [#allocation4], 1
    %1630 = vsyncpa %s1629, 1

</llo_original>
